<compile_context>
chip_gen: v7x
topology: tpu7x:2x2x1
jax: 0.10.0
libtpu: 0.0.40
codegen_flags: <defaults>
</compile_context>

<pallas_src>
import jax
import jax.numpy as jnp
from jax.experimental import pallas as pl
from jax.experimental.pallas import tpu as pltpu

# ------------------------- config (small synthetic sizes) -------------------
B = 2            # batch
T = 8            # sequence length
VOCAB = 100
D = 32           # "bert_dim" (real model: 768)
HEADS = 4
DH = D // HEADS
FFN = 64
H_LSTM = 32      # lstm_dim == -1  ->  hidden_size == bert_dim
L_LABELS = 5     # len(labels_dict)  (synthetic)
LP = 8           # label dim padded for lane-friendlier layout
MAX_T = 16
NEG = -1e9

_WEIGHT_NAMES = (
    'ln0g', 'ln0b', 'w_qkv', 'b_qkv', 'w_o_h', 'b_o',
    'ln1g', 'ln1b', 'w_ff1', 'b_ff1', 'w_ff2', 'b_ff2', 'ln2g', 'ln2b',
    'rev_mat', 'w_ih_f_gd', 'w_ih_b_gd', 'b_gd', 'w_hh_gd',
    'w_cls_f', 'w_cls_b', 'b_cls', 'crf_start', 'crf_end', 'crf_trans',
)


def _rep(shape):
    """Full-array block replicated to every grid step (weights)."""
    return pl.BlockSpec(shape, lambda b: (0,) * len(shape))


# --------------------- single fused forward kernel (per batch row) ----------
def _fused_kernel(emb_ref, mask_ref,
                  ln0g, ln0b, w_qkv, b_qkv, w_o_h, b_o,
                  ln1g, ln1b, w_ff1, b_ff1, w_ff2, b_ff2, ln2g, ln2b,
                  rev_mat, w_ih_f_gd, w_ih_b_gd, b_gd, w_hh_gd,
                  w_cls_f, w_cls_b, b_cls,
                  crf_start, crf_end, crf_trans,
                  yp_ref, lstm_scr, hist_scr):
    f32, bf16 = jnp.float32, jnp.bfloat16
    H = H_LSTM

    def ln(x, g, b):
        mu = jnp.mean(x, axis=-1, keepdims=True)
        var = jnp.mean((x - mu) ** 2, axis=-1, keepdims=True)
        return (x - mu) * jax.lax.rsqrt(var + 1e-12) * g[...] + b[...]

    # ----------------------- encoder layer (seq-major, B block = 1) ---------
    x = emb_ref[...].reshape(T, D)
    m = mask_ref[...].reshape(1, T)                                # (1, T)

    h0 = ln(x, ln0g, ln0b)                                         # (T, D)
    qkv = (jnp.dot(h0.astype(bf16), w_qkv[...],
                   preferred_element_type=f32) + b_qkv[...])       # (T, 3D)

    def heads(mat, off):
        # (HEADS, T, DH): head-major stack of static lane slices
        return jnp.stack([mat[:, off + h * DH: off + (h + 1) * DH]
                          for h in range(HEADS)], axis=0)

    qh = heads(qkv, 0).astype(bf16)
    kh = heads(qkv, D).astype(bf16)
    vh = heads(qkv, 2 * D).astype(bf16)

    bias = (1.0 - m) * NEG                                         # (1, T)
    s = (jnp.einsum('hqd,hkd->hqk', qh, kh, preferred_element_type=f32)
         * (1.0 / (DH ** 0.5)) + bias[:, None, :])                 # (H, T, T)
    s = s - jnp.max(s, axis=-1, keepdims=True)
    p = jnp.exp(s)
    p = p * pl.reciprocal(jnp.sum(p, axis=-1, keepdims=True), approx=True)
    ctx = jnp.einsum('hqk,hkd->hqd', p.astype(bf16), vh,
                     preferred_element_type=f32)                   # (H, T, DH)
    # per-head slice of the output projection, summed over heads (no concat)
    attn = (jnp.sum(jnp.einsum('htd,hdo->hto', ctx.astype(bf16), w_o_h[...],
                               preferred_element_type=f32), axis=0)
            + b_o[...])                                            # (T, D)

    h1 = ln(h0 + attn, ln1g, ln1b)
    # TODO(synk): HF/DeepPavlov BERT uses the exact erf GELU; tanh approx here.
    ff = jax.nn.gelu(jnp.dot(h1.astype(bf16), w_ff1[...],
                             preferred_element_type=f32) + b_ff1[...],
                     approximate=True)
    ff = (jnp.dot(ff.astype(bf16), w_ff2[...], preferred_element_type=f32)
          + b_ff2[...])
    h2 = ln(h1 + ff, ln2g, ln2b)                                   # (T, D)

    # ------------- fused bidirectional LSTM (one matmul/step) + classifier --
    rev = rev_mat[...]                                             # (T, T) flip
    h2_rev = jnp.dot(rev, h2, preferred_element_type=f32)          # time-reversed
    # xp rows: fwd-direction precompute at time t, bwd at time T-1-t,
    # gate-major / direction-minor column layout (i_f i_b | f_f f_b | ...).
    xp = (jnp.dot(h2.astype(bf16), w_ih_f_gd[...], preferred_element_type=f32)
          + jnp.dot(h2_rev.astype(bf16), w_ih_b_gd[...],
                    preferred_element_type=f32)
          + b_gd[...])                                             # (T, 8H)
    w_hh = w_hh_gd[...]                                            # (2H, 8H)

    h_cat = jnp.zeros((1, 2 * H), f32)                             # [h_fwd | h_bwd]
    c_cat = jnp.zeros((1, 2 * H), f32)
    # NOTE: backward direction runs over the reversed *padded* sequence,
    # matching torch nn.LSTM without pack_padded_sequence (as in the spec).
    # TODO(synk): for T >> 8 convert to lax.fori_loop over xp/lstm scratch.
    for t in range(T):                                             # static unroll
        gates = xp[t:t + 1, :] + jnp.dot(h_cat, w_hh,
                                         preferred_element_type=f32)
        i_g = jax.nn.sigmoid(gates[:, 0:2 * H])
        f_g = jax.nn.sigmoid(gates[:, 2 * H:4 * H])
        g_g = jnp.tanh(gates[:, 4 * H:6 * H])
        o_g = jax.nn.sigmoid(gates[:, 6 * H:8 * H])
        c_cat = f_g * c_cat + i_g * g_g
        h_cat = o_g * jnp.tanh(c_cat)
        lstm_scr[pl.ds(t, 1), :] = h_cat          # row t: [h_f(t) | h_b(T-1-t)]

    slab = lstm_scr[...]                                           # (T, 2H)
    em = (jnp.dot(slab[:, :H].astype(bf16), w_cls_f[...],
                  preferred_element_type=f32)
          + jnp.dot(rev, jnp.dot(slab[:, H:].astype(bf16), w_cls_b[...],
                                 preferred_element_type=f32),
                    preferred_element_type=f32)
          + b_cls[...])                                            # (T, LP)

    # --------------------------- CRF Viterbi decode --------------------------
    trans = crf_trans[...]
    lane3 = jax.lax.broadcasted_iota(jnp.int32, (1, LP, LP), 1)
    lane2 = jax.lax.broadcasted_iota(jnp.int32, (1, LP), 1)
    col_t = jax.lax.broadcasted_iota(jnp.int32, (1, T), 1)

    score = crf_start[...] + em[0:1, :]                            # (1, LP)
    # TODO(synk): for long sequences switch to lax.fori_loop over hist_scr.
    for t in range(1, T):                                          # static unroll
        nxt = score[:, :, None] + trans[None, :, :] + em[t:t + 1, :][:, None, :]
        best = jnp.max(nxt, axis=1)                                # (1, LP)
        is_max = nxt >= best[:, None, :]
        hist_scr[pl.ds(t, 1), :] = jnp.min(
            jnp.where(is_max, lane3, LP), axis=1).astype(jnp.int32)
        score = jnp.where(m[:, t:t + 1] > 0, best, score)

    final = score + crf_end[...]                                   # (1, LP)
    best_val = jnp.max(final, axis=1, keepdims=True)
    best_tag = jnp.min(jnp.where(final >= best_val, lane2, LP),
                       axis=1, keepdims=True).astype(jnp.int32)    # (1, 1)
    seq_len = jnp.sum(m, axis=1, keepdims=True).astype(jnp.int32)  # (1, 1)

    # device-side backtracking (torchcrf semantics, zero padded)
    cur = jnp.zeros((1, 1), jnp.int32)
    yp = jnp.zeros((1, T), jnp.int32)
    for t in range(T - 1, -1, -1):                                 # static unroll
        if t + 1 <= T - 1:
            hist_t1 = hist_scr[pl.ds(t + 1, 1), :]                 # (1, LP)
            picked = jnp.max(jnp.where(lane2 == cur, hist_t1, 0),
                             axis=1, keepdims=True)
        else:
            picked = cur
        is_start = (seq_len - 1) == t
        is_inside = (seq_len - 1) > t
        cur = jnp.where(is_start, best_tag, jnp.where(is_inside, picked, cur))
        write = (is_start | is_inside) & (col_t == t)
        yp = jnp.where(write, cur, yp)
    yp_ref[...] = yp.reshape(1, 1, T)


# ------------------------------ glue (plain JAX) -----------------------------
def forward_core(packed, x_ids, attn_mask):
    mask3 = attn_mask.astype(jnp.float32).reshape(B, 1, T)
    # embedding lookup (data-dependent gather) stays in XLA glue
    emb = packed['tok_emb'][x_ids] + packed['pos_emb'][None, :T, :]

    weight_vals = [packed[n] for n in _WEIGHT_NAMES]
    in_specs = ([pl.BlockSpec((1, T, D), lambda b: (b, 0, 0)),
                 pl.BlockSpec((1, 1, T), lambda b: (b, 0, 0))]
                + [_rep(v.shape) for v in weight_vals])

    yp = pl.pallas_call(
        _fused_kernel,
        out_shape=jax.ShapeDtypeStruct((B, 1, T), jnp.int32),
        grid=(B,),
        in_specs=in_specs,
        out_specs=pl.BlockSpec((1, 1, T), lambda b: (b, 0, 0)),
        scratch_shapes=[pltpu.VMEM((T, 2 * H_LSTM), jnp.float32),  # LSTM slab
                        pltpu.VMEM((T, LP), jnp.int32)],           # CRF history
        compiler_params=pltpu.CompilerParams(
            dimension_semantics=("parallel",)),
    )(emb, mask3, *weight_vals)
    return yp.reshape(B, T)                                        # (B, T) int32


# --------------------------- init-time parameter packing ---------------------
def pack_params(p):
    """One-time packing: gate reordering, label/CRF padding, bf16 casts."""
    H = H_LSTM
    bf = jnp.bfloat16

    def place_gd(w, direction):
        # w: (rows, 4H) gate blocks [i|f|g|o] -> (rows, 8H) gate-major,
        # direction-minor layout [i_f i_b | f_f f_b | g_f g_b | o_f o_b].
        out = jnp.zeros((w.shape[0], 8 * H), jnp.float32)
        for g in range(4):
            c0 = g * 2 * H + direction * H
            out = out.at[:, c0:c0 + H].set(w[:, g * H:(g + 1) * H])
        return out

    return {
        'tok_emb': p['tok_emb'], 'pos_emb': p['pos_emb'],
        'ln0g': p['ln_emb_g'].reshape(1, D), 'ln0b': p['ln_emb_b'].reshape(1, D),
        'w_qkv': p['w_qkv'].astype(bf), 'b_qkv': p['b_qkv'].reshape(1, -1),
        'w_o_h': p['w_o'].reshape(HEADS, DH, D).astype(bf),
        'b_o': p['b_o'].reshape(1, -1),
        'ln1g': p['ln1_g'].reshape(1, D), 'ln1b': p['ln1_b'].reshape(1, D),
        'w_ff1': p['w_ff1'].astype(bf), 'b_ff1': p['b_ff1'].reshape(1, -1),
        'w_ff2': p['w_ff2'].astype(bf), 'b_ff2': p['b_ff2'].reshape(1, -1),
        'ln2g': p['ln2_g'].reshape(1, D), 'ln2b': p['ln2_b'].reshape(1, D),
        'rev_mat': jnp.flipud(jnp.eye(T, dtype=jnp.float32)),
        'w_ih_f_gd': place_gd(p['w_ih_f'].T, 0).astype(bf),
        'w_ih_b_gd': place_gd(p['w_ih_b'].T, 1).astype(bf),
        'b_gd': (place_gd((p['b_ih_f'] + p['b_hh_f'])[None, :], 0)
                 + place_gd((p['b_ih_b'] + p['b_hh_b'])[None, :], 1)),
        'w_hh_gd': jnp.concatenate([place_gd(p['w_hh_f'].T, 0),
                                    place_gd(p['w_hh_b'].T, 1)], axis=0),
        'w_cls_f': jnp.zeros((H, LP), jnp.float32)
                      .at[:, :L_LABELS].set(p['w_cls'][:H]).astype(bf),
        'w_cls_b': jnp.zeros((H, LP), jnp.float32)
                      .at[:, :L_LABELS].set(p['w_cls'][H:]).astype(bf),
        'b_cls': jnp.zeros((1, LP), jnp.float32)
                    .at[:, :L_LABELS].set(p['b_cls'][None, :]),
        'crf_start': jnp.full((1, LP), NEG, jnp.float32)
                        .at[:, :L_LABELS].set(p['crf_start'][None, :]),
        'crf_end': jnp.full((1, LP), NEG, jnp.float32)
                      .at[:, :L_LABELS].set(p['crf_end'][None, :]),
        'crf_trans': jnp.full((LP, LP), NEG, jnp.float32)
                        .at[:L_LABELS, :L_LABELS].set(p['crf_trans']),
    }


# ------------------------------- raw parameters ------------------------------
def init_params(key):
    ks = jax.random.split(key, 20)

    def nrm(k, shape, scale=0.02):
        return scale * jax.random.normal(k, shape, jnp.float32)

    s = 1.0 / (H_LSTM ** 0.5)

    def uni(k, shape, lo=-s, hi=s):
        return jax.random.uniform(k, shape, jnp.float32, lo, hi)

    return {
        'tok_emb': nrm(ks[0], (VOCAB, D)),
        'pos_emb': nrm(ks[1], (MAX_T, D)),
        'ln_emb_g': jnp.ones((D,), jnp.float32),
        'ln_emb_b': jnp.zeros((D,), jnp.float32),
        'w_qkv': nrm(ks[2], (D, 3 * D)), 'b_qkv': jnp.zeros((3 * D,), jnp.float32),
        'w_o': nrm(ks[3], (D, D)), 'b_o': jnp.zeros((D,), jnp.float32),
        'ln1_g': jnp.ones((D,), jnp.float32), 'ln1_b': jnp.zeros((D,), jnp.float32),
        'w_ff1': nrm(ks[4], (D, FFN)), 'b_ff1': jnp.zeros((FFN,), jnp.float32),
        'w_ff2': nrm(ks[5], (FFN, D)), 'b_ff2': jnp.zeros((D,), jnp.float32),
        'ln2_g': jnp.ones((D,), jnp.float32), 'ln2_b': jnp.zeros((D,), jnp.float32),
        # nn.LSTM parameter shapes (gate order i, f, g, o)
        'w_ih_f': uni(ks[6], (4 * H_LSTM, D)),
        'w_hh_f': uni(ks[7], (4 * H_LSTM, H_LSTM)),
        'b_ih_f': uni(ks[8], (4 * H_LSTM,)),
        'b_hh_f': uni(ks[9], (4 * H_LSTM,)),
        'w_ih_b': uni(ks[10], (4 * H_LSTM, D)),
        'w_hh_b': uni(ks[11], (4 * H_LSTM, H_LSTM)),
        'b_ih_b': uni(ks[12], (4 * H_LSTM,)),
        'b_hh_b': uni(ks[13], (4 * H_LSTM,)),
        # classifier
        'w_cls': nrm(ks[14], (2 * H_LSTM, L_LABELS)),
        'b_cls': jnp.zeros((L_LABELS,), jnp.float32),
        # CRF params (torchcrf init: uniform(-0.1, 0.1))
        'crf_start': uni(ks[15], (L_LABELS,), -0.1, 0.1),
        'crf_end': uni(ks[16], (L_LABELS,), -0.1, 0.1),
        'crf_trans': uni(ks[17], (L_LABELS, L_LABELS), -0.1, 0.1),
    }


# --------------------------------- main ---------------------------------------
if __name__ == "__main__":
    key = jax.random.PRNGKey(0)
    kp, kx, ky = jax.random.split(key, 3)
    params = init_params(kp)
    packed = pack_params(params)          # one-time packing, out of the hot path

    x_ids = jax.random.randint(kx, (B, T), 0, VOCAB, dtype=jnp.int32)
    attn_mask = jnp.array([[1] * T, [1, 1, 1, 1, 1, 0, 0, 0]], dtype=jnp.int32)
    y = jax.random.randint(ky, (B, T), 0, L_LABELS, dtype=jnp.int32)

    y_pred = jax.jit(forward_core)(packed, x_ids, attn_mask)
    y_pred = jax.block_until_ready(y_pred)

    assert y_pred.shape == y.shape
    assert int(jnp.min(y_pred)) >= 0 and int(jnp.max(y_pred)) < L_LABELS
    print("KERNEL_OK")
</pallas_src>

<mosaic_0001>
module attributes {stable_mosaic.version = 11 : i64} {
  func.func @_fused_kernel(%arg0: i32, %arg1: memref<1x8x32xf32, #tpu.memory_space<vmem>>, %arg2: memref<1x1x8xf32, #tpu.memory_space<vmem>>, %arg3: memref<1x32xf32, #tpu.memory_space<vmem>>, %arg4: memref<1x32xf32, #tpu.memory_space<vmem>>, %arg5: memref<32x96xbf16, #tpu.memory_space<vmem>>, %arg6: memref<1x96xf32, #tpu.memory_space<vmem>>, %arg7: memref<4x8x32xbf16, #tpu.memory_space<vmem>>, %arg8: memref<1x32xf32, #tpu.memory_space<vmem>>, %arg9: memref<1x32xf32, #tpu.memory_space<vmem>>, %arg10: memref<1x32xf32, #tpu.memory_space<vmem>>, %arg11: memref<32x64xbf16, #tpu.memory_space<vmem>>, %arg12: memref<1x64xf32, #tpu.memory_space<vmem>>, %arg13: memref<64x32xbf16, #tpu.memory_space<vmem>>, %arg14: memref<1x32xf32, #tpu.memory_space<vmem>>, %arg15: memref<1x32xf32, #tpu.memory_space<vmem>>, %arg16: memref<1x32xf32, #tpu.memory_space<vmem>>, %arg17: memref<8x8xf32, #tpu.memory_space<vmem>>, %arg18: memref<32x256xbf16, #tpu.memory_space<vmem>>, %arg19: memref<32x256xbf16, #tpu.memory_space<vmem>>, %arg20: memref<1x256xf32, #tpu.memory_space<vmem>>, %arg21: memref<64x256xf32, #tpu.memory_space<vmem>>, %arg22: memref<32x8xbf16, #tpu.memory_space<vmem>>, %arg23: memref<32x8xbf16, #tpu.memory_space<vmem>>, %arg24: memref<1x8xf32, #tpu.memory_space<vmem>>, %arg25: memref<1x8xf32, #tpu.memory_space<vmem>>, %arg26: memref<1x8xf32, #tpu.memory_space<vmem>>, %arg27: memref<8x8xf32, #tpu.memory_space<vmem>>, %arg28: memref<1x1x8xi32, #tpu.memory_space<vmem>>, %arg29: memref<8x64xf32, #tpu.memory_space<vmem>>, %arg30: memref<8x8xi32, #tpu.memory_space<vmem>>) attributes {dimension_semantics = [#tpu.dimension_semantics<parallel>], iteration_bounds = array<i64: 2>, scalar_prefetch = 0 : i64, scratch_operands = 2 : i64, tpu.core_type = #tpu.core_type<tc>, window_params = [{transform_indices = @transform_0, window_bounds = array<i64: 1, 8, 32>}, {transform_indices = @transform_1, window_bounds = array<i64: 1, 1, 8>}, {pipeline_mode = #tpu.pipeline_mode<synchronous>, transform_indices = @transform_2, window_bounds = array<i64: 1, 32>}, {pipeline_mode = #tpu.pipeline_mode<synchronous>, transform_indices = @transform_3, window_bounds = array<i64: 1, 32>}, {pipeline_mode = #tpu.pipeline_mode<synchronous>, transform_indices = @transform_4, window_bounds = array<i64: 32, 96>}, {pipeline_mode = #tpu.pipeline_mode<synchronous>, transform_indices = @transform_5, window_bounds = array<i64: 1, 96>}, {pipeline_mode = #tpu.pipeline_mode<synchronous>, transform_indices = @transform_6, window_bounds = array<i64: 4, 8, 32>}, {pipeline_mode = #tpu.pipeline_mode<synchronous>, transform_indices = @transform_7, window_bounds = array<i64: 1, 32>}, {pipeline_mode = #tpu.pipeline_mode<synchronous>, transform_indices = @transform_8, window_bounds = array<i64: 1, 32>}, {pipeline_mode = #tpu.pipeline_mode<synchronous>, transform_indices = @transform_9, window_bounds = array<i64: 1, 32>}, {pipeline_mode = #tpu.pipeline_mode<synchronous>, transform_indices = @transform_10, window_bounds = array<i64: 32, 64>}, {pipeline_mode = #tpu.pipeline_mode<synchronous>, transform_indices = @transform_11, window_bounds = array<i64: 1, 64>}, {pipeline_mode = #tpu.pipeline_mode<synchronous>, transform_indices = @transform_12, window_bounds = array<i64: 64, 32>}, {pipeline_mode = #tpu.pipeline_mode<synchronous>, transform_indices = @transform_13, window_bounds = array<i64: 1, 32>}, {pipeline_mode = #tpu.pipeline_mode<synchronous>, transform_indices = @transform_14, window_bounds = array<i64: 1, 32>}, {pipeline_mode = #tpu.pipeline_mode<synchronous>, transform_indices = @transform_15, window_bounds = array<i64: 1, 32>}, {pipeline_mode = #tpu.pipeline_mode<synchronous>, transform_indices = @transform_16, window_bounds = array<i64: 8, 8>}, {pipeline_mode = #tpu.pipeline_mode<synchronous>, transform_indices = @transform_17, window_bounds = array<i64: 32, 256>}, {pipeline_mode = #tpu.pipeline_mode<synchronous>, transform_indices = @transform_18, window_bounds = array<i64: 32, 256>}, {pipeline_mode = #tpu.pipeline_mode<synchronous>, transform_indices = @transform_19, window_bounds = array<i64: 1, 256>}, {pipeline_mode = #tpu.pipeline_mode<synchronous>, transform_indices = @transform_20, window_bounds = array<i64: 64, 256>}, {pipeline_mode = #tpu.pipeline_mode<synchronous>, transform_indices = @transform_21, window_bounds = array<i64: 32, 8>}, {pipeline_mode = #tpu.pipeline_mode<synchronous>, transform_indices = @transform_22, window_bounds = array<i64: 32, 8>}, {pipeline_mode = #tpu.pipeline_mode<synchronous>, transform_indices = @transform_23, window_bounds = array<i64: 1, 8>}, {pipeline_mode = #tpu.pipeline_mode<synchronous>, transform_indices = @transform_24, window_bounds = array<i64: 1, 8>}, {pipeline_mode = #tpu.pipeline_mode<synchronous>, transform_indices = @transform_25, window_bounds = array<i64: 1, 8>}, {pipeline_mode = #tpu.pipeline_mode<synchronous>, transform_indices = @transform_26, window_bounds = array<i64: 8, 8>}, {transform_indices = @transform_27, window_bounds = array<i64: 1, 1, 8>}]} {
    %c0 = arith.constant 0 : index
    %c0_0 = arith.constant 0 : index
    %c0_1 = arith.constant 0 : index
    %0 = vector.load %arg1[%c0, %c0_0, %c0_1] : memref<1x8x32xf32, #tpu.memory_space<vmem>>, vector<1x8x32xf32>
    %1 = vector.shape_cast %0 : vector<1x8x32xf32> to vector<8x32xf32>
    %c0_2 = arith.constant 0 : index
    %c0_3 = arith.constant 0 : index
    %c0_4 = arith.constant 0 : index
    %2 = vector.load %arg2[%c0_2, %c0_3, %c0_4] : memref<1x1x8xf32, #tpu.memory_space<vmem>>, vector<1x1x8xf32>
    %3 = vector.shape_cast %2 : vector<1x1x8xf32> to vector<1x8xf32>
    %cst = arith.constant dense<0.000000e+00> : vector<8xf32>
    %4 = vector.multi_reduction <add>, %1, %cst [1] : vector<8x32xf32> to vector<8xf32>
    %5 = vector.shape_cast %4 : vector<8xf32> to vector<8x1xf32>
    %cst_5 = arith.constant 3.200000e+01 : f32
    %6 = vector.broadcast %cst_5 : f32 to vector<8x1xf32>
    %7 = arith.divf %5, %6 : vector<8x1xf32>
    %8 = vector.broadcast %7 : vector<8x1xf32> to vector<8x32xf32>
    %9 = arith.subf %1, %8 : vector<8x32xf32>
    %10 = arith.mulf %9, %9 : vector<8x32xf32>
    %cst_6 = arith.constant dense<0.000000e+00> : vector<8xf32>
    %11 = vector.multi_reduction <add>, %10, %cst_6 [1] : vector<8x32xf32> to vector<8xf32>
    %12 = vector.shape_cast %11 : vector<8xf32> to vector<8x1xf32>
    %cst_7 = arith.constant 3.200000e+01 : f32
    %13 = vector.broadcast %cst_7 : f32 to vector<8x1xf32>
    %14 = arith.divf %12, %13 : vector<8x1xf32>
    %15 = vector.broadcast %7 : vector<8x1xf32> to vector<8x32xf32>
    %16 = arith.subf %1, %15 : vector<8x32xf32>
    %cst_8 = arith.constant 9.99999996E-13 : f32
    %17 = vector.broadcast %cst_8 : f32 to vector<8x1xf32>
    %18 = arith.addf %14, %17 : vector<8x1xf32>
    %19 = math.rsqrt %18 : vector<8x1xf32>
    %20 = vector.broadcast %19 : vector<8x1xf32> to vector<8x32xf32>
    %21 = arith.mulf %16, %20 : vector<8x32xf32>
    %c0_9 = arith.constant 0 : index
    %c0_10 = arith.constant 0 : index
    %22 = vector.load %arg3[%c0_9, %c0_10] : memref<1x32xf32, #tpu.memory_space<vmem>>, vector<1x32xf32>
    %23 = vector.broadcast %22 : vector<1x32xf32> to vector<8x32xf32>
    %24 = arith.mulf %21, %23 : vector<8x32xf32>
    %c0_11 = arith.constant 0 : index
    %c0_12 = arith.constant 0 : index
    %25 = vector.load %arg4[%c0_11, %c0_12] : memref<1x32xf32, #tpu.memory_space<vmem>>, vector<1x32xf32>
    %26 = vector.broadcast %25 : vector<1x32xf32> to vector<8x32xf32>
    %27 = arith.addf %24, %26 : vector<8x32xf32>
    %28 = arith.truncf %27 : vector<8x32xf32> to vector<8x32xbf16>
    %c0_13 = arith.constant 0 : index
    %c0_14 = arith.constant 0 : index
    %29 = vector.load %arg5[%c0_13, %c0_14] : memref<32x96xbf16, #tpu.memory_space<vmem>>, vector<32x96xbf16>
    %cst_15 = arith.constant dense<0.000000e+00> : vector<8x96xf32>
    %30 = tpu.matmul %28, %29, %cst_15 {dimension_numbers = #tpu.dot_dimension_numbers<[1], [0], [0], [1], [0, 0, 1, 1], [], []>} : vector<8x32xbf16>, vector<32x96xbf16>, vector<8x96xf32> -> vector<8x96xf32>
    %c0_16 = arith.constant 0 : index
    %c0_17 = arith.constant 0 : index
    %31 = vector.load %arg6[%c0_16, %c0_17] : memref<1x96xf32, #tpu.memory_space<vmem>>, vector<1x96xf32>
    %32 = vector.broadcast %31 : vector<1x96xf32> to vector<8x96xf32>
    %33 = arith.addf %30, %32 : vector<8x96xf32>
    %34 = vector.extract_strided_slice %33 {offsets = [0, 0], sizes = [8, 8], strides = [1, 1]} : vector<8x96xf32> to vector<8x8xf32>
    %35 = vector.extract_strided_slice %33 {offsets = [0, 8], sizes = [8, 8], strides = [1, 1]} : vector<8x96xf32> to vector<8x8xf32>
    %36 = vector.extract_strided_slice %33 {offsets = [0, 16], sizes = [8, 8], strides = [1, 1]} : vector<8x96xf32> to vector<8x8xf32>
    %37 = vector.extract_strided_slice %33 {offsets = [0, 24], sizes = [8, 8], strides = [1, 1]} : vector<8x96xf32> to vector<8x8xf32>
    %38 = vector.shape_cast %34 : vector<8x8xf32> to vector<1x8x8xf32>
    %39 = vector.shape_cast %35 : vector<8x8xf32> to vector<1x8x8xf32>
    %40 = vector.shape_cast %36 : vector<8x8xf32> to vector<1x8x8xf32>
    %41 = vector.shape_cast %37 : vector<8x8xf32> to vector<1x8x8xf32>
    %42 = tpu.concatenate %38, %39, %40, %41 in 0 : vector<1x8x8xf32>, vector<1x8x8xf32>, vector<1x8x8xf32>, vector<1x8x8xf32> -> vector<4x8x8xf32>
    %43 = arith.truncf %42 : vector<4x8x8xf32> to vector<4x8x8xbf16>
    %44 = vector.extract_strided_slice %33 {offsets = [0, 32], sizes = [8, 8], strides = [1, 1]} : vector<8x96xf32> to vector<8x8xf32>
    %45 = vector.extract_strided_slice %33 {offsets = [0, 40], sizes = [8, 8], strides = [1, 1]} : vector<8x96xf32> to vector<8x8xf32>
    %46 = vector.extract_strided_slice %33 {offsets = [0, 48], sizes = [8, 8], strides = [1, 1]} : vector<8x96xf32> to vector<8x8xf32>
    %47 = vector.extract_strided_slice %33 {offsets = [0, 56], sizes = [8, 8], strides = [1, 1]} : vector<8x96xf32> to vector<8x8xf32>
    %48 = vector.shape_cast %44 : vector<8x8xf32> to vector<1x8x8xf32>
    %49 = vector.shape_cast %45 : vector<8x8xf32> to vector<1x8x8xf32>
    %50 = vector.shape_cast %46 : vector<8x8xf32> to vector<1x8x8xf32>
    %51 = vector.shape_cast %47 : vector<8x8xf32> to vector<1x8x8xf32>
    %52 = tpu.concatenate %48, %49, %50, %51 in 0 : vector<1x8x8xf32>, vector<1x8x8xf32>, vector<1x8x8xf32>, vector<1x8x8xf32> -> vector<4x8x8xf32>
    %53 = arith.truncf %52 : vector<4x8x8xf32> to vector<4x8x8xbf16>
    %54 = vector.extract_strided_slice %33 {offsets = [0, 64], sizes = [8, 8], strides = [1, 1]} : vector<8x96xf32> to vector<8x8xf32>
    %55 = vector.extract_strided_slice %33 {offsets = [0, 72], sizes = [8, 8], strides = [1, 1]} : vector<8x96xf32> to vector<8x8xf32>
    %56 = vector.extract_strided_slice %33 {offsets = [0, 80], sizes = [8, 8], strides = [1, 1]} : vector<8x96xf32> to vector<8x8xf32>
    %57 = vector.extract_strided_slice %33 {offsets = [0, 88], sizes = [8, 8], strides = [1, 1]} : vector<8x96xf32> to vector<8x8xf32>
    %58 = vector.shape_cast %54 : vector<8x8xf32> to vector<1x8x8xf32>
    %59 = vector.shape_cast %55 : vector<8x8xf32> to vector<1x8x8xf32>
    %60 = vector.shape_cast %56 : vector<8x8xf32> to vector<1x8x8xf32>
    %61 = vector.shape_cast %57 : vector<8x8xf32> to vector<1x8x8xf32>
    %62 = tpu.concatenate %58, %59, %60, %61 in 0 : vector<1x8x8xf32>, vector<1x8x8xf32>, vector<1x8x8xf32>, vector<1x8x8xf32> -> vector<4x8x8xf32>
    %63 = arith.truncf %62 : vector<4x8x8xf32> to vector<4x8x8xbf16>
    %cst_18 = arith.constant 1.000000e+00 : f32
    %64 = vector.broadcast %cst_18 : f32 to vector<1x8xf32>
    %65 = arith.subf %64, %3 : vector<1x8xf32>
    %cst_19 = arith.constant -1.000000e+09 : f32
    %66 = vector.broadcast %cst_19 : f32 to vector<1x8xf32>
    %67 = arith.mulf %65, %66 : vector<1x8xf32>
    "tpu.trace_start"() <{level = 10 : i32, message = "hqd,hkd->hqk"}> : () -> ()
    %cst_20 = arith.constant dense<0.000000e+00> : vector<4x8x8xf32>
    %68 = tpu.matmul %43, %53, %cst_20 {dimension_numbers = #tpu.dot_dimension_numbers<[2], [2], [1], [1], [0, 0, 0, 1, 1, 1], [0], [0]>} : vector<4x8x8xbf16>, vector<4x8x8xbf16>, vector<4x8x8xf32> -> vector<4x8x8xf32>
    "tpu.trace_stop"() : () -> ()
    %cst_21 = arith.constant 0.353553385 : f32
    %69 = vector.broadcast %cst_21 : f32 to vector<4x8x8xf32>
    %70 = arith.mulf %68, %69 : vector<4x8x8xf32>
    %71 = vector.shape_cast %67 : vector<1x8xf32> to vector<1x1x8xf32>
    %72 = vector.broadcast %71 : vector<1x1x8xf32> to vector<4x8x8xf32>
    %73 = arith.addf %70, %72 : vector<4x8x8xf32>
    %cst_22 = arith.constant dense<0xFF800000> : vector<4x8xf32>
    %74 = vector.multi_reduction <maximumf>, %73, %cst_22 [2] : vector<4x8x8xf32> to vector<4x8xf32>
    %75 = vector.shape_cast %74 : vector<4x8xf32> to vector<4x8x1xf32>
    %76 = vector.broadcast %75 : vector<4x8x1xf32> to vector<4x8x8xf32>
    %77 = arith.subf %73, %76 : vector<4x8x8xf32>
    %78 = math.exp %77 : vector<4x8x8xf32>
    %cst_23 = arith.constant dense<0.000000e+00> : vector<4x8xf32>
    %79 = vector.multi_reduction <add>, %78, %cst_23 [2] : vector<4x8x8xf32> to vector<4x8xf32>
    %80 = vector.shape_cast %79 : vector<4x8xf32> to vector<4x8x1xf32>
    %81 = tpu.reciprocal %80 {approx = true} : vector<4x8x1xf32> -> vector<4x8x1xf32>
    %82 = vector.broadcast %81 : vector<4x8x1xf32> to vector<4x8x8xf32>
    %83 = arith.mulf %78, %82 : vector<4x8x8xf32>
    %84 = arith.truncf %83 : vector<4x8x8xf32> to vector<4x8x8xbf16>
    "tpu.trace_start"() <{level = 10 : i32, message = "hqk,hkd->hqd"}> : () -> ()
    %cst_24 = arith.constant dense<0.000000e+00> : vector<4x8x8xf32>
    %85 = tpu.matmul %84, %63, %cst_24 {dimension_numbers = #tpu.dot_dimension_numbers<[2], [1], [1], [2], [0, 0, 0, 1, 1, 2], [0], [0]>} : vector<4x8x8xbf16>, vector<4x8x8xbf16>, vector<4x8x8xf32> -> vector<4x8x8xf32>
    "tpu.trace_stop"() : () -> ()
    %86 = arith.truncf %85 : vector<4x8x8xf32> to vector<4x8x8xbf16>
    %c0_25 = arith.constant 0 : index
    %c0_26 = arith.constant 0 : index
    %c0_27 = arith.constant 0 : index
    %87 = vector.load %arg7[%c0_25, %c0_26, %c0_27] : memref<4x8x32xbf16, #tpu.memory_space<vmem>>, vector<4x8x32xbf16>
    "tpu.trace_start"() <{level = 10 : i32, message = "htd,hdo->hto"}> : () -> ()
    %cst_28 = arith.constant dense<0.000000e+00> : vector<4x8x32xf32>
    %88 = tpu.matmul %86, %87, %cst_28 {dimension_numbers = #tpu.dot_dimension_numbers<[2], [1], [1], [2], [0, 0, 0, 1, 1, 2], [0], [0]>} : vector<4x8x8xbf16>, vector<4x8x32xbf16>, vector<4x8x32xf32> -> vector<4x8x32xf32>
    "tpu.trace_stop"() : () -> ()
    %cst_29 = arith.constant dense<0.000000e+00> : vector<8x32xf32>
    %89 = vector.multi_reduction <add>, %88, %cst_29 [0] : vector<4x8x32xf32> to vector<8x32xf32>
    %c0_30 = arith.constant 0 : index
    %c0_31 = arith.constant 0 : index
    %90 = vector.load %arg8[%c0_30, %c0_31] : memref<1x32xf32, #tpu.memory_space<vmem>>, vector<1x32xf32>
    %91 = vector.broadcast %90 : vector<1x32xf32> to vector<8x32xf32>
    %92 = arith.addf %89, %91 : vector<8x32xf32>
    %93 = arith.addf %27, %92 : vector<8x32xf32>
    %cst_32 = arith.constant dense<0.000000e+00> : vector<8xf32>
    %94 = vector.multi_reduction <add>, %93, %cst_32 [1] : vector<8x32xf32> to vector<8xf32>
    %95 = vector.shape_cast %94 : vector<8xf32> to vector<8x1xf32>
    %cst_33 = arith.constant 3.200000e+01 : f32
    %96 = vector.broadcast %cst_33 : f32 to vector<8x1xf32>
    %97 = arith.divf %95, %96 : vector<8x1xf32>
    %98 = vector.broadcast %97 : vector<8x1xf32> to vector<8x32xf32>
    %99 = arith.subf %93, %98 : vector<8x32xf32>
    %100 = arith.mulf %99, %99 : vector<8x32xf32>
    %cst_34 = arith.constant dense<0.000000e+00> : vector<8xf32>
    %101 = vector.multi_reduction <add>, %100, %cst_34 [1] : vector<8x32xf32> to vector<8xf32>
    %102 = vector.shape_cast %101 : vector<8xf32> to vector<8x1xf32>
    %cst_35 = arith.constant 3.200000e+01 : f32
    %103 = vector.broadcast %cst_35 : f32 to vector<8x1xf32>
    %104 = arith.divf %102, %103 : vector<8x1xf32>
    %105 = vector.broadcast %97 : vector<8x1xf32> to vector<8x32xf32>
    %106 = arith.subf %93, %105 : vector<8x32xf32>
    %cst_36 = arith.constant 9.99999996E-13 : f32
    %107 = vector.broadcast %cst_36 : f32 to vector<8x1xf32>
    %108 = arith.addf %104, %107 : vector<8x1xf32>
    %109 = math.rsqrt %108 : vector<8x1xf32>
    %110 = vector.broadcast %109 : vector<8x1xf32> to vector<8x32xf32>
    %111 = arith.mulf %106, %110 : vector<8x32xf32>
    %c0_37 = arith.constant 0 : index
    %c0_38 = arith.constant 0 : index
    %112 = vector.load %arg9[%c0_37, %c0_38] : memref<1x32xf32, #tpu.memory_space<vmem>>, vector<1x32xf32>
    %113 = vector.broadcast %112 : vector<1x32xf32> to vector<8x32xf32>
    %114 = arith.mulf %111, %113 : vector<8x32xf32>
    %c0_39 = arith.constant 0 : index
    %c0_40 = arith.constant 0 : index
    %115 = vector.load %arg10[%c0_39, %c0_40] : memref<1x32xf32, #tpu.memory_space<vmem>>, vector<1x32xf32>
    %116 = vector.broadcast %115 : vector<1x32xf32> to vector<8x32xf32>
    %117 = arith.addf %114, %116 : vector<8x32xf32>
    %118 = arith.truncf %117 : vector<8x32xf32> to vector<8x32xbf16>
    %c0_41 = arith.constant 0 : index
    %c0_42 = arith.constant 0 : index
    %119 = vector.load %arg11[%c0_41, %c0_42] : memref<32x64xbf16, #tpu.memory_space<vmem>>, vector<32x64xbf16>
    %cst_43 = arith.constant dense<0.000000e+00> : vector<8x64xf32>
    %120 = tpu.matmul %118, %119, %cst_43 {dimension_numbers = #tpu.dot_dimension_numbers<[1], [0], [0], [1], [0, 0, 1, 1], [], []>} : vector<8x32xbf16>, vector<32x64xbf16>, vector<8x64xf32> -> vector<8x64xf32>
    %c0_44 = arith.constant 0 : index
    %c0_45 = arith.constant 0 : index
    %121 = vector.load %arg12[%c0_44, %c0_45] : memref<1x64xf32, #tpu.memory_space<vmem>>, vector<1x64xf32>
    %122 = vector.broadcast %121 : vector<1x64xf32> to vector<8x64xf32>
    %123 = arith.addf %120, %122 : vector<8x64xf32>
    %124 = arith.mulf %123, %123 : vector<8x64xf32>
    %125 = arith.mulf %123, %124 : vector<8x64xf32>
    %cst_46 = arith.constant 4.471500e-02 : f32
    %126 = vector.broadcast %cst_46 : f32 to vector<8x64xf32>
    %127 = arith.mulf %126, %125 : vector<8x64xf32>
    %128 = arith.addf %123, %127 : vector<8x64xf32>
    %cst_47 = arith.constant 0.797884583 : f32
    %129 = vector.broadcast %cst_47 : f32 to vector<8x64xf32>
    %130 = arith.mulf %129, %128 : vector<8x64xf32>
    %131 = math.tanh %130 : vector<8x64xf32>
    %cst_48 = arith.constant 1.000000e+00 : f32
    %132 = vector.broadcast %cst_48 : f32 to vector<8x64xf32>
    %133 = arith.addf %132, %131 : vector<8x64xf32>
    %cst_49 = arith.constant 5.000000e-01 : f32
    %134 = vector.broadcast %cst_49 : f32 to vector<8x64xf32>
    %135 = arith.mulf %134, %133 : vector<8x64xf32>
    %136 = arith.mulf %123, %135 : vector<8x64xf32>
    %137 = arith.truncf %136 : vector<8x64xf32> to vector<8x64xbf16>
    %c0_50 = arith.constant 0 : index
    %c0_51 = arith.constant 0 : index
    %138 = vector.load %arg13[%c0_50, %c0_51] : memref<64x32xbf16, #tpu.memory_space<vmem>>, vector<64x32xbf16>
    %cst_52 = arith.constant dense<0.000000e+00> : vector<8x32xf32>
    %139 = tpu.matmul %137, %138, %cst_52 {dimension_numbers = #tpu.dot_dimension_numbers<[1], [0], [0], [1], [0, 0, 1, 1], [], []>} : vector<8x64xbf16>, vector<64x32xbf16>, vector<8x32xf32> -> vector<8x32xf32>
    %c0_53 = arith.constant 0 : index
    %c0_54 = arith.constant 0 : index
    %140 = vector.load %arg14[%c0_53, %c0_54] : memref<1x32xf32, #tpu.memory_space<vmem>>, vector<1x32xf32>
    %141 = vector.broadcast %140 : vector<1x32xf32> to vector<8x32xf32>
    %142 = arith.addf %139, %141 : vector<8x32xf32>
    %143 = arith.addf %117, %142 : vector<8x32xf32>
    %cst_55 = arith.constant dense<0.000000e+00> : vector<8xf32>
    %144 = vector.multi_reduction <add>, %143, %cst_55 [1] : vector<8x32xf32> to vector<8xf32>
    %145 = vector.shape_cast %144 : vector<8xf32> to vector<8x1xf32>
    %cst_56 = arith.constant 3.200000e+01 : f32
    %146 = vector.broadcast %cst_56 : f32 to vector<8x1xf32>
    %147 = arith.divf %145, %146 : vector<8x1xf32>
    %148 = vector.broadcast %147 : vector<8x1xf32> to vector<8x32xf32>
    %149 = arith.subf %143, %148 : vector<8x32xf32>
    %150 = arith.mulf %149, %149 : vector<8x32xf32>
    %cst_57 = arith.constant dense<0.000000e+00> : vector<8xf32>
    %151 = vector.multi_reduction <add>, %150, %cst_57 [1] : vector<8x32xf32> to vector<8xf32>
    %152 = vector.shape_cast %151 : vector<8xf32> to vector<8x1xf32>
    %cst_58 = arith.constant 3.200000e+01 : f32
    %153 = vector.broadcast %cst_58 : f32 to vector<8x1xf32>
    %154 = arith.divf %152, %153 : vector<8x1xf32>
    %155 = vector.broadcast %147 : vector<8x1xf32> to vector<8x32xf32>
    %156 = arith.subf %143, %155 : vector<8x32xf32>
    %cst_59 = arith.constant 9.99999996E-13 : f32
    %157 = vector.broadcast %cst_59 : f32 to vector<8x1xf32>
    %158 = arith.addf %154, %157 : vector<8x1xf32>
    %159 = math.rsqrt %158 : vector<8x1xf32>
    %160 = vector.broadcast %159 : vector<8x1xf32> to vector<8x32xf32>
    %161 = arith.mulf %156, %160 : vector<8x32xf32>
    %c0_60 = arith.constant 0 : index
    %c0_61 = arith.constant 0 : index
    %162 = vector.load %arg15[%c0_60, %c0_61] : memref<1x32xf32, #tpu.memory_space<vmem>>, vector<1x32xf32>
    %163 = vector.broadcast %162 : vector<1x32xf32> to vector<8x32xf32>
    %164 = arith.mulf %161, %163 : vector<8x32xf32>
    %c0_62 = arith.constant 0 : index
    %c0_63 = arith.constant 0 : index
    %165 = vector.load %arg16[%c0_62, %c0_63] : memref<1x32xf32, #tpu.memory_space<vmem>>, vector<1x32xf32>
    %166 = vector.broadcast %165 : vector<1x32xf32> to vector<8x32xf32>
    %167 = arith.addf %164, %166 : vector<8x32xf32>
    %c0_64 = arith.constant 0 : index
    %c0_65 = arith.constant 0 : index
    %168 = vector.load %arg17[%c0_64, %c0_65] : memref<8x8xf32, #tpu.memory_space<vmem>>, vector<8x8xf32>
    %cst_66 = arith.constant dense<0.000000e+00> : vector<8x32xf32>
    %169 = tpu.matmul %168, %167, %cst_66 {dimension_numbers = #tpu.dot_dimension_numbers<[1], [0], [0], [1], [0, 0, 1, 1], [], []>} : vector<8x8xf32>, vector<8x32xf32>, vector<8x32xf32> -> vector<8x32xf32>
    %170 = arith.truncf %167 : vector<8x32xf32> to vector<8x32xbf16>
    %c0_67 = arith.constant 0 : index
    %c0_68 = arith.constant 0 : index
    %171 = vector.load %arg18[%c0_67, %c0_68] : memref<32x256xbf16, #tpu.memory_space<vmem>>, vector<32x256xbf16>
    %cst_69 = arith.constant dense<0.000000e+00> : vector<8x256xf32>
    %172 = tpu.matmul %170, %171, %cst_69 {dimension_numbers = #tpu.dot_dimension_numbers<[1], [0], [0], [1], [0, 0, 1, 1], [], []>} : vector<8x32xbf16>, vector<32x256xbf16>, vector<8x256xf32> -> vector<8x256xf32>
    %173 = arith.truncf %169 : vector<8x32xf32> to vector<8x32xbf16>
    %c0_70 = arith.constant 0 : index
    %c0_71 = arith.constant 0 : index
    %174 = vector.load %arg19[%c0_70, %c0_71] : memref<32x256xbf16, #tpu.memory_space<vmem>>, vector<32x256xbf16>
    %cst_72 = arith.constant dense<0.000000e+00> : vector<8x256xf32>
    %175 = tpu.matmul %173, %174, %cst_72 {dimension_numbers = #tpu.dot_dimension_numbers<[1], [0], [0], [1], [0, 0, 1, 1], [], []>} : vector<8x32xbf16>, vector<32x256xbf16>, vector<8x256xf32> -> vector<8x256xf32>
    %176 = arith.addf %172, %175 : vector<8x256xf32>
    %c0_73 = arith.constant 0 : index
    %c0_74 = arith.constant 0 : index
    %177 = vector.load %arg20[%c0_73, %c0_74] : memref<1x256xf32, #tpu.memory_space<vmem>>, vector<1x256xf32>
    %178 = vector.broadcast %177 : vector<1x256xf32> to vector<8x256xf32>
    %179 = arith.addf %176, %178 : vector<8x256xf32>
    %c0_75 = arith.constant 0 : index
    %c0_76 = arith.constant 0 : index
    %180 = vector.load %arg21[%c0_75, %c0_76] : memref<64x256xf32, #tpu.memory_space<vmem>>, vector<64x256xf32>
    %cst_77 = arith.constant 0.000000e+00 : f32
    %181 = vector.broadcast %cst_77 : f32 to vector<1x64xf32>
    %cst_78 = arith.constant 0.000000e+00 : f32
    %182 = vector.broadcast %cst_78 : f32 to vector<1x64xf32>
    %183 = vector.extract_strided_slice %179 {offsets = [0, 0], sizes = [1, 256], strides = [1, 1]} : vector<8x256xf32> to vector<1x256xf32>
    %cst_79 = arith.constant dense<0.000000e+00> : vector<1x256xf32>
    %184 = tpu.matmul %181, %180, %cst_79 {dimension_numbers = #tpu.dot_dimension_numbers<[1], [0], [0], [1], [0, 0, 1, 1], [], []>} : vector<1x64xf32>, vector<64x256xf32>, vector<1x256xf32> -> vector<1x256xf32>
    %185 = arith.addf %183, %184 : vector<1x256xf32>
    %186 = vector.extract_strided_slice %185 {offsets = [0, 0], sizes = [1, 64], strides = [1, 1]} : vector<1x256xf32> to vector<1x64xf32>
    %187 = arith.negf %186 : vector<1x64xf32>
    %188 = math.exp %187 : vector<1x64xf32>
    %cst_80 = arith.constant 1.000000e+00 : f32
    %189 = vector.broadcast %cst_80 : f32 to vector<1x64xf32>
    %190 = arith.addf %189, %188 : vector<1x64xf32>
    %191 = arith.divf %189, %190 : vector<1x64xf32>
    %192 = vector.extract_strided_slice %185 {offsets = [0, 64], sizes = [1, 64], strides = [1, 1]} : vector<1x256xf32> to vector<1x64xf32>
    %193 = arith.negf %192 : vector<1x64xf32>
    %194 = math.exp %193 : vector<1x64xf32>
    %cst_81 = arith.constant 1.000000e+00 : f32
    %195 = vector.broadcast %cst_81 : f32 to vector<1x64xf32>
    %196 = arith.addf %195, %194 : vector<1x64xf32>
    %197 = arith.divf %195, %196 : vector<1x64xf32>
    %198 = vector.extract_strided_slice %185 {offsets = [0, 128], sizes = [1, 64], strides = [1, 1]} : vector<1x256xf32> to vector<1x64xf32>
    %199 = math.tanh %198 : vector<1x64xf32>
    %200 = vector.extract_strided_slice %185 {offsets = [0, 192], sizes = [1, 64], strides = [1, 1]} : vector<1x256xf32> to vector<1x64xf32>
    %201 = arith.negf %200 : vector<1x64xf32>
    %202 = math.exp %201 : vector<1x64xf32>
    %cst_82 = arith.constant 1.000000e+00 : f32
    %203 = vector.broadcast %cst_82 : f32 to vector<1x64xf32>
    %204 = arith.addf %203, %202 : vector<1x64xf32>
    %205 = arith.divf %203, %204 : vector<1x64xf32>
    %206 = arith.mulf %197, %182 : vector<1x64xf32>
    %207 = arith.mulf %191, %199 : vector<1x64xf32>
    %208 = arith.addf %206, %207 : vector<1x64xf32>
    %209 = math.tanh %208 : vector<1x64xf32>
    %210 = arith.mulf %205, %209 : vector<1x64xf32>
    %c0_83 = arith.constant 0 : index
    %c0_84 = arith.constant 0 : index
    %211 = vector.load %arg29[%c0_83, %c0_84] : memref<8x64xf32, #tpu.memory_space<vmem>>, vector<1x64xf32>
    tpu.vector_store %arg29[%c0_83, %c0_84], %210 {strides = array<i32>} : memref<8x64xf32, #tpu.memory_space<vmem>>, vector<1x64xf32>,
    %212 = vector.extract_strided_slice %179 {offsets = [1, 0], sizes = [1, 256], strides = [1, 1]} : vector<8x256xf32> to vector<1x256xf32>
    %cst_85 = arith.constant dense<0.000000e+00> : vector<1x256xf32>
    %213 = tpu.matmul %210, %180, %cst_85 {dimension_numbers = #tpu.dot_dimension_numbers<[1], [0], [0], [1], [0, 0, 1, 1], [], []>} : vector<1x64xf32>, vector<64x256xf32>, vector<1x256xf32> -> vector<1x256xf32>
    %214 = arith.addf %212, %213 : vector<1x256xf32>
    %215 = vector.extract_strided_slice %214 {offsets = [0, 0], sizes = [1, 64], strides = [1, 1]} : vector<1x256xf32> to vector<1x64xf32>
    %216 = arith.negf %215 : vector<1x64xf32>
    %217 = math.exp %216 : vector<1x64xf32>
    %cst_86 = arith.constant 1.000000e+00 : f32
    %218 = vector.broadcast %cst_86 : f32 to vector<1x64xf32>
    %219 = arith.addf %218, %217 : vector<1x64xf32>
    %220 = arith.divf %218, %219 : vector<1x64xf32>
    %221 = vector.extract_strided_slice %214 {offsets = [0, 64], sizes = [1, 64], strides = [1, 1]} : vector<1x256xf32> to vector<1x64xf32>
    %222 = arith.negf %221 : vector<1x64xf32>
    %223 = math.exp %222 : vector<1x64xf32>
    %cst_87 = arith.constant 1.000000e+00 : f32
    %224 = vector.broadcast %cst_87 : f32 to vector<1x64xf32>
    %225 = arith.addf %224, %223 : vector<1x64xf32>
    %226 = arith.divf %224, %225 : vector<1x64xf32>
    %227 = vector.extract_strided_slice %214 {offsets = [0, 128], sizes = [1, 64], strides = [1, 1]} : vector<1x256xf32> to vector<1x64xf32>
    %228 = math.tanh %227 : vector<1x64xf32>
    %229 = vector.extract_strided_slice %214 {offsets = [0, 192], sizes = [1, 64], strides = [1, 1]} : vector<1x256xf32> to vector<1x64xf32>
    %230 = arith.negf %229 : vector<1x64xf32>
    %231 = math.exp %230 : vector<1x64xf32>
    %cst_88 = arith.constant 1.000000e+00 : f32
    %232 = vector.broadcast %cst_88 : f32 to vector<1x64xf32>
    %233 = arith.addf %232, %231 : vector<1x64xf32>
    %234 = arith.divf %232, %233 : vector<1x64xf32>
    %235 = arith.mulf %226, %208 : vector<1x64xf32>
    %236 = arith.mulf %220, %228 : vector<1x64xf32>
    %237 = arith.addf %235, %236 : vector<1x64xf32>
    %238 = math.tanh %237 : vector<1x64xf32>
    %239 = arith.mulf %234, %238 : vector<1x64xf32>
    %c1 = arith.constant 1 : index
    %c0_89 = arith.constant 0 : index
    %240 = vector.load %arg29[%c1, %c0_89] : memref<8x64xf32, #tpu.memory_space<vmem>>, vector<1x64xf32>
    tpu.vector_store %arg29[%c1, %c0_89], %239 {strides = array<i32>} : memref<8x64xf32, #tpu.memory_space<vmem>>, vector<1x64xf32>,
    %241 = vector.extract_strided_slice %179 {offsets = [2, 0], sizes = [1, 256], strides = [1, 1]} : vector<8x256xf32> to vector<1x256xf32>
    %cst_90 = arith.constant dense<0.000000e+00> : vector<1x256xf32>
    %242 = tpu.matmul %239, %180, %cst_90 {dimension_numbers = #tpu.dot_dimension_numbers<[1], [0], [0], [1], [0, 0, 1, 1], [], []>} : vector<1x64xf32>, vector<64x256xf32>, vector<1x256xf32> -> vector<1x256xf32>
    %243 = arith.addf %241, %242 : vector<1x256xf32>
    %244 = vector.extract_strided_slice %243 {offsets = [0, 0], sizes = [1, 64], strides = [1, 1]} : vector<1x256xf32> to vector<1x64xf32>
    %245 = arith.negf %244 : vector<1x64xf32>
    %246 = math.exp %245 : vector<1x64xf32>
    %cst_91 = arith.constant 1.000000e+00 : f32
    %247 = vector.broadcast %cst_91 : f32 to vector<1x64xf32>
    %248 = arith.addf %247, %246 : vector<1x64xf32>
    %249 = arith.divf %247, %248 : vector<1x64xf32>
    %250 = vector.extract_strided_slice %243 {offsets = [0, 64], sizes = [1, 64], strides = [1, 1]} : vector<1x256xf32> to vector<1x64xf32>
    %251 = arith.negf %250 : vector<1x64xf32>
    %252 = math.exp %251 : vector<1x64xf32>
    %cst_92 = arith.constant 1.000000e+00 : f32
    %253 = vector.broadcast %cst_92 : f32 to vector<1x64xf32>
    %254 = arith.addf %253, %252 : vector<1x64xf32>
    %255 = arith.divf %253, %254 : vector<1x64xf32>
    %256 = vector.extract_strided_slice %243 {offsets = [0, 128], sizes = [1, 64], strides = [1, 1]} : vector<1x256xf32> to vector<1x64xf32>
    %257 = math.tanh %256 : vector<1x64xf32>
    %258 = vector.extract_strided_slice %243 {offsets = [0, 192], sizes = [1, 64], strides = [1, 1]} : vector<1x256xf32> to vector<1x64xf32>
    %259 = arith.negf %258 : vector<1x64xf32>
    %260 = math.exp %259 : vector<1x64xf32>
    %cst_93 = arith.constant 1.000000e+00 : f32
    %261 = vector.broadcast %cst_93 : f32 to vector<1x64xf32>
    %262 = arith.addf %261, %260 : vector<1x64xf32>
    %263 = arith.divf %261, %262 : vector<1x64xf32>
    %264 = arith.mulf %255, %237 : vector<1x64xf32>
    %265 = arith.mulf %249, %257 : vector<1x64xf32>
    %266 = arith.addf %264, %265 : vector<1x64xf32>
    %267 = math.tanh %266 : vector<1x64xf32>
    %268 = arith.mulf %263, %267 : vector<1x64xf32>
    %c2 = arith.constant 2 : index
    %c0_94 = arith.constant 0 : index
    %269 = vector.load %arg29[%c2, %c0_94] : memref<8x64xf32, #tpu.memory_space<vmem>>, vector<1x64xf32>
    tpu.vector_store %arg29[%c2, %c0_94], %268 {strides = array<i32>} : memref<8x64xf32, #tpu.memory_space<vmem>>, vector<1x64xf32>,
    %270 = vector.extract_strided_slice %179 {offsets = [3, 0], sizes = [1, 256], strides = [1, 1]} : vector<8x256xf32> to vector<1x256xf32>
    %cst_95 = arith.constant dense<0.000000e+00> : vector<1x256xf32>
    %271 = tpu.matmul %268, %180, %cst_95 {dimension_numbers = #tpu.dot_dimension_numbers<[1], [0], [0], [1], [0, 0, 1, 1], [], []>} : vector<1x64xf32>, vector<64x256xf32>, vector<1x256xf32> -> vector<1x256xf32>
    %272 = arith.addf %270, %271 : vector<1x256xf32>
    %273 = vector.extract_strided_slice %272 {offsets = [0, 0], sizes = [1, 64], strides = [1, 1]} : vector<1x256xf32> to vector<1x64xf32>
    %274 = arith.negf %273 : vector<1x64xf32>
    %275 = math.exp %274 : vector<1x64xf32>
    %cst_96 = arith.constant 1.000000e+00 : f32
    %276 = vector.broadcast %cst_96 : f32 to vector<1x64xf32>
    %277 = arith.addf %276, %275 : vector<1x64xf32>
    %278 = arith.divf %276, %277 : vector<1x64xf32>
    %279 = vector.extract_strided_slice %272 {offsets = [0, 64], sizes = [1, 64], strides = [1, 1]} : vector<1x256xf32> to vector<1x64xf32>
    %280 = arith.negf %279 : vector<1x64xf32>
    %281 = math.exp %280 : vector<1x64xf32>
    %cst_97 = arith.constant 1.000000e+00 : f32
    %282 = vector.broadcast %cst_97 : f32 to vector<1x64xf32>
    %283 = arith.addf %282, %281 : vector<1x64xf32>
    %284 = arith.divf %282, %283 : vector<1x64xf32>
    %285 = vector.extract_strided_slice %272 {offsets = [0, 128], sizes = [1, 64], strides = [1, 1]} : vector<1x256xf32> to vector<1x64xf32>
    %286 = math.tanh %285 : vector<1x64xf32>
    %287 = vector.extract_strided_slice %272 {offsets = [0, 192], sizes = [1, 64], strides = [1, 1]} : vector<1x256xf32> to vector<1x64xf32>
    %288 = arith.negf %287 : vector<1x64xf32>
    %289 = math.exp %288 : vector<1x64xf32>
    %cst_98 = arith.constant 1.000000e+00 : f32
    %290 = vector.broadcast %cst_98 : f32 to vector<1x64xf32>
    %291 = arith.addf %290, %289 : vector<1x64xf32>
    %292 = arith.divf %290, %291 : vector<1x64xf32>
    %293 = arith.mulf %284, %266 : vector<1x64xf32>
    %294 = arith.mulf %278, %286 : vector<1x64xf32>
    %295 = arith.addf %293, %294 : vector<1x64xf32>
    %296 = math.tanh %295 : vector<1x64xf32>
    %297 = arith.mulf %292, %296 : vector<1x64xf32>
    %c3 = arith.constant 3 : index
    %c0_99 = arith.constant 0 : index
    %298 = vector.load %arg29[%c3, %c0_99] : memref<8x64xf32, #tpu.memory_space<vmem>>, vector<1x64xf32>
    tpu.vector_store %arg29[%c3, %c0_99], %297 {strides = array<i32>} : memref<8x64xf32, #tpu.memory_space<vmem>>, vector<1x64xf32>,
    %299 = vector.extract_strided_slice %179 {offsets = [4, 0], sizes = [1, 256], strides = [1, 1]} : vector<8x256xf32> to vector<1x256xf32>
    %cst_100 = arith.constant dense<0.000000e+00> : vector<1x256xf32>
    %300 = tpu.matmul %297, %180, %cst_100 {dimension_numbers = #tpu.dot_dimension_numbers<[1], [0], [0], [1], [0, 0, 1, 1], [], []>} : vector<1x64xf32>, vector<64x256xf32>, vector<1x256xf32> -> vector<1x256xf32>
    %301 = arith.addf %299, %300 : vector<1x256xf32>
    %302 = vector.extract_strided_slice %301 {offsets = [0, 0], sizes = [1, 64], strides = [1, 1]} : vector<1x256xf32> to vector<1x64xf32>
    %303 = arith.negf %302 : vector<1x64xf32>
    %304 = math.exp %303 : vector<1x64xf32>
    %cst_101 = arith.constant 1.000000e+00 : f32
    %305 = vector.broadcast %cst_101 : f32 to vector<1x64xf32>
    %306 = arith.addf %305, %304 : vector<1x64xf32>
    %307 = arith.divf %305, %306 : vector<1x64xf32>
    %308 = vector.extract_strided_slice %301 {offsets = [0, 64], sizes = [1, 64], strides = [1, 1]} : vector<1x256xf32> to vector<1x64xf32>
    %309 = arith.negf %308 : vector<1x64xf32>
    %310 = math.exp %309 : vector<1x64xf32>
    %cst_102 = arith.constant 1.000000e+00 : f32
    %311 = vector.broadcast %cst_102 : f32 to vector<1x64xf32>
    %312 = arith.addf %311, %310 : vector<1x64xf32>
    %313 = arith.divf %311, %312 : vector<1x64xf32>
    %314 = vector.extract_strided_slice %301 {offsets = [0, 128], sizes = [1, 64], strides = [1, 1]} : vector<1x256xf32> to vector<1x64xf32>
    %315 = math.tanh %314 : vector<1x64xf32>
    %316 = vector.extract_strided_slice %301 {offsets = [0, 192], sizes = [1, 64], strides = [1, 1]} : vector<1x256xf32> to vector<1x64xf32>
    %317 = arith.negf %316 : vector<1x64xf32>
    %318 = math.exp %317 : vector<1x64xf32>
    %cst_103 = arith.constant 1.000000e+00 : f32
    %319 = vector.broadcast %cst_103 : f32 to vector<1x64xf32>
    %320 = arith.addf %319, %318 : vector<1x64xf32>
    %321 = arith.divf %319, %320 : vector<1x64xf32>
    %322 = arith.mulf %313, %295 : vector<1x64xf32>
    %323 = arith.mulf %307, %315 : vector<1x64xf32>
    %324 = arith.addf %322, %323 : vector<1x64xf32>
    %325 = math.tanh %324 : vector<1x64xf32>
    %326 = arith.mulf %321, %325 : vector<1x64xf32>
    %c4 = arith.constant 4 : index
    %c0_104 = arith.constant 0 : index
    %327 = vector.load %arg29[%c4, %c0_104] : memref<8x64xf32, #tpu.memory_space<vmem>>, vector<1x64xf32>
    tpu.vector_store %arg29[%c4, %c0_104], %326 {strides = array<i32>} : memref<8x64xf32, #tpu.memory_space<vmem>>, vector<1x64xf32>,
    %328 = vector.extract_strided_slice %179 {offsets = [5, 0], sizes = [1, 256], strides = [1, 1]} : vector<8x256xf32> to vector<1x256xf32>
    %cst_105 = arith.constant dense<0.000000e+00> : vector<1x256xf32>
    %329 = tpu.matmul %326, %180, %cst_105 {dimension_numbers = #tpu.dot_dimension_numbers<[1], [0], [0], [1], [0, 0, 1, 1], [], []>} : vector<1x64xf32>, vector<64x256xf32>, vector<1x256xf32> -> vector<1x256xf32>
    %330 = arith.addf %328, %329 : vector<1x256xf32>
    %331 = vector.extract_strided_slice %330 {offsets = [0, 0], sizes = [1, 64], strides = [1, 1]} : vector<1x256xf32> to vector<1x64xf32>
    %332 = arith.negf %331 : vector<1x64xf32>
    %333 = math.exp %332 : vector<1x64xf32>
    %cst_106 = arith.constant 1.000000e+00 : f32
    %334 = vector.broadcast %cst_106 : f32 to vector<1x64xf32>
    %335 = arith.addf %334, %333 : vector<1x64xf32>
    %336 = arith.divf %334, %335 : vector<1x64xf32>
    %337 = vector.extract_strided_slice %330 {offsets = [0, 64], sizes = [1, 64], strides = [1, 1]} : vector<1x256xf32> to vector<1x64xf32>
    %338 = arith.negf %337 : vector<1x64xf32>
    %339 = math.exp %338 : vector<1x64xf32>
    %cst_107 = arith.constant 1.000000e+00 : f32
    %340 = vector.broadcast %cst_107 : f32 to vector<1x64xf32>
    %341 = arith.addf %340, %339 : vector<1x64xf32>
    %342 = arith.divf %340, %341 : vector<1x64xf32>
    %343 = vector.extract_strided_slice %330 {offsets = [0, 128], sizes = [1, 64], strides = [1, 1]} : vector<1x256xf32> to vector<1x64xf32>
    %344 = math.tanh %343 : vector<1x64xf32>
    %345 = vector.extract_strided_slice %330 {offsets = [0, 192], sizes = [1, 64], strides = [1, 1]} : vector<1x256xf32> to vector<1x64xf32>
    %346 = arith.negf %345 : vector<1x64xf32>
    %347 = math.exp %346 : vector<1x64xf32>
    %cst_108 = arith.constant 1.000000e+00 : f32
    %348 = vector.broadcast %cst_108 : f32 to vector<1x64xf32>
    %349 = arith.addf %348, %347 : vector<1x64xf32>
    %350 = arith.divf %348, %349 : vector<1x64xf32>
    %351 = arith.mulf %342, %324 : vector<1x64xf32>
    %352 = arith.mulf %336, %344 : vector<1x64xf32>
    %353 = arith.addf %351, %352 : vector<1x64xf32>
    %354 = math.tanh %353 : vector<1x64xf32>
    %355 = arith.mulf %350, %354 : vector<1x64xf32>
    %c5 = arith.constant 5 : index
    %c0_109 = arith.constant 0 : index
    %356 = vector.load %arg29[%c5, %c0_109] : memref<8x64xf32, #tpu.memory_space<vmem>>, vector<1x64xf32>
    tpu.vector_store %arg29[%c5, %c0_109], %355 {strides = array<i32>} : memref<8x64xf32, #tpu.memory_space<vmem>>, vector<1x64xf32>,
    %357 = vector.extract_strided_slice %179 {offsets = [6, 0], sizes = [1, 256], strides = [1, 1]} : vector<8x256xf32> to vector<1x256xf32>
    %cst_110 = arith.constant dense<0.000000e+00> : vector<1x256xf32>
    %358 = tpu.matmul %355, %180, %cst_110 {dimension_numbers = #tpu.dot_dimension_numbers<[1], [0], [0], [1], [0, 0, 1, 1], [], []>} : vector<1x64xf32>, vector<64x256xf32>, vector<1x256xf32> -> vector<1x256xf32>
    %359 = arith.addf %357, %358 : vector<1x256xf32>
    %360 = vector.extract_strided_slice %359 {offsets = [0, 0], sizes = [1, 64], strides = [1, 1]} : vector<1x256xf32> to vector<1x64xf32>
    %361 = arith.negf %360 : vector<1x64xf32>
    %362 = math.exp %361 : vector<1x64xf32>
    %cst_111 = arith.constant 1.000000e+00 : f32
    %363 = vector.broadcast %cst_111 : f32 to vector<1x64xf32>
    %364 = arith.addf %363, %362 : vector<1x64xf32>
    %365 = arith.divf %363, %364 : vector<1x64xf32>
    %366 = vector.extract_strided_slice %359 {offsets = [0, 64], sizes = [1, 64], strides = [1, 1]} : vector<1x256xf32> to vector<1x64xf32>
    %367 = arith.negf %366 : vector<1x64xf32>
    %368 = math.exp %367 : vector<1x64xf32>
    %cst_112 = arith.constant 1.000000e+00 : f32
    %369 = vector.broadcast %cst_112 : f32 to vector<1x64xf32>
    %370 = arith.addf %369, %368 : vector<1x64xf32>
    %371 = arith.divf %369, %370 : vector<1x64xf32>
    %372 = vector.extract_strided_slice %359 {offsets = [0, 128], sizes = [1, 64], strides = [1, 1]} : vector<1x256xf32> to vector<1x64xf32>
    %373 = math.tanh %372 : vector<1x64xf32>
    %374 = vector.extract_strided_slice %359 {offsets = [0, 192], sizes = [1, 64], strides = [1, 1]} : vector<1x256xf32> to vector<1x64xf32>
    %375 = arith.negf %374 : vector<1x64xf32>
    %376 = math.exp %375 : vector<1x64xf32>
    %cst_113 = arith.constant 1.000000e+00 : f32
    %377 = vector.broadcast %cst_113 : f32 to vector<1x64xf32>
    %378 = arith.addf %377, %376 : vector<1x64xf32>
    %379 = arith.divf %377, %378 : vector<1x64xf32>
    %380 = arith.mulf %371, %353 : vector<1x64xf32>
    %381 = arith.mulf %365, %373 : vector<1x64xf32>
    %382 = arith.addf %380, %381 : vector<1x64xf32>
    %383 = math.tanh %382 : vector<1x64xf32>
    %384 = arith.mulf %379, %383 : vector<1x64xf32>
    %c6 = arith.constant 6 : index
    %c0_114 = arith.constant 0 : index
    %385 = vector.load %arg29[%c6, %c0_114] : memref<8x64xf32, #tpu.memory_space<vmem>>, vector<1x64xf32>
    tpu.vector_store %arg29[%c6, %c0_114], %384 {strides = array<i32>} : memref<8x64xf32, #tpu.memory_space<vmem>>, vector<1x64xf32>,
    %386 = vector.extract_strided_slice %179 {offsets = [7, 0], sizes = [1, 256], strides = [1, 1]} : vector<8x256xf32> to vector<1x256xf32>
    %cst_115 = arith.constant dense<0.000000e+00> : vector<1x256xf32>
    %387 = tpu.matmul %384, %180, %cst_115 {dimension_numbers = #tpu.dot_dimension_numbers<[1], [0], [0], [1], [0, 0, 1, 1], [], []>} : vector<1x64xf32>, vector<64x256xf32>, vector<1x256xf32> -> vector<1x256xf32>
    %388 = arith.addf %386, %387 : vector<1x256xf32>
    %389 = vector.extract_strided_slice %388 {offsets = [0, 0], sizes = [1, 64], strides = [1, 1]} : vector<1x256xf32> to vector<1x64xf32>
    %390 = arith.negf %389 : vector<1x64xf32>
    %391 = math.exp %390 : vector<1x64xf32>
    %cst_116 = arith.constant 1.000000e+00 : f32
    %392 = vector.broadcast %cst_116 : f32 to vector<1x64xf32>
    %393 = arith.addf %392, %391 : vector<1x64xf32>
    %394 = arith.divf %392, %393 : vector<1x64xf32>
    %395 = vector.extract_strided_slice %388 {offsets = [0, 64], sizes = [1, 64], strides = [1, 1]} : vector<1x256xf32> to vector<1x64xf32>
    %396 = arith.negf %395 : vector<1x64xf32>
    %397 = math.exp %396 : vector<1x64xf32>
    %cst_117 = arith.constant 1.000000e+00 : f32
    %398 = vector.broadcast %cst_117 : f32 to vector<1x64xf32>
    %399 = arith.addf %398, %397 : vector<1x64xf32>
    %400 = arith.divf %398, %399 : vector<1x64xf32>
    %401 = vector.extract_strided_slice %388 {offsets = [0, 128], sizes = [1, 64], strides = [1, 1]} : vector<1x256xf32> to vector<1x64xf32>
    %402 = math.tanh %401 : vector<1x64xf32>
    %403 = vector.extract_strided_slice %388 {offsets = [0, 192], sizes = [1, 64], strides = [1, 1]} : vector<1x256xf32> to vector<1x64xf32>
    %404 = arith.negf %403 : vector<1x64xf32>
    %405 = math.exp %404 : vector<1x64xf32>
    %cst_118 = arith.constant 1.000000e+00 : f32
    %406 = vector.broadcast %cst_118 : f32 to vector<1x64xf32>
    %407 = arith.addf %406, %405 : vector<1x64xf32>
    %408 = arith.divf %406, %407 : vector<1x64xf32>
    %409 = arith.mulf %400, %382 : vector<1x64xf32>
    %410 = arith.mulf %394, %402 : vector<1x64xf32>
    %411 = arith.addf %409, %410 : vector<1x64xf32>
    %412 = math.tanh %411 : vector<1x64xf32>
    %413 = arith.mulf %408, %412 : vector<1x64xf32>
    %c7 = arith.constant 7 : index
    %c0_119 = arith.constant 0 : index
    %414 = vector.load %arg29[%c7, %c0_119] : memref<8x64xf32, #tpu.memory_space<vmem>>, vector<1x64xf32>
    tpu.vector_store %arg29[%c7, %c0_119], %413 {strides = array<i32>} : memref<8x64xf32, #tpu.memory_space<vmem>>, vector<1x64xf32>,
    %c0_120 = arith.constant 0 : index
    %c0_121 = arith.constant 0 : index
    %415 = vector.load %arg29[%c0_120, %c0_121] : memref<8x64xf32, #tpu.memory_space<vmem>>, vector<8x64xf32>
    %416 = vector.extract_strided_slice %415 {offsets = [0, 0], sizes = [8, 32], strides = [1, 1]} : vector<8x64xf32> to vector<8x32xf32>
    %417 = arith.truncf %416 : vector<8x32xf32> to vector<8x32xbf16>
    %c0_122 = arith.constant 0 : index
    %c0_123 = arith.constant 0 : index
    %418 = vector.load %arg22[%c0_122, %c0_123] : memref<32x8xbf16, #tpu.memory_space<vmem>>, vector<32x8xbf16>
    %cst_124 = arith.constant dense<0.000000e+00> : vector<8x8xf32>
    %419 = tpu.matmul %417, %418, %cst_124 {dimension_numbers = #tpu.dot_dimension_numbers<[1], [0], [0], [1], [0, 0, 1, 1], [], []>} : vector<8x32xbf16>, vector<32x8xbf16>, vector<8x8xf32> -> vector<8x8xf32>
    %420 = vector.extract_strided_slice %415 {offsets = [0, 32], sizes = [8, 32], strides = [1, 1]} : vector<8x64xf32> to vector<8x32xf32>
    %421 = arith.truncf %420 : vector<8x32xf32> to vector<8x32xbf16>
    %c0_125 = arith.constant 0 : index
    %c0_126 = arith.constant 0 : index
    %422 = vector.load %arg23[%c0_125, %c0_126] : memref<32x8xbf16, #tpu.memory_space<vmem>>, vector<32x8xbf16>
    %cst_127 = arith.constant dense<0.000000e+00> : vector<8x8xf32>
    %423 = tpu.matmul %421, %422, %cst_127 {dimension_numbers = #tpu.dot_dimension_numbers<[1], [0], [0], [1], [0, 0, 1, 1], [], []>} : vector<8x32xbf16>, vector<32x8xbf16>, vector<8x8xf32> -> vector<8x8xf32>
    %cst_128 = arith.constant dense<0.000000e+00> : vector<8x8xf32>
    %424 = tpu.matmul %168, %423, %cst_128 {dimension_numbers = #tpu.dot_dimension_numbers<[1], [0], [0], [1], [0, 0, 1, 1], [], []>} : vector<8x8xf32>, vector<8x8xf32>, vector<8x8xf32> -> vector<8x8xf32>
    %425 = arith.addf %419, %424 : vector<8x8xf32>
    %c0_129 = arith.constant 0 : index
    %c0_130 = arith.constant 0 : index
    %426 = vector.load %arg24[%c0_129, %c0_130] : memref<1x8xf32, #tpu.memory_space<vmem>>, vector<1x8xf32>
    %427 = vector.broadcast %426 : vector<1x8xf32> to vector<8x8xf32>
    %428 = arith.addf %425, %427 : vector<8x8xf32>
    %c0_131 = arith.constant 0 : index
    %c0_132 = arith.constant 0 : index
    %429 = vector.load %arg27[%c0_131, %c0_132] : memref<8x8xf32, #tpu.memory_space<vmem>>, vector<8x8xf32>
    %430 = tpu.iota {dimensions = array<i32: 1>} : vector<1x8x8xi32>
    %431 = tpu.iota {dimensions = array<i32: 1>} : vector<1x8xi32>
    %432 = tpu.iota {dimensions = array<i32: 1>} : vector<1x8xi32>
    %c0_133 = arith.constant 0 : index
    %c0_134 = arith.constant 0 : index
    %433 = vector.load %arg25[%c0_133, %c0_134] : memref<1x8xf32, #tpu.memory_space<vmem>>, vector<1x8xf32>
    %434 = vector.extract_strided_slice %428 {offsets = [0, 0], sizes = [1, 8], strides = [1, 1]} : vector<8x8xf32> to vector<1x8xf32>
    %435 = arith.addf %433, %434 : vector<1x8xf32>
    %436 = vector.shape_cast %435 : vector<1x8xf32> to vector<1x8x1xf32>
    %437 = vector.shape_cast %429 : vector<8x8xf32> to vector<1x8x8xf32>
    %438 = vector.broadcast %436 : vector<1x8x1xf32> to vector<1x8x8xf32>
    %439 = arith.addf %438, %437 : vector<1x8x8xf32>
    %440 = vector.extract_strided_slice %428 {offsets = [1, 0], sizes = [1, 8], strides = [1, 1]} : vector<8x8xf32> to vector<1x8xf32>
    %441 = vector.shape_cast %440 : vector<1x8xf32> to vector<1x1x8xf32>
    %442 = vector.broadcast %441 : vector<1x1x8xf32> to vector<1x8x8xf32>
    %443 = arith.addf %439, %442 : vector<1x8x8xf32>
    %cst_135 = arith.constant dense<0xFF800000> : vector<1x8xf32>
    %444 = vector.multi_reduction <maximumf>, %443, %cst_135 [1] : vector<1x8x8xf32> to vector<1x8xf32>
    %445 = vector.shape_cast %444 : vector<1x8xf32> to vector<1x1x8xf32>
    %446 = vector.broadcast %445 : vector<1x1x8xf32> to vector<1x8x8xf32>
    %447 = arith.cmpf oge, %443, %446 : vector<1x8x8xf32>
    %c8_i32 = arith.constant 8 : i32
    %448 = vector.broadcast %c8_i32 : i32 to vector<1x8x8xi32>
    %449 = arith.select %447, %430, %448 : vector<1x8x8xi1>, vector<1x8x8xi32>
    %cst_136 = arith.constant dense<2147483647> : vector<1x8xi32>
    %450 = vector.multi_reduction <minsi>, %449, %cst_136 [1] : vector<1x8x8xi32> to vector<1x8xi32>
    %c1_137 = arith.constant 1 : index
    %c0_138 = arith.constant 0 : index
    %451 = vector.load %arg30[%c1_137, %c0_138] : memref<8x8xi32, #tpu.memory_space<vmem>>, vector<1x8xi32>
    tpu.vector_store %arg30[%c1_137, %c0_138], %450 {strides = array<i32>} : memref<8x8xi32, #tpu.memory_space<vmem>>, vector<1x8xi32>,
    %452 = vector.extract_strided_slice %3 {offsets = [0, 1], sizes = [1, 1], strides = [1, 1]} : vector<1x8xf32> to vector<1x1xf32>
    %cst_139 = arith.constant 0.000000e+00 : f32
    %453 = vector.broadcast %cst_139 : f32 to vector<1x1xf32>
    %454 = arith.cmpf ogt, %452, %453 : vector<1x1xf32>
    %455 = vector.shape_cast %454 : vector<1x1xi1> to vector<1x1xi1>
    %456 = vector.broadcast %455 : vector<1x1xi1> to vector<1x8xi1>
    %457 = arith.select %456, %444, %435 : vector<1x8xi1>, vector<1x8xf32>
    %458 = vector.shape_cast %457 : vector<1x8xf32> to vector<1x8x1xf32>
    %459 = vector.shape_cast %429 : vector<8x8xf32> to vector<1x8x8xf32>
    %460 = vector.broadcast %458 : vector<1x8x1xf32> to vector<1x8x8xf32>
    %461 = arith.addf %460, %459 : vector<1x8x8xf32>
    %462 = vector.extract_strided_slice %428 {offsets = [2, 0], sizes = [1, 8], strides = [1, 1]} : vector<8x8xf32> to vector<1x8xf32>
    %463 = vector.shape_cast %462 : vector<1x8xf32> to vector<1x1x8xf32>
    %464 = vector.broadcast %463 : vector<1x1x8xf32> to vector<1x8x8xf32>
    %465 = arith.addf %461, %464 : vector<1x8x8xf32>
    %cst_140 = arith.constant dense<0xFF800000> : vector<1x8xf32>
    %466 = vector.multi_reduction <maximumf>, %465, %cst_140 [1] : vector<1x8x8xf32> to vector<1x8xf32>
    %467 = vector.shape_cast %466 : vector<1x8xf32> to vector<1x1x8xf32>
    %468 = vector.broadcast %467 : vector<1x1x8xf32> to vector<1x8x8xf32>
    %469 = arith.cmpf oge, %465, %468 : vector<1x8x8xf32>
    %c8_i32_141 = arith.constant 8 : i32
    %470 = vector.broadcast %c8_i32_141 : i32 to vector<1x8x8xi32>
    %471 = arith.select %469, %430, %470 : vector<1x8x8xi1>, vector<1x8x8xi32>
    %cst_142 = arith.constant dense<2147483647> : vector<1x8xi32>
    %472 = vector.multi_reduction <minsi>, %471, %cst_142 [1] : vector<1x8x8xi32> to vector<1x8xi32>
    %c2_143 = arith.constant 2 : index
    %c0_144 = arith.constant 0 : index
    %473 = vector.load %arg30[%c2_143, %c0_144] : memref<8x8xi32, #tpu.memory_space<vmem>>, vector<1x8xi32>
    tpu.vector_store %arg30[%c2_143, %c0_144], %472 {strides = array<i32>} : memref<8x8xi32, #tpu.memory_space<vmem>>, vector<1x8xi32>,
    %474 = vector.extract_strided_slice %3 {offsets = [0, 2], sizes = [1, 1], strides = [1, 1]} : vector<1x8xf32> to vector<1x1xf32>
    %cst_145 = arith.constant 0.000000e+00 : f32
    %475 = vector.broadcast %cst_145 : f32 to vector<1x1xf32>
    %476 = arith.cmpf ogt, %474, %475 : vector<1x1xf32>
    %477 = vector.shape_cast %476 : vector<1x1xi1> to vector<1x1xi1>
    %478 = vector.broadcast %477 : vector<1x1xi1> to vector<1x8xi1>
    %479 = arith.select %478, %466, %457 : vector<1x8xi1>, vector<1x8xf32>
    %480 = vector.shape_cast %479 : vector<1x8xf32> to vector<1x8x1xf32>
    %481 = vector.shape_cast %429 : vector<8x8xf32> to vector<1x8x8xf32>
    %482 = vector.broadcast %480 : vector<1x8x1xf32> to vector<1x8x8xf32>
    %483 = arith.addf %482, %481 : vector<1x8x8xf32>
    %484 = vector.extract_strided_slice %428 {offsets = [3, 0], sizes = [1, 8], strides = [1, 1]} : vector<8x8xf32> to vector<1x8xf32>
    %485 = vector.shape_cast %484 : vector<1x8xf32> to vector<1x1x8xf32>
    %486 = vector.broadcast %485 : vector<1x1x8xf32> to vector<1x8x8xf32>
    %487 = arith.addf %483, %486 : vector<1x8x8xf32>
    %cst_146 = arith.constant dense<0xFF800000> : vector<1x8xf32>
    %488 = vector.multi_reduction <maximumf>, %487, %cst_146 [1] : vector<1x8x8xf32> to vector<1x8xf32>
    %489 = vector.shape_cast %488 : vector<1x8xf32> to vector<1x1x8xf32>
    %490 = vector.broadcast %489 : vector<1x1x8xf32> to vector<1x8x8xf32>
    %491 = arith.cmpf oge, %487, %490 : vector<1x8x8xf32>
    %c8_i32_147 = arith.constant 8 : i32
    %492 = vector.broadcast %c8_i32_147 : i32 to vector<1x8x8xi32>
    %493 = arith.select %491, %430, %492 : vector<1x8x8xi1>, vector<1x8x8xi32>
    %cst_148 = arith.constant dense<2147483647> : vector<1x8xi32>
    %494 = vector.multi_reduction <minsi>, %493, %cst_148 [1] : vector<1x8x8xi32> to vector<1x8xi32>
    %c3_149 = arith.constant 3 : index
    %c0_150 = arith.constant 0 : index
    %495 = vector.load %arg30[%c3_149, %c0_150] : memref<8x8xi32, #tpu.memory_space<vmem>>, vector<1x8xi32>
    tpu.vector_store %arg30[%c3_149, %c0_150], %494 {strides = array<i32>} : memref<8x8xi32, #tpu.memory_space<vmem>>, vector<1x8xi32>,
    %496 = vector.extract_strided_slice %3 {offsets = [0, 3], sizes = [1, 1], strides = [1, 1]} : vector<1x8xf32> to vector<1x1xf32>
    %cst_151 = arith.constant 0.000000e+00 : f32
    %497 = vector.broadcast %cst_151 : f32 to vector<1x1xf32>
    %498 = arith.cmpf ogt, %496, %497 : vector<1x1xf32>
    %499 = vector.shape_cast %498 : vector<1x1xi1> to vector<1x1xi1>
    %500 = vector.broadcast %499 : vector<1x1xi1> to vector<1x8xi1>
    %501 = arith.select %500, %488, %479 : vector<1x8xi1>, vector<1x8xf32>
    %502 = vector.shape_cast %501 : vector<1x8xf32> to vector<1x8x1xf32>
    %503 = vector.shape_cast %429 : vector<8x8xf32> to vector<1x8x8xf32>
    %504 = vector.broadcast %502 : vector<1x8x1xf32> to vector<1x8x8xf32>
    %505 = arith.addf %504, %503 : vector<1x8x8xf32>
    %506 = vector.extract_strided_slice %428 {offsets = [4, 0], sizes = [1, 8], strides = [1, 1]} : vector<8x8xf32> to vector<1x8xf32>
    %507 = vector.shape_cast %506 : vector<1x8xf32> to vector<1x1x8xf32>
    %508 = vector.broadcast %507 : vector<1x1x8xf32> to vector<1x8x8xf32>
    %509 = arith.addf %505, %508 : vector<1x8x8xf32>
    %cst_152 = arith.constant dense<0xFF800000> : vector<1x8xf32>
    %510 = vector.multi_reduction <maximumf>, %509, %cst_152 [1] : vector<1x8x8xf32> to vector<1x8xf32>
    %511 = vector.shape_cast %510 : vector<1x8xf32> to vector<1x1x8xf32>
    %512 = vector.broadcast %511 : vector<1x1x8xf32> to vector<1x8x8xf32>
    %513 = arith.cmpf oge, %509, %512 : vector<1x8x8xf32>
    %c8_i32_153 = arith.constant 8 : i32
    %514 = vector.broadcast %c8_i32_153 : i32 to vector<1x8x8xi32>
    %515 = arith.select %513, %430, %514 : vector<1x8x8xi1>, vector<1x8x8xi32>
    %cst_154 = arith.constant dense<2147483647> : vector<1x8xi32>
    %516 = vector.multi_reduction <minsi>, %515, %cst_154 [1] : vector<1x8x8xi32> to vector<1x8xi32>
    %c4_155 = arith.constant 4 : index
    %c0_156 = arith.constant 0 : index
    %517 = vector.load %arg30[%c4_155, %c0_156] : memref<8x8xi32, #tpu.memory_space<vmem>>, vector<1x8xi32>
    tpu.vector_store %arg30[%c4_155, %c0_156], %516 {strides = array<i32>} : memref<8x8xi32, #tpu.memory_space<vmem>>, vector<1x8xi32>,
    %518 = vector.extract_strided_slice %3 {offsets = [0, 4], sizes = [1, 1], strides = [1, 1]} : vector<1x8xf32> to vector<1x1xf32>
    %cst_157 = arith.constant 0.000000e+00 : f32
    %519 = vector.broadcast %cst_157 : f32 to vector<1x1xf32>
    %520 = arith.cmpf ogt, %518, %519 : vector<1x1xf32>
    %521 = vector.shape_cast %520 : vector<1x1xi1> to vector<1x1xi1>
    %522 = vector.broadcast %521 : vector<1x1xi1> to vector<1x8xi1>
    %523 = arith.select %522, %510, %501 : vector<1x8xi1>, vector<1x8xf32>
    %524 = vector.shape_cast %523 : vector<1x8xf32> to vector<1x8x1xf32>
    %525 = vector.shape_cast %429 : vector<8x8xf32> to vector<1x8x8xf32>
    %526 = vector.broadcast %524 : vector<1x8x1xf32> to vector<1x8x8xf32>
    %527 = arith.addf %526, %525 : vector<1x8x8xf32>
    %528 = vector.extract_strided_slice %428 {offsets = [5, 0], sizes = [1, 8], strides = [1, 1]} : vector<8x8xf32> to vector<1x8xf32>
    %529 = vector.shape_cast %528 : vector<1x8xf32> to vector<1x1x8xf32>
    %530 = vector.broadcast %529 : vector<1x1x8xf32> to vector<1x8x8xf32>
    %531 = arith.addf %527, %530 : vector<1x8x8xf32>
    %cst_158 = arith.constant dense<0xFF800000> : vector<1x8xf32>
    %532 = vector.multi_reduction <maximumf>, %531, %cst_158 [1] : vector<1x8x8xf32> to vector<1x8xf32>
    %533 = vector.shape_cast %532 : vector<1x8xf32> to vector<1x1x8xf32>
    %534 = vector.broadcast %533 : vector<1x1x8xf32> to vector<1x8x8xf32>
    %535 = arith.cmpf oge, %531, %534 : vector<1x8x8xf32>
    %c8_i32_159 = arith.constant 8 : i32
    %536 = vector.broadcast %c8_i32_159 : i32 to vector<1x8x8xi32>
    %537 = arith.select %535, %430, %536 : vector<1x8x8xi1>, vector<1x8x8xi32>
    %cst_160 = arith.constant dense<2147483647> : vector<1x8xi32>
    %538 = vector.multi_reduction <minsi>, %537, %cst_160 [1] : vector<1x8x8xi32> to vector<1x8xi32>
    %c5_161 = arith.constant 5 : index
    %c0_162 = arith.constant 0 : index
    %539 = vector.load %arg30[%c5_161, %c0_162] : memref<8x8xi32, #tpu.memory_space<vmem>>, vector<1x8xi32>
    tpu.vector_store %arg30[%c5_161, %c0_162], %538 {strides = array<i32>} : memref<8x8xi32, #tpu.memory_space<vmem>>, vector<1x8xi32>,
    %540 = vector.extract_strided_slice %3 {offsets = [0, 5], sizes = [1, 1], strides = [1, 1]} : vector<1x8xf32> to vector<1x1xf32>
    %cst_163 = arith.constant 0.000000e+00 : f32
    %541 = vector.broadcast %cst_163 : f32 to vector<1x1xf32>
    %542 = arith.cmpf ogt, %540, %541 : vector<1x1xf32>
    %543 = vector.shape_cast %542 : vector<1x1xi1> to vector<1x1xi1>
    %544 = vector.broadcast %543 : vector<1x1xi1> to vector<1x8xi1>
    %545 = arith.select %544, %532, %523 : vector<1x8xi1>, vector<1x8xf32>
    %546 = vector.shape_cast %545 : vector<1x8xf32> to vector<1x8x1xf32>
    %547 = vector.shape_cast %429 : vector<8x8xf32> to vector<1x8x8xf32>
    %548 = vector.broadcast %546 : vector<1x8x1xf32> to vector<1x8x8xf32>
    %549 = arith.addf %548, %547 : vector<1x8x8xf32>
    %550 = vector.extract_strided_slice %428 {offsets = [6, 0], sizes = [1, 8], strides = [1, 1]} : vector<8x8xf32> to vector<1x8xf32>
    %551 = vector.shape_cast %550 : vector<1x8xf32> to vector<1x1x8xf32>
    %552 = vector.broadcast %551 : vector<1x1x8xf32> to vector<1x8x8xf32>
    %553 = arith.addf %549, %552 : vector<1x8x8xf32>
    %cst_164 = arith.constant dense<0xFF800000> : vector<1x8xf32>
    %554 = vector.multi_reduction <maximumf>, %553, %cst_164 [1] : vector<1x8x8xf32> to vector<1x8xf32>
    %555 = vector.shape_cast %554 : vector<1x8xf32> to vector<1x1x8xf32>
    %556 = vector.broadcast %555 : vector<1x1x8xf32> to vector<1x8x8xf32>
    %557 = arith.cmpf oge, %553, %556 : vector<1x8x8xf32>
    %c8_i32_165 = arith.constant 8 : i32
    %558 = vector.broadcast %c8_i32_165 : i32 to vector<1x8x8xi32>
    %559 = arith.select %557, %430, %558 : vector<1x8x8xi1>, vector<1x8x8xi32>
    %cst_166 = arith.constant dense<2147483647> : vector<1x8xi32>
    %560 = vector.multi_reduction <minsi>, %559, %cst_166 [1] : vector<1x8x8xi32> to vector<1x8xi32>
    %c6_167 = arith.constant 6 : index
    %c0_168 = arith.constant 0 : index
    %561 = vector.load %arg30[%c6_167, %c0_168] : memref<8x8xi32, #tpu.memory_space<vmem>>, vector<1x8xi32>
    tpu.vector_store %arg30[%c6_167, %c0_168], %560 {strides = array<i32>} : memref<8x8xi32, #tpu.memory_space<vmem>>, vector<1x8xi32>,
    %562 = vector.extract_strided_slice %3 {offsets = [0, 6], sizes = [1, 1], strides = [1, 1]} : vector<1x8xf32> to vector<1x1xf32>
    %cst_169 = arith.constant 0.000000e+00 : f32
    %563 = vector.broadcast %cst_169 : f32 to vector<1x1xf32>
    %564 = arith.cmpf ogt, %562, %563 : vector<1x1xf32>
    %565 = vector.shape_cast %564 : vector<1x1xi1> to vector<1x1xi1>
    %566 = vector.broadcast %565 : vector<1x1xi1> to vector<1x8xi1>
    %567 = arith.select %566, %554, %545 : vector<1x8xi1>, vector<1x8xf32>
    %568 = vector.shape_cast %567 : vector<1x8xf32> to vector<1x8x1xf32>
    %569 = vector.shape_cast %429 : vector<8x8xf32> to vector<1x8x8xf32>
    %570 = vector.broadcast %568 : vector<1x8x1xf32> to vector<1x8x8xf32>
    %571 = arith.addf %570, %569 : vector<1x8x8xf32>
    %572 = vector.extract_strided_slice %428 {offsets = [7, 0], sizes = [1, 8], strides = [1, 1]} : vector<8x8xf32> to vector<1x8xf32>
    %573 = vector.shape_cast %572 : vector<1x8xf32> to vector<1x1x8xf32>
    %574 = vector.broadcast %573 : vector<1x1x8xf32> to vector<1x8x8xf32>
    %575 = arith.addf %571, %574 : vector<1x8x8xf32>
    %cst_170 = arith.constant dense<0xFF800000> : vector<1x8xf32>
    %576 = vector.multi_reduction <maximumf>, %575, %cst_170 [1] : vector<1x8x8xf32> to vector<1x8xf32>
    %577 = vector.shape_cast %576 : vector<1x8xf32> to vector<1x1x8xf32>
    %578 = vector.broadcast %577 : vector<1x1x8xf32> to vector<1x8x8xf32>
    %579 = arith.cmpf oge, %575, %578 : vector<1x8x8xf32>
    %c8_i32_171 = arith.constant 8 : i32
    %580 = vector.broadcast %c8_i32_171 : i32 to vector<1x8x8xi32>
    %581 = arith.select %579, %430, %580 : vector<1x8x8xi1>, vector<1x8x8xi32>
    %cst_172 = arith.constant dense<2147483647> : vector<1x8xi32>
    %582 = vector.multi_reduction <minsi>, %581, %cst_172 [1] : vector<1x8x8xi32> to vector<1x8xi32>
    %c7_173 = arith.constant 7 : index
    %c0_174 = arith.constant 0 : index
    %583 = vector.load %arg30[%c7_173, %c0_174] : memref<8x8xi32, #tpu.memory_space<vmem>>, vector<1x8xi32>
    tpu.vector_store %arg30[%c7_173, %c0_174], %582 {strides = array<i32>} : memref<8x8xi32, #tpu.memory_space<vmem>>, vector<1x8xi32>,
    %584 = vector.extract_strided_slice %3 {offsets = [0, 7], sizes = [1, 1], strides = [1, 1]} : vector<1x8xf32> to vector<1x1xf32>
    %cst_175 = arith.constant 0.000000e+00 : f32
    %585 = vector.broadcast %cst_175 : f32 to vector<1x1xf32>
    %586 = arith.cmpf ogt, %584, %585 : vector<1x1xf32>
    %587 = vector.shape_cast %586 : vector<1x1xi1> to vector<1x1xi1>
    %588 = vector.broadcast %587 : vector<1x1xi1> to vector<1x8xi1>
    %589 = arith.select %588, %576, %567 : vector<1x8xi1>, vector<1x8xf32>
    %c0_176 = arith.constant 0 : index
    %c0_177 = arith.constant 0 : index
    %590 = vector.load %arg26[%c0_176, %c0_177] : memref<1x8xf32, #tpu.memory_space<vmem>>, vector<1x8xf32>
    %591 = arith.addf %589, %590 : vector<1x8xf32>
    %cst_178 = arith.constant dense<0xFF800000> : vector<1xf32>
    %592 = vector.multi_reduction <maximumf>, %591, %cst_178 [1] : vector<1x8xf32> to vector<1xf32>
    %593 = vector.shape_cast %592 : vector<1xf32> to vector<1x1xf32>
    %594 = vector.broadcast %593 : vector<1x1xf32> to vector<1x8xf32>
    %595 = arith.cmpf oge, %591, %594 : vector<1x8xf32>
    %c8_i32_179 = arith.constant 8 : i32
    %596 = vector.broadcast %c8_i32_179 : i32 to vector<1x8xi32>
    %597 = arith.select %595, %431, %596 : vector<1x8xi1>, vector<1x8xi32>
    %cst_180 = arith.constant dense<2147483647> : vector<1xi32>
    %598 = vector.multi_reduction <minsi>, %597, %cst_180 [1] : vector<1x8xi32> to vector<1xi32>
    %599 = vector.shape_cast %598 : vector<1xi32> to vector<1x1xi32>
    %cst_181 = arith.constant dense<0.000000e+00> : vector<1xf32>
    %600 = vector.multi_reduction <add>, %3, %cst_181 [1] : vector<1x8xf32> to vector<1xf32>
    %601 = vector.shape_cast %600 : vector<1xf32> to vector<1x1xf32>
    %602 = arith.fptosi %601 : vector<1x1xf32> to vector<1x1xi32>
    %c0_i32 = arith.constant 0 : i32
    %603 = vector.broadcast %c0_i32 : i32 to vector<1x1xi32>
    %c0_i32_182 = arith.constant 0 : i32
    %604 = vector.broadcast %c0_i32_182 : i32 to vector<1x8xi32>
    %c1_i32 = arith.constant 1 : i32
    %605 = vector.broadcast %c1_i32 : i32 to vector<1x1xi32>
    %606 = arith.subi %602, %605 : vector<1x1xi32>
    %c7_i32 = arith.constant 7 : i32
    %607 = vector.broadcast %c7_i32 : i32 to vector<1x1xi32>
    %608 = arith.cmpi eq, %606, %607 : vector<1x1xi32>
    %c1_i32_183 = arith.constant 1 : i32
    %609 = vector.broadcast %c1_i32_183 : i32 to vector<1x1xi32>
    %610 = arith.subi %602, %609 : vector<1x1xi32>
    %c7_i32_184 = arith.constant 7 : i32
    %611 = vector.broadcast %c7_i32_184 : i32 to vector<1x1xi32>
    %612 = arith.cmpi sgt, %610, %611 : vector<1x1xi32>
    %613 = arith.select %612, %603, %603 : vector<1x1xi1>, vector<1x1xi32>
    %614 = arith.select %608, %599, %613 : vector<1x1xi1>, vector<1x1xi32>
    %615 = arith.ori %608, %612 : vector<1x1xi1>
    %c7_i32_185 = arith.constant 7 : i32
    %616 = vector.broadcast %c7_i32_185 : i32 to vector<1x8xi32>
    %617 = arith.cmpi eq, %432, %616 : vector<1x8xi32>
    %618 = vector.broadcast %615 : vector<1x1xi1> to vector<1x8xi1>
    %619 = arith.andi %618, %617 : vector<1x8xi1>
    %620 = vector.shape_cast %614 : vector<1x1xi32> to vector<1x1xi32>
    %621 = vector.broadcast %620 : vector<1x1xi32> to vector<1x8xi32>
    %622 = arith.select %619, %621, %604 : vector<1x8xi1>, vector<1x8xi32>
    %c7_186 = arith.constant 7 : index
    %c0_187 = arith.constant 0 : index
    %623 = vector.load %arg30[%c7_186, %c0_187] : memref<8x8xi32, #tpu.memory_space<vmem>>, vector<1x8xi32>
    %624 = vector.broadcast %614 : vector<1x1xi32> to vector<1x8xi32>
    %625 = arith.cmpi eq, %431, %624 : vector<1x8xi32>
    %c0_i32_188 = arith.constant 0 : i32
    %626 = vector.broadcast %c0_i32_188 : i32 to vector<1x8xi32>
    %627 = arith.select %625, %623, %626 : vector<1x8xi1>, vector<1x8xi32>
    %cst_189 = arith.constant dense<-2147483648> : vector<1xi32>
    %628 = vector.multi_reduction <maxsi>, %627, %cst_189 [1] : vector<1x8xi32> to vector<1xi32>
    %629 = vector.shape_cast %628 : vector<1xi32> to vector<1x1xi32>
    %c1_i32_190 = arith.constant 1 : i32
    %630 = vector.broadcast %c1_i32_190 : i32 to vector<1x1xi32>
    %631 = arith.subi %602, %630 : vector<1x1xi32>
    %c6_i32 = arith.constant 6 : i32
    %632 = vector.broadcast %c6_i32 : i32 to vector<1x1xi32>
    %633 = arith.cmpi eq, %631, %632 : vector<1x1xi32>
    %c1_i32_191 = arith.constant 1 : i32
    %634 = vector.broadcast %c1_i32_191 : i32 to vector<1x1xi32>
    %635 = arith.subi %602, %634 : vector<1x1xi32>
    %c6_i32_192 = arith.constant 6 : i32
    %636 = vector.broadcast %c6_i32_192 : i32 to vector<1x1xi32>
    %637 = arith.cmpi sgt, %635, %636 : vector<1x1xi32>
    %638 = arith.select %637, %629, %614 : vector<1x1xi1>, vector<1x1xi32>
    %639 = arith.select %633, %599, %638 : vector<1x1xi1>, vector<1x1xi32>
    %640 = arith.ori %633, %637 : vector<1x1xi1>
    %c6_i32_193 = arith.constant 6 : i32
    %641 = vector.broadcast %c6_i32_193 : i32 to vector<1x8xi32>
    %642 = arith.cmpi eq, %432, %641 : vector<1x8xi32>
    %643 = vector.broadcast %640 : vector<1x1xi1> to vector<1x8xi1>
    %644 = arith.andi %643, %642 : vector<1x8xi1>
    %645 = vector.shape_cast %639 : vector<1x1xi32> to vector<1x1xi32>
    %646 = vector.broadcast %645 : vector<1x1xi32> to vector<1x8xi32>
    %647 = arith.select %644, %646, %622 : vector<1x8xi1>, vector<1x8xi32>
    %c6_194 = arith.constant 6 : index
    %c0_195 = arith.constant 0 : index
    %648 = vector.load %arg30[%c6_194, %c0_195] : memref<8x8xi32, #tpu.memory_space<vmem>>, vector<1x8xi32>
    %649 = vector.broadcast %639 : vector<1x1xi32> to vector<1x8xi32>
    %650 = arith.cmpi eq, %431, %649 : vector<1x8xi32>
    %c0_i32_196 = arith.constant 0 : i32
    %651 = vector.broadcast %c0_i32_196 : i32 to vector<1x8xi32>
    %652 = arith.select %650, %648, %651 : vector<1x8xi1>, vector<1x8xi32>
    %cst_197 = arith.constant dense<-2147483648> : vector<1xi32>
    %653 = vector.multi_reduction <maxsi>, %652, %cst_197 [1] : vector<1x8xi32> to vector<1xi32>
    %654 = vector.shape_cast %653 : vector<1xi32> to vector<1x1xi32>
    %c1_i32_198 = arith.constant 1 : i32
    %655 = vector.broadcast %c1_i32_198 : i32 to vector<1x1xi32>
    %656 = arith.subi %602, %655 : vector<1x1xi32>
    %c5_i32 = arith.constant 5 : i32
    %657 = vector.broadcast %c5_i32 : i32 to vector<1x1xi32>
    %658 = arith.cmpi eq, %656, %657 : vector<1x1xi32>
    %c1_i32_199 = arith.constant 1 : i32
    %659 = vector.broadcast %c1_i32_199 : i32 to vector<1x1xi32>
    %660 = arith.subi %602, %659 : vector<1x1xi32>
    %c5_i32_200 = arith.constant 5 : i32
    %661 = vector.broadcast %c5_i32_200 : i32 to vector<1x1xi32>
    %662 = arith.cmpi sgt, %660, %661 : vector<1x1xi32>
    %663 = arith.select %662, %654, %639 : vector<1x1xi1>, vector<1x1xi32>
    %664 = arith.select %658, %599, %663 : vector<1x1xi1>, vector<1x1xi32>
    %665 = arith.ori %658, %662 : vector<1x1xi1>
    %c5_i32_201 = arith.constant 5 : i32
    %666 = vector.broadcast %c5_i32_201 : i32 to vector<1x8xi32>
    %667 = arith.cmpi eq, %432, %666 : vector<1x8xi32>
    %668 = vector.broadcast %665 : vector<1x1xi1> to vector<1x8xi1>
    %669 = arith.andi %668, %667 : vector<1x8xi1>
    %670 = vector.shape_cast %664 : vector<1x1xi32> to vector<1x1xi32>
    %671 = vector.broadcast %670 : vector<1x1xi32> to vector<1x8xi32>
    %672 = arith.select %669, %671, %647 : vector<1x8xi1>, vector<1x8xi32>
    %c5_202 = arith.constant 5 : index
    %c0_203 = arith.constant 0 : index
    %673 = vector.load %arg30[%c5_202, %c0_203] : memref<8x8xi32, #tpu.memory_space<vmem>>, vector<1x8xi32>
    %674 = vector.broadcast %664 : vector<1x1xi32> to vector<1x8xi32>
    %675 = arith.cmpi eq, %431, %674 : vector<1x8xi32>
    %c0_i32_204 = arith.constant 0 : i32
    %676 = vector.broadcast %c0_i32_204 : i32 to vector<1x8xi32>
    %677 = arith.select %675, %673, %676 : vector<1x8xi1>, vector<1x8xi32>
    %cst_205 = arith.constant dense<-2147483648> : vector<1xi32>
    %678 = vector.multi_reduction <maxsi>, %677, %cst_205 [1] : vector<1x8xi32> to vector<1xi32>
    %679 = vector.shape_cast %678 : vector<1xi32> to vector<1x1xi32>
    %c1_i32_206 = arith.constant 1 : i32
    %680 = vector.broadcast %c1_i32_206 : i32 to vector<1x1xi32>
    %681 = arith.subi %602, %680 : vector<1x1xi32>
    %c4_i32 = arith.constant 4 : i32
    %682 = vector.broadcast %c4_i32 : i32 to vector<1x1xi32>
    %683 = arith.cmpi eq, %681, %682 : vector<1x1xi32>
    %c1_i32_207 = arith.constant 1 : i32
    %684 = vector.broadcast %c1_i32_207 : i32 to vector<1x1xi32>
    %685 = arith.subi %602, %684 : vector<1x1xi32>
    %c4_i32_208 = arith.constant 4 : i32
    %686 = vector.broadcast %c4_i32_208 : i32 to vector<1x1xi32>
    %687 = arith.cmpi sgt, %685, %686 : vector<1x1xi32>
    %688 = arith.select %687, %679, %664 : vector<1x1xi1>, vector<1x1xi32>
    %689 = arith.select %683, %599, %688 : vector<1x1xi1>, vector<1x1xi32>
    %690 = arith.ori %683, %687 : vector<1x1xi1>
    %c4_i32_209 = arith.constant 4 : i32
    %691 = vector.broadcast %c4_i32_209 : i32 to vector<1x8xi32>
    %692 = arith.cmpi eq, %432, %691 : vector<1x8xi32>
    %693 = vector.broadcast %690 : vector<1x1xi1> to vector<1x8xi1>
    %694 = arith.andi %693, %692 : vector<1x8xi1>
    %695 = vector.shape_cast %689 : vector<1x1xi32> to vector<1x1xi32>
    %696 = vector.broadcast %695 : vector<1x1xi32> to vector<1x8xi32>
    %697 = arith.select %694, %696, %672 : vector<1x8xi1>, vector<1x8xi32>
    %c4_210 = arith.constant 4 : index
    %c0_211 = arith.constant 0 : index
    %698 = vector.load %arg30[%c4_210, %c0_211] : memref<8x8xi32, #tpu.memory_space<vmem>>, vector<1x8xi32>
    %699 = vector.broadcast %689 : vector<1x1xi32> to vector<1x8xi32>
    %700 = arith.cmpi eq, %431, %699 : vector<1x8xi32>
    %c0_i32_212 = arith.constant 0 : i32
    %701 = vector.broadcast %c0_i32_212 : i32 to vector<1x8xi32>
    %702 = arith.select %700, %698, %701 : vector<1x8xi1>, vector<1x8xi32>
    %cst_213 = arith.constant dense<-2147483648> : vector<1xi32>
    %703 = vector.multi_reduction <maxsi>, %702, %cst_213 [1] : vector<1x8xi32> to vector<1xi32>
    %704 = vector.shape_cast %703 : vector<1xi32> to vector<1x1xi32>
    %c1_i32_214 = arith.constant 1 : i32
    %705 = vector.broadcast %c1_i32_214 : i32 to vector<1x1xi32>
    %706 = arith.subi %602, %705 : vector<1x1xi32>
    %c3_i32 = arith.constant 3 : i32
    %707 = vector.broadcast %c3_i32 : i32 to vector<1x1xi32>
    %708 = arith.cmpi eq, %706, %707 : vector<1x1xi32>
    %c1_i32_215 = arith.constant 1 : i32
    %709 = vector.broadcast %c1_i32_215 : i32 to vector<1x1xi32>
    %710 = arith.subi %602, %709 : vector<1x1xi32>
    %c3_i32_216 = arith.constant 3 : i32
    %711 = vector.broadcast %c3_i32_216 : i32 to vector<1x1xi32>
    %712 = arith.cmpi sgt, %710, %711 : vector<1x1xi32>
    %713 = arith.select %712, %704, %689 : vector<1x1xi1>, vector<1x1xi32>
    %714 = arith.select %708, %599, %713 : vector<1x1xi1>, vector<1x1xi32>
    %715 = arith.ori %708, %712 : vector<1x1xi1>
    %c3_i32_217 = arith.constant 3 : i32
    %716 = vector.broadcast %c3_i32_217 : i32 to vector<1x8xi32>
    %717 = arith.cmpi eq, %432, %716 : vector<1x8xi32>
    %718 = vector.broadcast %715 : vector<1x1xi1> to vector<1x8xi1>
    %719 = arith.andi %718, %717 : vector<1x8xi1>
    %720 = vector.shape_cast %714 : vector<1x1xi32> to vector<1x1xi32>
    %721 = vector.broadcast %720 : vector<1x1xi32> to vector<1x8xi32>
    %722 = arith.select %719, %721, %697 : vector<1x8xi1>, vector<1x8xi32>
    %c3_218 = arith.constant 3 : index
    %c0_219 = arith.constant 0 : index
    %723 = vector.load %arg30[%c3_218, %c0_219] : memref<8x8xi32, #tpu.memory_space<vmem>>, vector<1x8xi32>
    %724 = vector.broadcast %714 : vector<1x1xi32> to vector<1x8xi32>
    %725 = arith.cmpi eq, %431, %724 : vector<1x8xi32>
    %c0_i32_220 = arith.constant 0 : i32
    %726 = vector.broadcast %c0_i32_220 : i32 to vector<1x8xi32>
    %727 = arith.select %725, %723, %726 : vector<1x8xi1>, vector<1x8xi32>
    %cst_221 = arith.constant dense<-2147483648> : vector<1xi32>
    %728 = vector.multi_reduction <maxsi>, %727, %cst_221 [1] : vector<1x8xi32> to vector<1xi32>
    %729 = vector.shape_cast %728 : vector<1xi32> to vector<1x1xi32>
    %c1_i32_222 = arith.constant 1 : i32
    %730 = vector.broadcast %c1_i32_222 : i32 to vector<1x1xi32>
    %731 = arith.subi %602, %730 : vector<1x1xi32>
    %c2_i32 = arith.constant 2 : i32
    %732 = vector.broadcast %c2_i32 : i32 to vector<1x1xi32>
    %733 = arith.cmpi eq, %731, %732 : vector<1x1xi32>
    %c1_i32_223 = arith.constant 1 : i32
    %734 = vector.broadcast %c1_i32_223 : i32 to vector<1x1xi32>
    %735 = arith.subi %602, %734 : vector<1x1xi32>
    %c2_i32_224 = arith.constant 2 : i32
    %736 = vector.broadcast %c2_i32_224 : i32 to vector<1x1xi32>
    %737 = arith.cmpi sgt, %735, %736 : vector<1x1xi32>
    %738 = arith.select %737, %729, %714 : vector<1x1xi1>, vector<1x1xi32>
    %739 = arith.select %733, %599, %738 : vector<1x1xi1>, vector<1x1xi32>
    %740 = arith.ori %733, %737 : vector<1x1xi1>
    %c2_i32_225 = arith.constant 2 : i32
    %741 = vector.broadcast %c2_i32_225 : i32 to vector<1x8xi32>
    %742 = arith.cmpi eq, %432, %741 : vector<1x8xi32>
    %743 = vector.broadcast %740 : vector<1x1xi1> to vector<1x8xi1>
    %744 = arith.andi %743, %742 : vector<1x8xi1>
    %745 = vector.shape_cast %739 : vector<1x1xi32> to vector<1x1xi32>
    %746 = vector.broadcast %745 : vector<1x1xi32> to vector<1x8xi32>
    %747 = arith.select %744, %746, %722 : vector<1x8xi1>, vector<1x8xi32>
    %c2_226 = arith.constant 2 : index
    %c0_227 = arith.constant 0 : index
    %748 = vector.load %arg30[%c2_226, %c0_227] : memref<8x8xi32, #tpu.memory_space<vmem>>, vector<1x8xi32>
    %749 = vector.broadcast %739 : vector<1x1xi32> to vector<1x8xi32>
    %750 = arith.cmpi eq, %431, %749 : vector<1x8xi32>
    %c0_i32_228 = arith.constant 0 : i32
    %751 = vector.broadcast %c0_i32_228 : i32 to vector<1x8xi32>
    %752 = arith.select %750, %748, %751 : vector<1x8xi1>, vector<1x8xi32>
    %cst_229 = arith.constant dense<-2147483648> : vector<1xi32>
    %753 = vector.multi_reduction <maxsi>, %752, %cst_229 [1] : vector<1x8xi32> to vector<1xi32>
    %754 = vector.shape_cast %753 : vector<1xi32> to vector<1x1xi32>
    %c1_i32_230 = arith.constant 1 : i32
    %755 = vector.broadcast %c1_i32_230 : i32 to vector<1x1xi32>
    %756 = arith.subi %602, %755 : vector<1x1xi32>
    %c1_i32_231 = arith.constant 1 : i32
    %757 = vector.broadcast %c1_i32_231 : i32 to vector<1x1xi32>
    %758 = arith.cmpi eq, %756, %757 : vector<1x1xi32>
    %c1_i32_232 = arith.constant 1 : i32
    %759 = vector.broadcast %c1_i32_232 : i32 to vector<1x1xi32>
    %760 = arith.subi %602, %759 : vector<1x1xi32>
    %c1_i32_233 = arith.constant 1 : i32
    %761 = vector.broadcast %c1_i32_233 : i32 to vector<1x1xi32>
    %762 = arith.cmpi sgt, %760, %761 : vector<1x1xi32>
    %763 = arith.select %762, %754, %739 : vector<1x1xi1>, vector<1x1xi32>
    %764 = arith.select %758, %599, %763 : vector<1x1xi1>, vector<1x1xi32>
    %765 = arith.ori %758, %762 : vector<1x1xi1>
    %c1_i32_234 = arith.constant 1 : i32
    %766 = vector.broadcast %c1_i32_234 : i32 to vector<1x8xi32>
    %767 = arith.cmpi eq, %432, %766 : vector<1x8xi32>
    %768 = vector.broadcast %765 : vector<1x1xi1> to vector<1x8xi1>
    %769 = arith.andi %768, %767 : vector<1x8xi1>
    %770 = vector.shape_cast %764 : vector<1x1xi32> to vector<1x1xi32>
    %771 = vector.broadcast %770 : vector<1x1xi32> to vector<1x8xi32>
    %772 = arith.select %769, %771, %747 : vector<1x8xi1>, vector<1x8xi32>
    %c1_235 = arith.constant 1 : index
    %c0_236 = arith.constant 0 : index
    %773 = vector.load %arg30[%c1_235, %c0_236] : memref<8x8xi32, #tpu.memory_space<vmem>>, vector<1x8xi32>
    %774 = vector.broadcast %764 : vector<1x1xi32> to vector<1x8xi32>
    %775 = arith.cmpi eq, %431, %774 : vector<1x8xi32>
    %c0_i32_237 = arith.constant 0 : i32
    %776 = vector.broadcast %c0_i32_237 : i32 to vector<1x8xi32>
    %777 = arith.select %775, %773, %776 : vector<1x8xi1>, vector<1x8xi32>
    %cst_238 = arith.constant dense<-2147483648> : vector<1xi32>
    %778 = vector.multi_reduction <maxsi>, %777, %cst_238 [1] : vector<1x8xi32> to vector<1xi32>
    %779 = vector.shape_cast %778 : vector<1xi32> to vector<1x1xi32>
    %c1_i32_239 = arith.constant 1 : i32
    %780 = vector.broadcast %c1_i32_239 : i32 to vector<1x1xi32>
    %781 = arith.subi %602, %780 : vector<1x1xi32>
    %c0_i32_240 = arith.constant 0 : i32
    %782 = vector.broadcast %c0_i32_240 : i32 to vector<1x1xi32>
    %783 = arith.cmpi eq, %781, %782 : vector<1x1xi32>
    %c1_i32_241 = arith.constant 1 : i32
    %784 = vector.broadcast %c1_i32_241 : i32 to vector<1x1xi32>
    %785 = arith.subi %602, %784 : vector<1x1xi32>
    %c0_i32_242 = arith.constant 0 : i32
    %786 = vector.broadcast %c0_i32_242 : i32 to vector<1x1xi32>
    %787 = arith.cmpi sgt, %785, %786 : vector<1x1xi32>
    %788 = arith.select %787, %779, %764 : vector<1x1xi1>, vector<1x1xi32>
    %789 = arith.select %783, %599, %788 : vector<1x1xi1>, vector<1x1xi32>
    %790 = arith.ori %783, %787 : vector<1x1xi1>
    %c0_i32_243 = arith.constant 0 : i32
    %791 = vector.broadcast %c0_i32_243 : i32 to vector<1x8xi32>
    %792 = arith.cmpi eq, %432, %791 : vector<1x8xi32>
    %793 = vector.broadcast %790 : vector<1x1xi1> to vector<1x8xi1>
    %794 = arith.andi %793, %792 : vector<1x8xi1>
    %795 = vector.shape_cast %789 : vector<1x1xi32> to vector<1x1xi32>
    %796 = vector.broadcast %795 : vector<1x1xi32> to vector<1x8xi32>
    %797 = arith.select %794, %796, %772 : vector<1x8xi1>, vector<1x8xi32>
    %798 = vector.shape_cast %797 : vector<1x8xi32> to vector<1x1x8xi32>
    %c0_244 = arith.constant 0 : index
    %c0_245 = arith.constant 0 : index
    %c0_246 = arith.constant 0 : index
    %799 = vector.load %arg28[%c0_244, %c0_245, %c0_246] : memref<1x1x8xi32, #tpu.memory_space<vmem>>, vector<1x1x8xi32>
    tpu.vector_store %arg28[%c0_244, %c0_245, %c0_246], %798 {strides = array<i32>} : memref<1x1x8xi32, #tpu.memory_space<vmem>>, vector<1x1x8xi32>,
    return
  }
  func.func @transform_0(%arg0: i32) -> (i32, i32, i32) {
    %c0_i32 = arith.constant 0 : i32
    %c0_i32_0 = arith.constant 0 : i32
    %c0_i32_1 = arith.constant 0 : i32
    return %arg0, %c0_i32, %c0_i32_0 : i32, i32, i32
  }
  func.func @transform_1(%arg0: i32) -> (i32, i32, i32) {
    %c0_i32 = arith.constant 0 : i32
    %c0_i32_0 = arith.constant 0 : i32
    %c0_i32_1 = arith.constant 0 : i32
    return %arg0, %c0_i32, %c0_i32_0 : i32, i32, i32
  }
  func.func @transform_2(%arg0: i32) -> (i32, i32) {
    %c0_i32 = arith.constant 0 : i32
    %c0_i32_0 = arith.constant 0 : i32
    %c0_i32_1 = arith.constant 0 : i32
    return %c0_i32, %c0_i32_0 : i32, i32
  }
  func.func @transform_3(%arg0: i32) -> (i32, i32) {
    %c0_i32 = arith.constant 0 : i32
    %c0_i32_0 = arith.constant 0 : i32
    %c0_i32_1 = arith.constant 0 : i32
    return %c0_i32, %c0_i32_0 : i32, i32
  }
  func.func @transform_4(%arg0: i32) -> (i32, i32) {
    %c0_i32 = arith.constant 0 : i32
    %c0_i32_0 = arith.constant 0 : i32
    %c0_i32_1 = arith.constant 0 : i32
    return %c0_i32, %c0_i32_0 : i32, i32
  }
  func.func @transform_5(%arg0: i32) -> (i32, i32) {
    %c0_i32 = arith.constant 0 : i32
    %c0_i32_0 = arith.constant 0 : i32
    %c0_i32_1 = arith.constant 0 : i32
    return %c0_i32, %c0_i32_0 : i32, i32
  }
  func.func @transform_6(%arg0: i32) -> (i32, i32, i32) {
    %c0_i32 = arith.constant 0 : i32
    %c0_i32_0 = arith.constant 0 : i32
    %c0_i32_1 = arith.constant 0 : i32
    %c0_i32_2 = arith.constant 0 : i32
    return %c0_i32, %c0_i32_0, %c0_i32_1 : i32, i32, i32
  }
  func.func @transform_7(%arg0: i32) -> (i32, i32) {
    %c0_i32 = arith.constant 0 : i32
    %c0_i32_0 = arith.constant 0 : i32
    %c0_i32_1 = arith.constant 0 : i32
    return %c0_i32, %c0_i32_0 : i32, i32
  }
  func.func @transform_8(%arg0: i32) -> (i32, i32) {
    %c0_i32 = arith.constant 0 : i32
    %c0_i32_0 = arith.constant 0 : i32
    %c0_i32_1 = arith.constant 0 : i32
    return %c0_i32, %c0_i32_0 : i32, i32
  }
  func.func @transform_9(%arg0: i32) -> (i32, i32) {
    %c0_i32 = arith.constant 0 : i32
    %c0_i32_0 = arith.constant 0 : i32
    %c0_i32_1 = arith.constant 0 : i32
    return %c0_i32, %c0_i32_0 : i32, i32
  }
  func.func @transform_10(%arg0: i32) -> (i32, i32) {
    %c0_i32 = arith.constant 0 : i32
    %c0_i32_0 = arith.constant 0 : i32
    %c0_i32_1 = arith.constant 0 : i32
    return %c0_i32, %c0_i32_0 : i32, i32
  }
  func.func @transform_11(%arg0: i32) -> (i32, i32) {
    %c0_i32 = arith.constant 0 : i32
    %c0_i32_0 = arith.constant 0 : i32
    %c0_i32_1 = arith.constant 0 : i32
    return %c0_i32, %c0_i32_0 : i32, i32
  }
  func.func @transform_12(%arg0: i32) -> (i32, i32) {
    %c0_i32 = arith.constant 0 : i32
    %c0_i32_0 = arith.constant 0 : i32
    %c0_i32_1 = arith.constant 0 : i32
    return %c0_i32, %c0_i32_0 : i32, i32
  }
  func.func @transform_13(%arg0: i32) -> (i32, i32) {
    %c0_i32 = arith.constant 0 : i32
    %c0_i32_0 = arith.constant 0 : i32
    %c0_i32_1 = arith.constant 0 : i32
    return %c0_i32, %c0_i32_0 : i32, i32
  }
  func.func @transform_14(%arg0: i32) -> (i32, i32) {
    %c0_i32 = arith.constant 0 : i32
    %c0_i32_0 = arith.constant 0 : i32
    %c0_i32_1 = arith.constant 0 : i32
    return %c0_i32, %c0_i32_0 : i32, i32
  }
  func.func @transform_15(%arg0: i32) -> (i32, i32) {
    %c0_i32 = arith.constant 0 : i32
    %c0_i32_0 = arith.constant 0 : i32
    %c0_i32_1 = arith.constant 0 : i32
    return %c0_i32, %c0_i32_0 : i32, i32
  }
  func.func @transform_16(%arg0: i32) -> (i32, i32) {
    %c0_i32 = arith.constant 0 : i32
    %c0_i32_0 = arith.constant 0 : i32
    %c0_i32_1 = arith.constant 0 : i32
    return %c0_i32, %c0_i32_0 : i32, i32
  }
  func.func @transform_17(%arg0: i32) -> (i32, i32) {
    %c0_i32 = arith.constant 0 : i32
    %c0_i32_0 = arith.constant 0 : i32
    %c0_i32_1 = arith.constant 0 : i32
    return %c0_i32, %c0_i32_0 : i32, i32
  }
  func.func @transform_18(%arg0: i32) -> (i32, i32) {
    %c0_i32 = arith.constant 0 : i32
    %c0_i32_0 = arith.constant 0 : i32
    %c0_i32_1 = arith.constant 0 : i32
    return %c0_i32, %c0_i32_0 : i32, i32
  }
  func.func @transform_19(%arg0: i32) -> (i32, i32) {
    %c0_i32 = arith.constant 0 : i32
    %c0_i32_0 = arith.constant 0 : i32
    %c0_i32_1 = arith.constant 0 : i32
    return %c0_i32, %c0_i32_0 : i32, i32
  }
  func.func @transform_20(%arg0: i32) -> (i32, i32) {
    %c0_i32 = arith.constant 0 : i32
    %c0_i32_0 = arith.constant 0 : i32
    %c0_i32_1 = arith.constant 0 : i32
    return %c0_i32, %c0_i32_0 : i32, i32
  }
  func.func @transform_21(%arg0: i32) -> (i32, i32) {
    %c0_i32 = arith.constant 0 : i32
    %c0_i32_0 = arith.constant 0 : i32
    %c0_i32_1 = arith.constant 0 : i32
    return %c0_i32, %c0_i32_0 : i32, i32
  }
  func.func @transform_22(%arg0: i32) -> (i32, i32) {
    %c0_i32 = arith.constant 0 : i32
    %c0_i32_0 = arith.constant 0 : i32
    %c0_i32_1 = arith.constant 0 : i32
    return %c0_i32, %c0_i32_0 : i32, i32
  }
  func.func @transform_23(%arg0: i32) -> (i32, i32) {
    %c0_i32 = arith.constant 0 : i32
    %c0_i32_0 = arith.constant 0 : i32
    %c0_i32_1 = arith.constant 0 : i32
    return %c0_i32, %c0_i32_0 : i32, i32
  }
  func.func @transform_24(%arg0: i32) -> (i32, i32) {
    %c0_i32 = arith.constant 0 : i32
    %c0_i32_0 = arith.constant 0 : i32
    %c0_i32_1 = arith.constant 0 : i32
    return %c0_i32, %c0_i32_0 : i32, i32
  }
  func.func @transform_25(%arg0: i32) -> (i32, i32) {
    %c0_i32 = arith.constant 0 : i32
    %c0_i32_0 = arith.constant 0 : i32
    %c0_i32_1 = arith.constant 0 : i32
    return %c0_i32, %c0_i32_0 : i32, i32
  }
  func.func @transform_26(%arg0: i32) -> (i32, i32) {
    %c0_i32 = arith.constant 0 : i32
    %c0_i32_0 = arith.constant 0 : i32
    %c0_i32_1 = arith.constant 0 : i32
    return %c0_i32, %c0_i32_0 : i32, i32
  }
  func.func @transform_27(%arg0: i32) -> (i32, i32, i32) {
    %c0_i32 = arith.constant 0 : i32
    %c0_i32_0 = arith.constant 0 : i32
    %c0_i32_1 = arith.constant 0 : i32
    return %arg0, %c0_i32, %c0_i32_0 : i32, i32, i32
  }
}

</mosaic_0001>

<llo_original>
// kernel: forward_core.1
$region0: #{forward_core.1}
  #allocation0 [shape = 'u32[]', space=smem, size = 0x4, offset = 0x4, fixed_abs, tag = 'smem constant byte address 0x4 - core index']
  #allocation1 [shape = 'u32[144,128]{1,0:T(1,128)}', space=vmem, size = 0x12000, scoped, tag = 'internal scratch']
  #allocation2 [shape = 'f32[8,64]{1,0:T(8,128)}', space=vmem, size = 0x1000, scoped, tag = 'scratch operand']
  #allocation3 [shape = 's32[8,8]{1,0:T(8,128)}', space=vmem, size = 0x1000, scoped, tag = 'scratch operand']
  %s0 = inlined_call_operand.vmem [shape: f32[2,8,32], index: 0, kind: input, shape index: {}]
  %s1 = inlined_call_operand.vmem [shape: f32[2,1,8], index: 1, kind: input, shape index: {}]
  %s2 = inlined_call_operand.vmem [shape: f32[1,32], index: 2, kind: input, shape index: {}]
  %s3 = inlined_call_operand.vmem [shape: f32[1,32], index: 3, kind: input, shape index: {}]
  %s4 = inlined_call_operand.vmem [shape: bf16[32,96], index: 4, kind: input, shape index: {}]
  %s5 = inlined_call_operand.vmem [shape: f32[1,96], index: 5, kind: input, shape index: {}]
  %s6 = inlined_call_operand.vmem [shape: bf16[4,8,32], index: 6, kind: input, shape index: {}]
  %s7 = inlined_call_operand.vmem [shape: f32[1,32], index: 7, kind: input, shape index: {}]
  %s8 = inlined_call_operand.vmem [shape: f32[1,32], index: 8, kind: input, shape index: {}]
  %s9 = inlined_call_operand.vmem [shape: f32[1,32], index: 9, kind: input, shape index: {}]
  %s10 = inlined_call_operand.vmem [shape: bf16[32,64], index: 10, kind: input, shape index: {}]
  %s11 = inlined_call_operand.vmem [shape: f32[1,64], index: 11, kind: input, shape index: {}]
  %s12 = inlined_call_operand.vmem [shape: bf16[64,32], index: 12, kind: input, shape index: {}]
  %s13 = inlined_call_operand.vmem [shape: f32[1,32], index: 13, kind: input, shape index: {}]
  %s14 = inlined_call_operand.vmem [shape: f32[1,32], index: 14, kind: input, shape index: {}]
  %s15 = inlined_call_operand.vmem [shape: f32[1,32], index: 15, kind: input, shape index: {}]
  %s16 = inlined_call_operand.vmem [shape: f32[8,8], index: 16, kind: input, shape index: {}]
  %s17 = inlined_call_operand.vmem [shape: bf16[32,256], index: 17, kind: input, shape index: {}]
  %s18 = inlined_call_operand.vmem [shape: bf16[32,256], index: 18, kind: input, shape index: {}]
  %s19 = inlined_call_operand.vmem [shape: f32[1,256], index: 19, kind: input, shape index: {}]
  %s20 = inlined_call_operand.vmem [shape: f32[64,256], index: 20, kind: input, shape index: {}]
  %s21 = inlined_call_operand.vmem [shape: bf16[32,8], index: 21, kind: input, shape index: {}]
  %s22 = inlined_call_operand.vmem [shape: bf16[32,8], index: 22, kind: input, shape index: {}]
  %s23 = inlined_call_operand.vmem [shape: f32[1,8], index: 23, kind: input, shape index: {}]
  %s24 = inlined_call_operand.vmem [shape: f32[1,8], index: 24, kind: input, shape index: {}]
  %s25 = inlined_call_operand.vmem [shape: f32[1,8], index: 25, kind: input, shape index: {}]
  %s26 = inlined_call_operand.vmem [shape: f32[8,8], index: 26, kind: input, shape index: {}]
  %s27 = inlined_call_operand.hbm [shape: s32[2,1,8], index: 27, kind: output, shape index: {}]
  %s28 = sld [smem:[#allocation0]]
  $region141: #{forward_core.1} parent=0
    _
  %s30 = ssub.s32 1, %s28
  %s31 = scalar_select 0, %s30, %s28
  $region1: #{forward_core.1} parent=0
    #allocation4 [shape = 'u8[1024]{0}', space=vmem, size = 0x400, scoped, tag = 'output window, operand 0']
    #allocation5 [shape = 's32[2]{0}', space=sflag, size = 0x8, scoped, tag = 'scoped memory for forward_core.1']
    %32 = vsyncpa [#allocation5], 0
    %s33 = scalar_lea.sflag [#allocation5], 1
    %34 = vsyncpa %s33, 0
    loop: start=0, step=1, limit=4
    $region2: #{forward_core.1} parent=1 // loop_pre_header
      _
    $region3: #{forward_core.1} parent=1 // loop_header
      %s36 = sphi 0, %s40
      %p37 = scmp.ge.s32.totalorder %s36, 4
      %s46 = sphi 0, %s48
      %s49 = sphi 0, %s46
      %s50 = sphi 0, %s49
      %s66 = sphi 0, %s50
      %s72 = sphi 0, %s74
      %s75 = sphi 0, %s72
      %s76 = sphi 0, %s75
      %s92 = sphi 0, %s76
      %s96 = sphi 0, %s96
      %s98 = sphi 0, %s96
      %s99 = sphi 0, %s98
      %s113 = sphi 0, %s99
      %s117 = sphi 0, %s117
      %s119 = sphi 0, %s117
      %s120 = sphi 0, %s119
      %s134 = sphi 0, %s120
      %s138 = sphi 0, %s138
      %s140 = sphi 0, %s138
      %s141 = sphi 0, %s140
      %s155 = sphi 0, %s141
      %s159 = sphi 0, %s159
      %s161 = sphi 0, %s159
      %s162 = sphi 0, %s161
      %s176 = sphi 0, %s162
      %s180 = sphi 0, %s180
      %s182 = sphi 0, %s180
      %s183 = sphi 0, %s182
      %s197 = sphi 0, %s183
      %s201 = sphi 0, %s201
      %s203 = sphi 0, %s201
      %s204 = sphi 0, %s203
      %s218 = sphi 0, %s204
      %s222 = sphi 0, %s222
      %s224 = sphi 0, %s222
      %s225 = sphi 0, %s224
      %s239 = sphi 0, %s225
      %s243 = sphi 0, %s243
      %s245 = sphi 0, %s243
      %s246 = sphi 0, %s245
      %s260 = sphi 0, %s246
      %s264 = sphi 0, %s264
      %s266 = sphi 0, %s264
      %s267 = sphi 0, %s266
      %s281 = sphi 0, %s267
      %s285 = sphi 0, %s285
      %s287 = sphi 0, %s285
      %s288 = sphi 0, %s287
      %s302 = sphi 0, %s288
      %s306 = sphi 0, %s306
      %s308 = sphi 0, %s306
      %s309 = sphi 0, %s308
      %s323 = sphi 0, %s309
      %s327 = sphi 0, %s327
      %s329 = sphi 0, %s327
      %s330 = sphi 0, %s329
      %s344 = sphi 0, %s330
      %s348 = sphi 0, %s348
      %s350 = sphi 0, %s348
      %s351 = sphi 0, %s350
      %s365 = sphi 0, %s351
      %s369 = sphi 0, %s369
      %s371 = sphi 0, %s369
      %s372 = sphi 0, %s371
      %s386 = sphi 0, %s372
      %s390 = sphi 0, %s390
      %s392 = sphi 0, %s390
      %s393 = sphi 0, %s392
      %s407 = sphi 0, %s393
      %s411 = sphi 0, %s411
      %s413 = sphi 0, %s411
      %s414 = sphi 0, %s413
      %s428 = sphi 0, %s414
      %s432 = sphi 0, %s432
      %s434 = sphi 0, %s432
      %s435 = sphi 0, %s434
      %s449 = sphi 0, %s435
      %s453 = sphi 0, %s453
      %s455 = sphi 0, %s453
      %s456 = sphi 0, %s455
      %s470 = sphi 0, %s456
      %s474 = sphi 0, %s474
      %s476 = sphi 0, %s474
      %s477 = sphi 0, %s476
      %s491 = sphi 0, %s477
      %s495 = sphi 0, %s495
      %s497 = sphi 0, %s495
      %s498 = sphi 0, %s497
      %s512 = sphi 0, %s498
      %s516 = sphi 0, %s516
      %s518 = sphi 0, %s516
      %s519 = sphi 0, %s518
      %s533 = sphi 0, %s519
      %s537 = sphi 0, %s537
      %s539 = sphi 0, %s537
      %s540 = sphi 0, %s539
      %s554 = sphi 0, %s540
      %s558 = sphi 0, %s558
      %s560 = sphi 0, %s558
      %s561 = sphi 0, %s560
      %s575 = sphi 0, %s561
      %s579 = sphi 0, %s579
      %s581 = sphi 0, %s579
      %s582 = sphi 0, %s581
      %s596 = sphi 0, %s582
      %s600 = sphi 0, %s600
      %s602 = sphi 0, %s600
      %s603 = sphi 0, %s602
      %s617 = sphi 0, %s603
      %s623 = sphi 0, %s625
      %s626 = sphi 0, %s623
      %s627 = sphi 0, %s626
      %s643 = sphi 0, %s627
    $region4: #{forward_core.1} parent=1 // loop_header_branch
      %39 = sbr.rel (%p37) target = $region8
    $region5: #{forward_core.1} parent=1 // loop_body
      %s41 = ssub.s32 %s36, 1
      %s42 = ssub.s32 %s36, 2
      %s43 = sadd.s32 %s36, 1
      %s44 = ssub.s32 %s36, %s43
      %p45 = scmp.eq.s32.totalorder %s44, 0
      %s47 = sadd.s32 %s46, 1
      %s48 = scalar_select %p45, %s46, %s47
      %p51 = pneg %p45
      %p52 = scmp.eq.s32.totalorder %s36, 1
      %p53 = por %p51, %p52
      %p54 = scmp.ne.s32.totalorder %s46, %s49
      %p55 = scmp.eq.s32.totalorder %s36, 0
      %p56 = por %p54, %p55
      %p57 = scmp.ne.s32.totalorder %s46, %s49
      %p58 = scmp.eq.s32.totalorder %s41, 1
      %p59 = por %p57, %p58
      %p60 = scmp.ne.s32.totalorder %s49, %s50
      %p61 = scmp.eq.s32.totalorder %s41, 0
      %p62 = por %p60, %p61
      %p63 = scmp.ne.s32.totalorder %s49, %s50
      %p64 = scmp.eq.s32.totalorder %s42, 1
      %p65 = por %p63, %p64
      %p67 = scmp.ne.s32.totalorder %s50, %s66
      %p68 = scmp.eq.s32.totalorder %s42, 0
      %p69 = por %p67, %p68
      %s70 = ssub.s32 %s36, %s43
      %p71 = scmp.eq.s32.totalorder %s70, 0
      %s73 = sadd.s32 %s72, 1
      %s74 = scalar_select %p71, %s72, %s73
      %p77 = pneg %p71
      %p78 = scmp.eq.s32.totalorder %s36, 1
      %p79 = por %p77, %p78
      %p80 = scmp.ne.s32.totalorder %s72, %s75
      %p81 = scmp.eq.s32.totalorder %s36, 0
      %p82 = por %p80, %p81
      %p83 = scmp.ne.s32.totalorder %s72, %s75
      %p84 = scmp.eq.s32.totalorder %s41, 1
      %p85 = por %p83, %p84
      %p86 = scmp.ne.s32.totalorder %s75, %s76
      %p87 = scmp.eq.s32.totalorder %s41, 0
      %p88 = por %p86, %p87
      %p89 = scmp.ne.s32.totalorder %s75, %s76
      %p90 = scmp.eq.s32.totalorder %s42, 1
      %p91 = por %p89, %p90
      %p93 = scmp.ne.s32.totalorder %s76, %s92
      %p94 = scmp.eq.s32.totalorder %s42, 0
      %p95 = por %p93, %p94
      %s97 = sadd.s32 %s96, 1
      %p100 = scmp.eq.s32.totalorder %s36, 1
      %p101 = scmp.ne.s32.totalorder %s96, %s98
      %p102 = scmp.eq.s32.totalorder %s36, 0
      %p103 = por %p101, %p102
      %p104 = scmp.ne.s32.totalorder %s96, %s98
      %p105 = scmp.eq.s32.totalorder %s41, 1
      %p106 = por %p104, %p105
      %p107 = scmp.ne.s32.totalorder %s98, %s99
      %p108 = scmp.eq.s32.totalorder %s41, 0
      %p109 = por %p107, %p108
      %p110 = scmp.ne.s32.totalorder %s98, %s99
      %p111 = scmp.eq.s32.totalorder %s42, 1
      %p112 = por %p110, %p111
      %p114 = scmp.ne.s32.totalorder %s99, %s113
      %p115 = scmp.eq.s32.totalorder %s42, 0
      %p116 = por %p114, %p115
      %s118 = sadd.s32 %s117, 1
      %p121 = scmp.eq.s32.totalorder %s36, 1
      %p122 = scmp.ne.s32.totalorder %s117, %s119
      %p123 = scmp.eq.s32.totalorder %s36, 0
      %p124 = por %p122, %p123
      %p125 = scmp.ne.s32.totalorder %s117, %s119
      %p126 = scmp.eq.s32.totalorder %s41, 1
      %p127 = por %p125, %p126
      %p128 = scmp.ne.s32.totalorder %s119, %s120
      %p129 = scmp.eq.s32.totalorder %s41, 0
      %p130 = por %p128, %p129
      %p131 = scmp.ne.s32.totalorder %s119, %s120
      %p132 = scmp.eq.s32.totalorder %s42, 1
      %p133 = por %p131, %p132
      %p135 = scmp.ne.s32.totalorder %s120, %s134
      %p136 = scmp.eq.s32.totalorder %s42, 0
      %p137 = por %p135, %p136
      %s139 = sadd.s32 %s138, 1
      %p142 = scmp.eq.s32.totalorder %s36, 1
      %p143 = scmp.ne.s32.totalorder %s138, %s140
      %p144 = scmp.eq.s32.totalorder %s36, 0
      %p145 = por %p143, %p144
      %p146 = scmp.ne.s32.totalorder %s138, %s140
      %p147 = scmp.eq.s32.totalorder %s41, 1
      %p148 = por %p146, %p147
      %p149 = scmp.ne.s32.totalorder %s140, %s141
      %p150 = scmp.eq.s32.totalorder %s41, 0
      %p151 = por %p149, %p150
      %p152 = scmp.ne.s32.totalorder %s140, %s141
      %p153 = scmp.eq.s32.totalorder %s42, 1
      %p154 = por %p152, %p153
      %p156 = scmp.ne.s32.totalorder %s141, %s155
      %p157 = scmp.eq.s32.totalorder %s42, 0
      %p158 = por %p156, %p157
      %s160 = sadd.s32 %s159, 1
      %p163 = scmp.eq.s32.totalorder %s36, 1
      %p164 = scmp.ne.s32.totalorder %s159, %s161
      %p165 = scmp.eq.s32.totalorder %s36, 0
      %p166 = por %p164, %p165
      %p167 = scmp.ne.s32.totalorder %s159, %s161
      %p168 = scmp.eq.s32.totalorder %s41, 1
      %p169 = por %p167, %p168
      %p170 = scmp.ne.s32.totalorder %s161, %s162
      %p171 = scmp.eq.s32.totalorder %s41, 0
      %p172 = por %p170, %p171
      %p173 = scmp.ne.s32.totalorder %s161, %s162
      %p174 = scmp.eq.s32.totalorder %s42, 1
      %p175 = por %p173, %p174
      %p177 = scmp.ne.s32.totalorder %s162, %s176
      %p178 = scmp.eq.s32.totalorder %s42, 0
      %p179 = por %p177, %p178
      %s181 = sadd.s32 %s180, 1
      %p184 = scmp.eq.s32.totalorder %s36, 1
      %p185 = scmp.ne.s32.totalorder %s180, %s182
      %p186 = scmp.eq.s32.totalorder %s36, 0
      %p187 = por %p185, %p186
      %p188 = scmp.ne.s32.totalorder %s180, %s182
      %p189 = scmp.eq.s32.totalorder %s41, 1
      %p190 = por %p188, %p189
      %p191 = scmp.ne.s32.totalorder %s182, %s183
      %p192 = scmp.eq.s32.totalorder %s41, 0
      %p193 = por %p191, %p192
      %p194 = scmp.ne.s32.totalorder %s182, %s183
      %p195 = scmp.eq.s32.totalorder %s42, 1
      %p196 = por %p194, %p195
      %p198 = scmp.ne.s32.totalorder %s183, %s197
      %p199 = scmp.eq.s32.totalorder %s42, 0
      %p200 = por %p198, %p199
      %s202 = sadd.s32 %s201, 1
      %p205 = scmp.eq.s32.totalorder %s36, 1
      %p206 = scmp.ne.s32.totalorder %s201, %s203
      %p207 = scmp.eq.s32.totalorder %s36, 0
      %p208 = por %p206, %p207
      %p209 = scmp.ne.s32.totalorder %s201, %s203
      %p210 = scmp.eq.s32.totalorder %s41, 1
      %p211 = por %p209, %p210
      %p212 = scmp.ne.s32.totalorder %s203, %s204
      %p213 = scmp.eq.s32.totalorder %s41, 0
      %p214 = por %p212, %p213
      %p215 = scmp.ne.s32.totalorder %s203, %s204
      %p216 = scmp.eq.s32.totalorder %s42, 1
      %p217 = por %p215, %p216
      %p219 = scmp.ne.s32.totalorder %s204, %s218
      %p220 = scmp.eq.s32.totalorder %s42, 0
      %p221 = por %p219, %p220
      %s223 = sadd.s32 %s222, 1
      %p226 = scmp.eq.s32.totalorder %s36, 1
      %p227 = scmp.ne.s32.totalorder %s222, %s224
      %p228 = scmp.eq.s32.totalorder %s36, 0
      %p229 = por %p227, %p228
      %p230 = scmp.ne.s32.totalorder %s222, %s224
      %p231 = scmp.eq.s32.totalorder %s41, 1
      %p232 = por %p230, %p231
      %p233 = scmp.ne.s32.totalorder %s224, %s225
      %p234 = scmp.eq.s32.totalorder %s41, 0
      %p235 = por %p233, %p234
      %p236 = scmp.ne.s32.totalorder %s224, %s225
      %p237 = scmp.eq.s32.totalorder %s42, 1
      %p238 = por %p236, %p237
      %p240 = scmp.ne.s32.totalorder %s225, %s239
      %p241 = scmp.eq.s32.totalorder %s42, 0
      %p242 = por %p240, %p241
      %s244 = sadd.s32 %s243, 1
      %p247 = scmp.eq.s32.totalorder %s36, 1
      %p248 = scmp.ne.s32.totalorder %s243, %s245
      %p249 = scmp.eq.s32.totalorder %s36, 0
      %p250 = por %p248, %p249
      %p251 = scmp.ne.s32.totalorder %s243, %s245
      %p252 = scmp.eq.s32.totalorder %s41, 1
      %p253 = por %p251, %p252
      %p254 = scmp.ne.s32.totalorder %s245, %s246
      %p255 = scmp.eq.s32.totalorder %s41, 0
      %p256 = por %p254, %p255
      %p257 = scmp.ne.s32.totalorder %s245, %s246
      %p258 = scmp.eq.s32.totalorder %s42, 1
      %p259 = por %p257, %p258
      %p261 = scmp.ne.s32.totalorder %s246, %s260
      %p262 = scmp.eq.s32.totalorder %s42, 0
      %p263 = por %p261, %p262
      %s265 = sadd.s32 %s264, 1
      %p268 = scmp.eq.s32.totalorder %s36, 1
      %p269 = scmp.ne.s32.totalorder %s264, %s266
      %p270 = scmp.eq.s32.totalorder %s36, 0
      %p271 = por %p269, %p270
      %p272 = scmp.ne.s32.totalorder %s264, %s266
      %p273 = scmp.eq.s32.totalorder %s41, 1
      %p274 = por %p272, %p273
      %p275 = scmp.ne.s32.totalorder %s266, %s267
      %p276 = scmp.eq.s32.totalorder %s41, 0
      %p277 = por %p275, %p276
      %p278 = scmp.ne.s32.totalorder %s266, %s267
      %p279 = scmp.eq.s32.totalorder %s42, 1
      %p280 = por %p278, %p279
      %p282 = scmp.ne.s32.totalorder %s267, %s281
      %p283 = scmp.eq.s32.totalorder %s42, 0
      %p284 = por %p282, %p283
      %s286 = sadd.s32 %s285, 1
      %p289 = scmp.eq.s32.totalorder %s36, 1
      %p290 = scmp.ne.s32.totalorder %s285, %s287
      %p291 = scmp.eq.s32.totalorder %s36, 0
      %p292 = por %p290, %p291
      %p293 = scmp.ne.s32.totalorder %s285, %s287
      %p294 = scmp.eq.s32.totalorder %s41, 1
      %p295 = por %p293, %p294
      %p296 = scmp.ne.s32.totalorder %s287, %s288
      %p297 = scmp.eq.s32.totalorder %s41, 0
      %p298 = por %p296, %p297
      %p299 = scmp.ne.s32.totalorder %s287, %s288
      %p300 = scmp.eq.s32.totalorder %s42, 1
      %p301 = por %p299, %p300
      %p303 = scmp.ne.s32.totalorder %s288, %s302
      %p304 = scmp.eq.s32.totalorder %s42, 0
      %p305 = por %p303, %p304
      %s307 = sadd.s32 %s306, 1
      %p310 = scmp.eq.s32.totalorder %s36, 1
      %p311 = scmp.ne.s32.totalorder %s306, %s308
      %p312 = scmp.eq.s32.totalorder %s36, 0
      %p313 = por %p311, %p312
      %p314 = scmp.ne.s32.totalorder %s306, %s308
      %p315 = scmp.eq.s32.totalorder %s41, 1
      %p316 = por %p314, %p315
      %p317 = scmp.ne.s32.totalorder %s308, %s309
      %p318 = scmp.eq.s32.totalorder %s41, 0
      %p319 = por %p317, %p318
      %p320 = scmp.ne.s32.totalorder %s308, %s309
      %p321 = scmp.eq.s32.totalorder %s42, 1
      %p322 = por %p320, %p321
      %p324 = scmp.ne.s32.totalorder %s309, %s323
      %p325 = scmp.eq.s32.totalorder %s42, 0
      %p326 = por %p324, %p325
      %s328 = sadd.s32 %s327, 1
      %p331 = scmp.eq.s32.totalorder %s36, 1
      %p332 = scmp.ne.s32.totalorder %s327, %s329
      %p333 = scmp.eq.s32.totalorder %s36, 0
      %p334 = por %p332, %p333
      %p335 = scmp.ne.s32.totalorder %s327, %s329
      %p336 = scmp.eq.s32.totalorder %s41, 1
      %p337 = por %p335, %p336
      %p338 = scmp.ne.s32.totalorder %s329, %s330
      %p339 = scmp.eq.s32.totalorder %s41, 0
      %p340 = por %p338, %p339
      %p341 = scmp.ne.s32.totalorder %s329, %s330
      %p342 = scmp.eq.s32.totalorder %s42, 1
      %p343 = por %p341, %p342
      %p345 = scmp.ne.s32.totalorder %s330, %s344
      %p346 = scmp.eq.s32.totalorder %s42, 0
      %p347 = por %p345, %p346
      %s349 = sadd.s32 %s348, 1
      %p352 = scmp.eq.s32.totalorder %s36, 1
      %p353 = scmp.ne.s32.totalorder %s348, %s350
      %p354 = scmp.eq.s32.totalorder %s36, 0
      %p355 = por %p353, %p354
      %p356 = scmp.ne.s32.totalorder %s348, %s350
      %p357 = scmp.eq.s32.totalorder %s41, 1
      %p358 = por %p356, %p357
      %p359 = scmp.ne.s32.totalorder %s350, %s351
      %p360 = scmp.eq.s32.totalorder %s41, 0
      %p361 = por %p359, %p360
      %p362 = scmp.ne.s32.totalorder %s350, %s351
      %p363 = scmp.eq.s32.totalorder %s42, 1
      %p364 = por %p362, %p363
      %p366 = scmp.ne.s32.totalorder %s351, %s365
      %p367 = scmp.eq.s32.totalorder %s42, 0
      %p368 = por %p366, %p367
      %s370 = sadd.s32 %s369, 1
      %p373 = scmp.eq.s32.totalorder %s36, 1
      %p374 = scmp.ne.s32.totalorder %s369, %s371
      %p375 = scmp.eq.s32.totalorder %s36, 0
      %p376 = por %p374, %p375
      %p377 = scmp.ne.s32.totalorder %s369, %s371
      %p378 = scmp.eq.s32.totalorder %s41, 1
      %p379 = por %p377, %p378
      %p380 = scmp.ne.s32.totalorder %s371, %s372
      %p381 = scmp.eq.s32.totalorder %s41, 0
      %p382 = por %p380, %p381
      %p383 = scmp.ne.s32.totalorder %s371, %s372
      %p384 = scmp.eq.s32.totalorder %s42, 1
      %p385 = por %p383, %p384
      %p387 = scmp.ne.s32.totalorder %s372, %s386
      %p388 = scmp.eq.s32.totalorder %s42, 0
      %p389 = por %p387, %p388
      %s391 = sadd.s32 %s390, 1
      %p394 = scmp.eq.s32.totalorder %s36, 1
      %p395 = scmp.ne.s32.totalorder %s390, %s392
      %p396 = scmp.eq.s32.totalorder %s36, 0
      %p397 = por %p395, %p396
      %p398 = scmp.ne.s32.totalorder %s390, %s392
      %p399 = scmp.eq.s32.totalorder %s41, 1
      %p400 = por %p398, %p399
      %p401 = scmp.ne.s32.totalorder %s392, %s393
      %p402 = scmp.eq.s32.totalorder %s41, 0
      %p403 = por %p401, %p402
      %p404 = scmp.ne.s32.totalorder %s392, %s393
      %p405 = scmp.eq.s32.totalorder %s42, 1
      %p406 = por %p404, %p405
      %p408 = scmp.ne.s32.totalorder %s393, %s407
      %p409 = scmp.eq.s32.totalorder %s42, 0
      %p410 = por %p408, %p409
      %s412 = sadd.s32 %s411, 1
      %p415 = scmp.eq.s32.totalorder %s36, 1
      %p416 = scmp.ne.s32.totalorder %s411, %s413
      %p417 = scmp.eq.s32.totalorder %s36, 0
      %p418 = por %p416, %p417
      %p419 = scmp.ne.s32.totalorder %s411, %s413
      %p420 = scmp.eq.s32.totalorder %s41, 1
      %p421 = por %p419, %p420
      %p422 = scmp.ne.s32.totalorder %s413, %s414
      %p423 = scmp.eq.s32.totalorder %s41, 0
      %p424 = por %p422, %p423
      %p425 = scmp.ne.s32.totalorder %s413, %s414
      %p426 = scmp.eq.s32.totalorder %s42, 1
      %p427 = por %p425, %p426
      %p429 = scmp.ne.s32.totalorder %s414, %s428
      %p430 = scmp.eq.s32.totalorder %s42, 0
      %p431 = por %p429, %p430
      %s433 = sadd.s32 %s432, 1
      %p436 = scmp.eq.s32.totalorder %s36, 1
      %p437 = scmp.ne.s32.totalorder %s432, %s434
      %p438 = scmp.eq.s32.totalorder %s36, 0
      %p439 = por %p437, %p438
      %p440 = scmp.ne.s32.totalorder %s432, %s434
      %p441 = scmp.eq.s32.totalorder %s41, 1
      %p442 = por %p440, %p441
      %p443 = scmp.ne.s32.totalorder %s434, %s435
      %p444 = scmp.eq.s32.totalorder %s41, 0
      %p445 = por %p443, %p444
      %p446 = scmp.ne.s32.totalorder %s434, %s435
      %p447 = scmp.eq.s32.totalorder %s42, 1
      %p448 = por %p446, %p447
      %p450 = scmp.ne.s32.totalorder %s435, %s449
      %p451 = scmp.eq.s32.totalorder %s42, 0
      %p452 = por %p450, %p451
      %s454 = sadd.s32 %s453, 1
      %p457 = scmp.eq.s32.totalorder %s36, 1
      %p458 = scmp.ne.s32.totalorder %s453, %s455
      %p459 = scmp.eq.s32.totalorder %s36, 0
      %p460 = por %p458, %p459
      %p461 = scmp.ne.s32.totalorder %s453, %s455
      %p462 = scmp.eq.s32.totalorder %s41, 1
      %p463 = por %p461, %p462
      %p464 = scmp.ne.s32.totalorder %s455, %s456
      %p465 = scmp.eq.s32.totalorder %s41, 0
      %p466 = por %p464, %p465
      %p467 = scmp.ne.s32.totalorder %s455, %s456
      %p468 = scmp.eq.s32.totalorder %s42, 1
      %p469 = por %p467, %p468
      %p471 = scmp.ne.s32.totalorder %s456, %s470
      %p472 = scmp.eq.s32.totalorder %s42, 0
      %p473 = por %p471, %p472
      %s475 = sadd.s32 %s474, 1
      %p478 = scmp.eq.s32.totalorder %s36, 1
      %p479 = scmp.ne.s32.totalorder %s474, %s476
      %p480 = scmp.eq.s32.totalorder %s36, 0
      %p481 = por %p479, %p480
      %p482 = scmp.ne.s32.totalorder %s474, %s476
      %p483 = scmp.eq.s32.totalorder %s41, 1
      %p484 = por %p482, %p483
      %p485 = scmp.ne.s32.totalorder %s476, %s477
      %p486 = scmp.eq.s32.totalorder %s41, 0
      %p487 = por %p485, %p486
      %p488 = scmp.ne.s32.totalorder %s476, %s477
      %p489 = scmp.eq.s32.totalorder %s42, 1
      %p490 = por %p488, %p489
      %p492 = scmp.ne.s32.totalorder %s477, %s491
      %p493 = scmp.eq.s32.totalorder %s42, 0
      %p494 = por %p492, %p493
      %s496 = sadd.s32 %s495, 1
      %p499 = scmp.eq.s32.totalorder %s36, 1
      %p500 = scmp.ne.s32.totalorder %s495, %s497
      %p501 = scmp.eq.s32.totalorder %s36, 0
      %p502 = por %p500, %p501
      %p503 = scmp.ne.s32.totalorder %s495, %s497
      %p504 = scmp.eq.s32.totalorder %s41, 1
      %p505 = por %p503, %p504
      %p506 = scmp.ne.s32.totalorder %s497, %s498
      %p507 = scmp.eq.s32.totalorder %s41, 0
      %p508 = por %p506, %p507
      %p509 = scmp.ne.s32.totalorder %s497, %s498
      %p510 = scmp.eq.s32.totalorder %s42, 1
      %p511 = por %p509, %p510
      %p513 = scmp.ne.s32.totalorder %s498, %s512
      %p514 = scmp.eq.s32.totalorder %s42, 0
      %p515 = por %p513, %p514
      %s517 = sadd.s32 %s516, 1
      %p520 = scmp.eq.s32.totalorder %s36, 1
      %p521 = scmp.ne.s32.totalorder %s516, %s518
      %p522 = scmp.eq.s32.totalorder %s36, 0
      %p523 = por %p521, %p522
      %p524 = scmp.ne.s32.totalorder %s516, %s518
      %p525 = scmp.eq.s32.totalorder %s41, 1
      %p526 = por %p524, %p525
      %p527 = scmp.ne.s32.totalorder %s518, %s519
      %p528 = scmp.eq.s32.totalorder %s41, 0
      %p529 = por %p527, %p528
      %p530 = scmp.ne.s32.totalorder %s518, %s519
      %p531 = scmp.eq.s32.totalorder %s42, 1
      %p532 = por %p530, %p531
      %p534 = scmp.ne.s32.totalorder %s519, %s533
      %p535 = scmp.eq.s32.totalorder %s42, 0
      %p536 = por %p534, %p535
      %s538 = sadd.s32 %s537, 1
      %p541 = scmp.eq.s32.totalorder %s36, 1
      %p542 = scmp.ne.s32.totalorder %s537, %s539
      %p543 = scmp.eq.s32.totalorder %s36, 0
      %p544 = por %p542, %p543
      %p545 = scmp.ne.s32.totalorder %s537, %s539
      %p546 = scmp.eq.s32.totalorder %s41, 1
      %p547 = por %p545, %p546
      %p548 = scmp.ne.s32.totalorder %s539, %s540
      %p549 = scmp.eq.s32.totalorder %s41, 0
      %p550 = por %p548, %p549
      %p551 = scmp.ne.s32.totalorder %s539, %s540
      %p552 = scmp.eq.s32.totalorder %s42, 1
      %p553 = por %p551, %p552
      %p555 = scmp.ne.s32.totalorder %s540, %s554
      %p556 = scmp.eq.s32.totalorder %s42, 0
      %p557 = por %p555, %p556
      %s559 = sadd.s32 %s558, 1
      %p562 = scmp.eq.s32.totalorder %s36, 1
      %p563 = scmp.ne.s32.totalorder %s558, %s560
      %p564 = scmp.eq.s32.totalorder %s36, 0
      %p565 = por %p563, %p564
      %p566 = scmp.ne.s32.totalorder %s558, %s560
      %p567 = scmp.eq.s32.totalorder %s41, 1
      %p568 = por %p566, %p567
      %p569 = scmp.ne.s32.totalorder %s560, %s561
      %p570 = scmp.eq.s32.totalorder %s41, 0
      %p571 = por %p569, %p570
      %p572 = scmp.ne.s32.totalorder %s560, %s561
      %p573 = scmp.eq.s32.totalorder %s42, 1
      %p574 = por %p572, %p573
      %p576 = scmp.ne.s32.totalorder %s561, %s575
      %p577 = scmp.eq.s32.totalorder %s42, 0
      %p578 = por %p576, %p577
      %s580 = sadd.s32 %s579, 1
      %p583 = scmp.eq.s32.totalorder %s36, 1
      %p584 = scmp.ne.s32.totalorder %s579, %s581
      %p585 = scmp.eq.s32.totalorder %s36, 0
      %p586 = por %p584, %p585
      %p587 = scmp.ne.s32.totalorder %s579, %s581
      %p588 = scmp.eq.s32.totalorder %s41, 1
      %p589 = por %p587, %p588
      %p590 = scmp.ne.s32.totalorder %s581, %s582
      %p591 = scmp.eq.s32.totalorder %s41, 0
      %p592 = por %p590, %p591
      %p593 = scmp.ne.s32.totalorder %s581, %s582
      %p594 = scmp.eq.s32.totalorder %s42, 1
      %p595 = por %p593, %p594
      %p597 = scmp.ne.s32.totalorder %s582, %s596
      %p598 = scmp.eq.s32.totalorder %s42, 0
      %p599 = por %p597, %p598
      %s601 = sadd.s32 %s600, 1
      %p604 = scmp.eq.s32.totalorder %s36, 1
      %p605 = scmp.ne.s32.totalorder %s600, %s602
      %p606 = scmp.eq.s32.totalorder %s36, 0
      %p607 = por %p605, %p606
      %p608 = scmp.ne.s32.totalorder %s600, %s602
      %p609 = scmp.eq.s32.totalorder %s41, 1
      %p610 = por %p608, %p609
      %p611 = scmp.ne.s32.totalorder %s602, %s603
      %p612 = scmp.eq.s32.totalorder %s41, 0
      %p613 = por %p611, %p612
      %p614 = scmp.ne.s32.totalorder %s602, %s603
      %p615 = scmp.eq.s32.totalorder %s42, 1
      %p616 = por %p614, %p615
      %p618 = scmp.ne.s32.totalorder %s603, %s617
      %p619 = scmp.eq.s32.totalorder %s42, 0
      %p620 = por %p618, %p619
      %s621 = ssub.s32 %s36, %s43
      %p622 = scmp.eq.s32.totalorder %s621, 0
      %s624 = sadd.s32 %s623, 1
      %s625 = scalar_select %p622, %s623, %s624
      %p628 = pneg %p622
      %p629 = scmp.eq.s32.totalorder %s36, 1
      %p630 = por %p628, %p629
      %p631 = scmp.ne.s32.totalorder %s623, %s626
      %p632 = scmp.eq.s32.totalorder %s36, 0
      %p633 = por %p631, %p632
      %p634 = scmp.ne.s32.totalorder %s623, %s626
      %p635 = scmp.eq.s32.totalorder %s41, 1
      %p636 = por %p634, %p635
      %p637 = scmp.ne.s32.totalorder %s626, %s627
      %p638 = scmp.eq.s32.totalorder %s41, 0
      %p639 = por %p637, %p638
      %p640 = scmp.ne.s32.totalorder %s626, %s627
      %p641 = scmp.eq.s32.totalorder %s42, 1
      %p642 = por %p640, %p641
      %p644 = scmp.ne.s32.totalorder %s627, %s643
      %p645 = scmp.eq.s32.totalorder %s42, 0
      %p646 = por %p644, %p645
      %p647 = scmp.le.s32.totalorder 1, %s36
      %p648 = scmp.lt.s32.totalorder %s36, 3
      %p649 = pnand %p647, %p648
      %p650 = pneg %p649
      // Predicated region
      $region9: #{forward_core.1} parent=5 // pred_check
        _
      $region10: #{forward_core.1} parent=5 // pred_check_branch
        %652 = sbr.rel (%p649) target = $region12
      $region11: #{forward_core.1} parent=5 // pred_region
        %s653 = ssub.s32 %s36, 1
        // Predicated region
        $region13: #{forward_core.1} parent=11 // pred_check
          %p654 = pneg %p109
        $region14: #{forward_core.1} parent=11 // pred_check_branch
          %656 = sbr.rel (%p654) target = $region16
        $region15: #{forward_core.1} parent=11 // pred_region
          _
        $region16: #{forward_core.1} parent=11 // pred_fallthru
          _
        // Predicated region
        $region17: #{forward_core.1} parent=11 // pred_check
          %p657 = pneg %p130
        $region18: #{forward_core.1} parent=11 // pred_check_branch
          %659 = sbr.rel (%p657) target = $region20
        $region19: #{forward_core.1} parent=11 // pred_region
          _
        $region20: #{forward_core.1} parent=11 // pred_fallthru
          _
        // Predicated region
        $region21: #{forward_core.1} parent=11 // pred_check
          %p660 = pneg %p151
        $region22: #{forward_core.1} parent=11 // pred_check_branch
          %662 = sbr.rel (%p660) target = $region24
        $region23: #{forward_core.1} parent=11 // pred_region
          _
        $region24: #{forward_core.1} parent=11 // pred_fallthru
          _
        // Predicated region
        $region25: #{forward_core.1} parent=11 // pred_check
          %p663 = pneg %p172
        $region26: #{forward_core.1} parent=11 // pred_check_branch
          %665 = sbr.rel (%p663) target = $region28
        $region27: #{forward_core.1} parent=11 // pred_region
          _
        $region28: #{forward_core.1} parent=11 // pred_fallthru
          _
        // Predicated region
        $region29: #{forward_core.1} parent=11 // pred_check
          %p666 = pneg %p193
        $region30: #{forward_core.1} parent=11 // pred_check_branch
          %668 = sbr.rel (%p666) target = $region32
        $region31: #{forward_core.1} parent=11 // pred_region
          _
        $region32: #{forward_core.1} parent=11 // pred_fallthru
          _
        // Predicated region
        $region33: #{forward_core.1} parent=11 // pred_check
          %p669 = pneg %p214
        $region34: #{forward_core.1} parent=11 // pred_check_branch
          %671 = sbr.rel (%p669) target = $region36
        $region35: #{forward_core.1} parent=11 // pred_region
          _
        $region36: #{forward_core.1} parent=11 // pred_fallthru
          _
        // Predicated region
        $region37: #{forward_core.1} parent=11 // pred_check
          %p672 = pneg %p235
        $region38: #{forward_core.1} parent=11 // pred_check_branch
          %674 = sbr.rel (%p672) target = $region40
        $region39: #{forward_core.1} parent=11 // pred_region
          _
        $region40: #{forward_core.1} parent=11 // pred_fallthru
          _
        // Predicated region
        $region41: #{forward_core.1} parent=11 // pred_check
          %p675 = pneg %p256
        $region42: #{forward_core.1} parent=11 // pred_check_branch
          %677 = sbr.rel (%p675) target = $region44
        $region43: #{forward_core.1} parent=11 // pred_region
          _
        $region44: #{forward_core.1} parent=11 // pred_fallthru
          _
        // Predicated region
        $region45: #{forward_core.1} parent=11 // pred_check
          %p678 = pneg %p277
        $region46: #{forward_core.1} parent=11 // pred_check_branch
          %680 = sbr.rel (%p678) target = $region48
        $region47: #{forward_core.1} parent=11 // pred_region
          _
        $region48: #{forward_core.1} parent=11 // pred_fallthru
          _
        // Predicated region
        $region49: #{forward_core.1} parent=11 // pred_check
          %p681 = pneg %p298
        $region50: #{forward_core.1} parent=11 // pred_check_branch
          %683 = sbr.rel (%p681) target = $region52
        $region51: #{forward_core.1} parent=11 // pred_region
          _
        $region52: #{forward_core.1} parent=11 // pred_fallthru
          _
        // Predicated region
        $region53: #{forward_core.1} parent=11 // pred_check
          %p684 = pneg %p319
        $region54: #{forward_core.1} parent=11 // pred_check_branch
          %686 = sbr.rel (%p684) target = $region56
        $region55: #{forward_core.1} parent=11 // pred_region
          _
        $region56: #{forward_core.1} parent=11 // pred_fallthru
          _
        // Predicated region
        $region57: #{forward_core.1} parent=11 // pred_check
          %p687 = pneg %p340
        $region58: #{forward_core.1} parent=11 // pred_check_branch
          %689 = sbr.rel (%p687) target = $region60
        $region59: #{forward_core.1} parent=11 // pred_region
          _
        $region60: #{forward_core.1} parent=11 // pred_fallthru
          _
        // Predicated region
        $region61: #{forward_core.1} parent=11 // pred_check
          %p690 = pneg %p361
        $region62: #{forward_core.1} parent=11 // pred_check_branch
          %692 = sbr.rel (%p690) target = $region64
        $region63: #{forward_core.1} parent=11 // pred_region
          _
        $region64: #{forward_core.1} parent=11 // pred_fallthru
          _
        // Predicated region
        $region65: #{forward_core.1} parent=11 // pred_check
          %p693 = pneg %p382
        $region66: #{forward_core.1} parent=11 // pred_check_branch
          %695 = sbr.rel (%p693) target = $region68
        $region67: #{forward_core.1} parent=11 // pred_region
          _
        $region68: #{forward_core.1} parent=11 // pred_fallthru
          _
        // Predicated region
        $region69: #{forward_core.1} parent=11 // pred_check
          %p696 = pneg %p403
        $region70: #{forward_core.1} parent=11 // pred_check_branch
          %698 = sbr.rel (%p696) target = $region72
        $region71: #{forward_core.1} parent=11 // pred_region
          _
        $region72: #{forward_core.1} parent=11 // pred_fallthru
          _
        // Predicated region
        $region73: #{forward_core.1} parent=11 // pred_check
          %p699 = pneg %p424
        $region74: #{forward_core.1} parent=11 // pred_check_branch
          %701 = sbr.rel (%p699) target = $region76
        $region75: #{forward_core.1} parent=11 // pred_region
          _
        $region76: #{forward_core.1} parent=11 // pred_fallthru
          _
        // Predicated region
        $region77: #{forward_core.1} parent=11 // pred_check
          %p702 = pneg %p445
        $region78: #{forward_core.1} parent=11 // pred_check_branch
          %704 = sbr.rel (%p702) target = $region80
        $region79: #{forward_core.1} parent=11 // pred_region
          _
        $region80: #{forward_core.1} parent=11 // pred_fallthru
          _
        // Predicated region
        $region81: #{forward_core.1} parent=11 // pred_check
          %p705 = pneg %p466
        $region82: #{forward_core.1} parent=11 // pred_check_branch
          %707 = sbr.rel (%p705) target = $region84
        $region83: #{forward_core.1} parent=11 // pred_region
          _
        $region84: #{forward_core.1} parent=11 // pred_fallthru
          _
        // Predicated region
        $region85: #{forward_core.1} parent=11 // pred_check
          %p708 = pneg %p487
        $region86: #{forward_core.1} parent=11 // pred_check_branch
          %710 = sbr.rel (%p708) target = $region88
        $region87: #{forward_core.1} parent=11 // pred_region
          _
        $region88: #{forward_core.1} parent=11 // pred_fallthru
          _
        // Predicated region
        $region89: #{forward_core.1} parent=11 // pred_check
          %p711 = pneg %p508
        $region90: #{forward_core.1} parent=11 // pred_check_branch
          %713 = sbr.rel (%p711) target = $region92
        $region91: #{forward_core.1} parent=11 // pred_region
          _
        $region92: #{forward_core.1} parent=11 // pred_fallthru
          _
        // Predicated region
        $region93: #{forward_core.1} parent=11 // pred_check
          %p714 = pneg %p529
        $region94: #{forward_core.1} parent=11 // pred_check_branch
          %716 = sbr.rel (%p714) target = $region96
        $region95: #{forward_core.1} parent=11 // pred_region
          _
        $region96: #{forward_core.1} parent=11 // pred_fallthru
          _
        // Predicated region
        $region97: #{forward_core.1} parent=11 // pred_check
          %p717 = pneg %p550
        $region98: #{forward_core.1} parent=11 // pred_check_branch
          %719 = sbr.rel (%p717) target = $region100
        $region99: #{forward_core.1} parent=11 // pred_region
          _
        $region100: #{forward_core.1} parent=11 // pred_fallthru
          _
        // Predicated region
        $region101: #{forward_core.1} parent=11 // pred_check
          %p720 = pneg %p571
        $region102: #{forward_core.1} parent=11 // pred_check_branch
          %722 = sbr.rel (%p720) target = $region104
        $region103: #{forward_core.1} parent=11 // pred_region
          _
        $region104: #{forward_core.1} parent=11 // pred_fallthru
          _
        // Predicated region
        $region105: #{forward_core.1} parent=11 // pred_check
          %p723 = pneg %p592
        $region106: #{forward_core.1} parent=11 // pred_check_branch
          %725 = sbr.rel (%p723) target = $region108
        $region107: #{forward_core.1} parent=11 // pred_region
          _
        $region108: #{forward_core.1} parent=11 // pred_fallthru
          _
        // Predicated region
        $region109: #{forward_core.1} parent=11 // pred_check
          %p726 = pneg %p613
        $region110: #{forward_core.1} parent=11 // pred_check_branch
          %728 = sbr.rel (%p726) target = $region112
        $region111: #{forward_core.1} parent=11 // pred_region
          _
        $region112: #{forward_core.1} parent=11 // pred_fallthru
          _
      $region12: #{forward_core.1} parent=5 // pred_fallthru
        _
      %p729 = scmp.lt.s32.totalorder %s36, 2
      // Predicated region
      $region113: #{forward_core.1} parent=5 // pred_check
        %p730 = pneg %p729
      $region114: #{forward_core.1} parent=5 // pred_check_branch
        %732 = sbr.rel (%p730) target = $region116
      $region115: #{forward_core.1} parent=5 // pred_region
        // Predicated region
        $region117: #{forward_core.1} parent=115 // pred_check
          %p733 = pneg %p56
        $region118: #{forward_core.1} parent=115 // pred_check_branch
          %735 = sbr.rel (%p733) target = $region120
        $region119: #{forward_core.1} parent=115 // pred_region
          %p736 = scmp.lt.s32.totalorder %s36, 1
          %s737 = scalar_select %p736, %s36, 1
          %s738 = smul.addr %s737, 8
          %s739 = scalar_lea.vmem %s0, %s738
        $region120: #{forward_core.1} parent=115 // pred_fallthru
          _
        // Predicated region
        $region121: #{forward_core.1} parent=115 // pred_check
          %p740 = pneg %p82
        $region122: #{forward_core.1} parent=115 // pred_check_branch
          %742 = sbr.rel (%p740) target = $region124
        $region123: #{forward_core.1} parent=115 // pred_region
          %p743 = scmp.lt.s32.totalorder %s36, 1
          %s744 = scalar_select %p743, %s36, 1
          %s745 = scalar_lea.vmem %s1, %s744
        $region124: #{forward_core.1} parent=115 // pred_fallthru
          _
      $region116: #{forward_core.1} parent=5 // pred_fallthru
        _
      %p746 = scmp.le.s32.totalorder 1, %s36
      %p747 = scmp.lt.s32.totalorder %s36, 3
      %p748 = pnand %p746, %p747
      %p749 = pneg %p748
      // Predicated region
      $region125: #{forward_core.1} parent=5 // pred_check
        _
      $region126: #{forward_core.1} parent=5 // pred_check_branch
        %751 = sbr.rel (%p748) target = $region128
      $region127: #{forward_core.1} parent=5 // pred_region
        %s752 = ssub.s32 %s36, 1
        %p753 = scmp.lt.s32.totalorder %s41, 1
        %s754 = scalar_select %p753, %s41, 1
        %s755 = smul.addr %s754, 8
        %s756 = scalar_lea.vmem %s0, %s755
        %p757 = pneg %p62
        %p758 = pneg %p59
        %p759 = scmp.lt.s32.totalorder %s41, 1
        %s760 = scalar_select %p759, %s41, 1
        %s761 = scalar_lea.vmem %s1, %s760
        %p762 = pneg %p88
        %p763 = pneg %p85
        %p764 = pneg %p109
        %p765 = pneg %p106
        %p766 = pneg %p130
        %p767 = pneg %p127
        %p768 = pneg %p151
        %p769 = pneg %p148
        %p770 = pneg %p172
        %p771 = pneg %p169
        %p772 = pneg %p193
        %p773 = pneg %p190
        %p774 = pneg %p214
        %p775 = pneg %p211
        %p776 = pneg %p235
        %p777 = pneg %p232
        %p778 = pneg %p256
        %p779 = pneg %p253
        %p780 = pneg %p277
        %p781 = pneg %p274
        %p782 = pneg %p298
        %p783 = pneg %p295
        %p784 = pneg %p319
        %p785 = pneg %p316
        %p786 = pneg %p340
        %p787 = pneg %p337
        %p788 = pneg %p361
        %p789 = pneg %p358
        %p790 = pneg %p382
        %p791 = pneg %p379
        %p792 = pneg %p403
        %p793 = pneg %p400
        %p794 = pneg %p424
        %p795 = pneg %p421
        %p796 = pneg %p445
        %p797 = pneg %p442
        %p798 = pneg %p466
        %p799 = pneg %p463
        %p800 = pneg %p487
        %p801 = pneg %p484
        %p802 = pneg %p508
        %p803 = pneg %p505
        %p804 = pneg %p529
        %p805 = pneg %p526
        %p806 = pneg %p550
        %p807 = pneg %p547
        %p808 = pneg %p571
        %p809 = pneg %p568
        %p810 = pneg %p592
        %p811 = pneg %p589
        %p812 = pneg %p613
        %p813 = pneg %p610
        %p814 = pneg %p639
        %p815 = pneg %p636
        %s816 = sand.u32 %s626, 1
        %s817 = scalar_lea.sflag [#allocation5], %s816
        %s818 = sand.u32 %s626, 1
        %s819 = scalar_lea.vmem [#allocation4], %s818
        %p820 = scmp.lt.s32.totalorder %s41, 1
        %s821 = scalar_select %p820, %s41, 1
        %s822 = smul.addr %s821, 8
        %s823 = scalar_lea.vmem %s0, %s822
        %p824 = scmp.lt.s32.totalorder %s41, 1
        %s825 = scalar_select %p824, %s41, 1
        %s826 = scalar_lea.vmem %s1, %s825
        %v828 = vld [vmem:[%s823] sm:$0xff]
        %v829 = vld [vmem:[%s826] sm:$0x1]
        %vm830 = vcmask 261120
        %v831 = vsel %vm830, %v828, 0.0
        %832 = vadd.xlane.f32.xlu0 %v831
        %v833 = vpop.xlane.xlu0 %832
        %v834 = vrcp.pop 32.0
        %v835 = vmul.f32 %v833, %v834
        %v836 = vsub.f32 %v828, %v835
        %v837 = vmul.f32 %v836, %v836
        %v838 = vsel %vm830, %v837, 0.0
        %839 = vadd.xlane.f32.xlu0 %v838
        %v840 = vpop.xlane.xlu0 %839
        %v841 = vmul.f32 %v840, %v834
        %v842 = vadd.f32 %v841, 1e-12
        %v843 = vrsqrt.pop %v842
        %v844 = vmul.f32 %v836, %v843
        %v845 = vld [vmem:[%s2] sm:$0x1]
        %v847 = vlaneseq
        %v848 = vshrl.u32 %v847, 7
        %v849 = vsub.s32 0, %v848
        %v850 = vrot.slane %v845, %v849
        %v852 = vmul.f32 %v844, %v850
        %v853 = vld [vmem:[%s3] sm:$0x1]
        %v855 = vlaneseq
        %v856 = vshrl.u32 %v855, 7
        %v857 = vsub.s32 0, %v856
        %v858 = vrot.slane %v853, %v857
        %v860 = vadd.f32 %v852, %v858
        %v861 = vpack.c.bf16 %v860, %v860
        %v862 = vld [vmem:[%s4] sm:$0xf]
        %v863 = vld [vmem:[%s4 + $0x4] sm:$0xf]
        %v864 = vld [vmem:[%s4 + $0x8] sm:$0xf]
        %v865 = vld [vmem:[%s4 + $0xc] sm:$0xf]
        %v866 = vld [vmem:[%s5] sm:$0x1]
        %v868 = vlaneseq
        %v869 = vshrl.u32 %v868, 7
        %v870 = vsub.s32 0, %v869
        %v871 = vrot.slane %v866, %v870
        %v877 = vunpack.c.l.b16 %v862
        %v878 = vunpack.c.l.b16 %v863
        %v879 = vunpack.c.l.b16 %v864
        %v880 = vunpack.c.l.b16 %v865
        %v881 = vpack.c.b16 %v878, %v877
        %v882 = vpack.c.b16 %v880, %v879
        %v886 = vsel %vm830, %v861, 0
        %888 = vmatprep.subr.bf16.mxu0 0
        %889 = vmatpush1.bf16.msra.mxu0 %v881
        %890 = vmatprep.subr.bf16.mxu0 0
        %891 = vmatpush1.bf16.msra.mxu0 %v882
        %892 = vmatprep.subr.bf16.mxu0 0
        %893 = vmatpush1.bf16.msra.mxu0 0
        %894 = vmatprep.subr.bf16.mxu0 0
        %895 = vmatpush1.bf16.msra.mxu0 0
        %896 = vmatprep.subr.bf16.mxu0 0
        %897 = vmatpush1.bf16.msra.mxu0 0
        %898 = vmatprep.subr.bf16.mxu0 0
        %899 = vmatpush1.bf16.msra.mxu0 0
        %900 = vmatprep.subr.bf16.mxu0 0
        %901 = vmatpush1.bf16.msra.mxu0 0
        %902 = vmatprep.subr.bf16.mxu0 0
        %903 = vmatpush1.bf16.msra.mxu0 0
        %904 = vmatprep.subr.bf16.mxu0 0
        %905 = vmatpush1.bf16.msra.mxu0 0
        %906 = vmatprep.subr.bf16.mxu0 0
        %907 = vmatpush1.bf16.msra.mxu0 0
        %908 = vmatprep.subr.bf16.mxu0 0
        %909 = vmatpush1.bf16.msra.mxu0 0
        %910 = vmatprep.subr.bf16.mxu0 0
        %911 = vmatpush1.bf16.msra.mxu0 0
        %912 = vmatprep.subr.bf16.mxu0 0
        %913 = vmatpush1.bf16.msra.mxu0 0
        %914 = vmatprep.subr.bf16.mxu0 0
        %915 = vmatpush1.bf16.msra.mxu0 0
        %916 = vmatprep.subr.bf16.mxu0 0
        %917 = vmatpush1.bf16.msra.mxu0 0
        %918 = vmatprep.subr.bf16.mxu0 0
        %919 = vmatpush1.bf16.msra.mxu0 0
        %920 = vmatprep.mubr.bf16.mxu0 0
        %921 = vmatmul.mubr.bf16.gmra.mrb[0].mxu0 %v886
        %v922 = vpop.f32.mrb[0].mxu0
        %v923 = vadd.f32 %v871, %v922
        %v924 = vpop.f32.mrb[0].mxu0
        %v925 = vpop.f32.mrb[0].mxu0
        %v926 = vpop.f32.mrb[0].mxu0
        %927 = vdwg.mxu0
        %929 = vrot.lane.b32.xlu0 %v923, 120
        %v930 = vpop.permute.xlu0 %929
        %932 = vrot.lane.b32.xlu0 %v923, 112
        %v933 = vpop.permute.xlu0 %932
        %935 = vrot.lane.b32.xlu0 %v923, 104
        %v936 = vpop.permute.xlu0 %935
        %v938 = vpack.c.bf16 %v923, %v923
        %v939 = vpack.c.bf16 %v930, %v930
        %v940 = vpack.c.bf16 %v933, %v933
        %v941 = vpack.c.bf16 %v936, %v936
        %v942 = vsub.f32 1.0, %v829
        %v943 = vmul.f32 %v942, -1e+09
        %945 = vrot.lane.b32.xlu0 %v938, 96
        %v946 = vpop.permute.xlu0 %945
        %vm947 = vcmask 64512
        %v949 = vsel %vm947, %v938, 0
        %v952 = vsel %vm947, %v946, 0
        %954 = vmatprep.subr.bf16.mxu0 0
        %955 = vmatpush1.bf16.xpose.msra.mxu0 %v952
        %956 = vmatprep.subr.bf16.mxu0 0
        %957 = vmatpush1.bf16.xpose.msra.mxu0 0
        %958 = vmatprep.subr.bf16.mxu0 0
        %959 = vmatpush1.bf16.xpose.msra.mxu0 0
        %960 = vmatprep.subr.bf16.mxu0 0
        %961 = vmatpush1.bf16.xpose.msra.mxu0 0
        %962 = vmatprep.subr.bf16.mxu0 0
        %963 = vmatpush1.bf16.xpose.msra.mxu0 0
        %964 = vmatprep.subr.bf16.mxu0 0
        %965 = vmatpush1.bf16.xpose.msra.mxu0 0
        %966 = vmatprep.subr.bf16.mxu0 0
        %967 = vmatpush1.bf16.xpose.msra.mxu0 0
        %968 = vmatprep.subr.bf16.mxu0 0
        %969 = vmatpush1.bf16.xpose.msra.mxu0 0
        %970 = vmatprep.subr.bf16.mxu0 0
        %971 = vmatpush1.bf16.xpose.msra.mxu0 0
        %972 = vmatprep.subr.bf16.mxu0 0
        %973 = vmatpush1.bf16.xpose.msra.mxu0 0
        %974 = vmatprep.subr.bf16.mxu0 0
        %975 = vmatpush1.bf16.xpose.msra.mxu0 0
        %976 = vmatprep.subr.bf16.mxu0 0
        %977 = vmatpush1.bf16.xpose.msra.mxu0 0
        %978 = vmatprep.subr.bf16.mxu0 0
        %979 = vmatpush1.bf16.xpose.msra.mxu0 0
        %980 = vmatprep.subr.bf16.mxu0 0
        %981 = vmatpush1.bf16.xpose.msra.mxu0 0
        %982 = vmatprep.subr.bf16.mxu0 0
        %983 = vmatpush1.bf16.xpose.msra.mxu0 0
        %984 = vmatprep.subr.bf16.mxu0 0
        %985 = vmatpush1.bf16.xpose.msra.mxu0 0
        %986 = vmatprep.mubr.bf16.mxu0 0
        %987 = vmatmul.mubr.bf16.gmra.mrb[0].mxu0 %v949
        %v988 = vpop.f32.mrb[0].mxu0
        %v989 = vadd.f32 0.0, %v988
        %v990 = vpop.f32.mrb[0].mxu0
        %v991 = vpop.f32.mrb[0].mxu0
        %v992 = vpop.f32.mrb[0].mxu0
        %993 = vdwg.mxu0
        %995 = vrot.lane.b32.xlu0 %v939, 96
        %v996 = vpop.permute.xlu0 %995
        %v998 = vsel %vm947, %v939, 0
        %v1001 = vsel %vm947, %v996, 0
        %1003 = vmatprep.subr.bf16.mxu0 0
        %1004 = vmatpush1.bf16.xpose.msra.mxu0 %v1001
        %1005 = vmatprep.subr.bf16.mxu0 0
        %1006 = vmatpush1.bf16.xpose.msra.mxu0 0
        %1007 = vmatprep.subr.bf16.mxu0 0
        %1008 = vmatpush1.bf16.xpose.msra.mxu0 0
        %1009 = vmatprep.subr.bf16.mxu0 0
        %1010 = vmatpush1.bf16.xpose.msra.mxu0 0
        %1011 = vmatprep.subr.bf16.mxu0 0
        %1012 = vmatpush1.bf16.xpose.msra.mxu0 0
        %1013 = vmatprep.subr.bf16.mxu0 0
        %1014 = vmatpush1.bf16.xpose.msra.mxu0 0
        %1015 = vmatprep.subr.bf16.mxu0 0
        %1016 = vmatpush1.bf16.xpose.msra.mxu0 0
        %1017 = vmatprep.subr.bf16.mxu0 0
        %1018 = vmatpush1.bf16.xpose.msra.mxu0 0
        %1019 = vmatprep.subr.bf16.mxu0 0
        %1020 = vmatpush1.bf16.xpose.msra.mxu0 0
        %1021 = vmatprep.subr.bf16.mxu0 0
        %1022 = vmatpush1.bf16.xpose.msra.mxu0 0
        %1023 = vmatprep.subr.bf16.mxu0 0
        %1024 = vmatpush1.bf16.xpose.msra.mxu0 0
        %1025 = vmatprep.subr.bf16.mxu0 0
        %1026 = vmatpush1.bf16.xpose.msra.mxu0 0
        %1027 = vmatprep.subr.bf16.mxu0 0
        %1028 = vmatpush1.bf16.xpose.msra.mxu0 0
        %1029 = vmatprep.subr.bf16.mxu0 0
        %1030 = vmatpush1.bf16.xpose.msra.mxu0 0
        %1031 = vmatprep.subr.bf16.mxu0 0
        %1032 = vmatpush1.bf16.xpose.msra.mxu0 0
        %1033 = vmatprep.subr.bf16.mxu0 0
        %1034 = vmatpush1.bf16.xpose.msra.mxu0 0
        %1035 = vmatprep.mubr.bf16.mxu0 0
        %1036 = vmatmul.mubr.bf16.gmra.mrb[0].mxu0 %v998
        %v1037 = vpop.f32.mrb[0].mxu0
        %v1038 = vadd.f32 0.0, %v1037
        %v1039 = vpop.f32.mrb[0].mxu0
        %v1040 = vpop.f32.mrb[0].mxu0
        %v1041 = vpop.f32.mrb[0].mxu0
        %1042 = vdwg.mxu0
        %1044 = vrot.lane.b32.xlu0 %v940, 96
        %v1045 = vpop.permute.xlu0 %1044
        %v1047 = vsel %vm947, %v940, 0
        %v1050 = vsel %vm947, %v1045, 0
        %1052 = vmatprep.subr.bf16.mxu0 0
        %1053 = vmatpush1.bf16.xpose.msra.mxu0 %v1050
        %1054 = vmatprep.subr.bf16.mxu0 0
        %1055 = vmatpush1.bf16.xpose.msra.mxu0 0
        %1056 = vmatprep.subr.bf16.mxu0 0
        %1057 = vmatpush1.bf16.xpose.msra.mxu0 0
        %1058 = vmatprep.subr.bf16.mxu0 0
        %1059 = vmatpush1.bf16.xpose.msra.mxu0 0
        %1060 = vmatprep.subr.bf16.mxu0 0
        %1061 = vmatpush1.bf16.xpose.msra.mxu0 0
        %1062 = vmatprep.subr.bf16.mxu0 0
        %1063 = vmatpush1.bf16.xpose.msra.mxu0 0
        %1064 = vmatprep.subr.bf16.mxu0 0
        %1065 = vmatpush1.bf16.xpose.msra.mxu0 0
        %1066 = vmatprep.subr.bf16.mxu0 0
        %1067 = vmatpush1.bf16.xpose.msra.mxu0 0
        %1068 = vmatprep.subr.bf16.mxu0 0
        %1069 = vmatpush1.bf16.xpose.msra.mxu0 0
        %1070 = vmatprep.subr.bf16.mxu0 0
        %1071 = vmatpush1.bf16.xpose.msra.mxu0 0
        %1072 = vmatprep.subr.bf16.mxu0 0
        %1073 = vmatpush1.bf16.xpose.msra.mxu0 0
        %1074 = vmatprep.subr.bf16.mxu0 0
        %1075 = vmatpush1.bf16.xpose.msra.mxu0 0
        %1076 = vmatprep.subr.bf16.mxu0 0
        %1077 = vmatpush1.bf16.xpose.msra.mxu0 0
        %1078 = vmatprep.subr.bf16.mxu0 0
        %1079 = vmatpush1.bf16.xpose.msra.mxu0 0
        %1080 = vmatprep.subr.bf16.mxu0 0
        %1081 = vmatpush1.bf16.xpose.msra.mxu0 0
        %1082 = vmatprep.subr.bf16.mxu0 0
        %1083 = vmatpush1.bf16.xpose.msra.mxu0 0
        %1084 = vmatprep.mubr.bf16.mxu0 0
        %1085 = vmatmul.mubr.bf16.gmra.mrb[0].mxu0 %v1047
        %v1086 = vpop.f32.mrb[0].mxu0
        %v1087 = vadd.f32 0.0, %v1086
        %v1088 = vpop.f32.mrb[0].mxu0
        %v1089 = vpop.f32.mrb[0].mxu0
        %v1090 = vpop.f32.mrb[0].mxu0
        %1091 = vdwg.mxu0
        %1093 = vrot.lane.b32.xlu0 %v941, 96
        %v1094 = vpop.permute.xlu0 %1093
        %v1096 = vsel %vm947, %v941, 0
        %v1099 = vsel %vm947, %v1094, 0
        %1101 = vmatprep.subr.bf16.mxu0 0
        %1102 = vmatpush1.bf16.xpose.msra.mxu0 %v1099
        %1103 = vmatprep.subr.bf16.mxu0 0
        %1104 = vmatpush1.bf16.xpose.msra.mxu0 0
        %1105 = vmatprep.subr.bf16.mxu0 0
        %1106 = vmatpush1.bf16.xpose.msra.mxu0 0
        %1107 = vmatprep.subr.bf16.mxu0 0
        %1108 = vmatpush1.bf16.xpose.msra.mxu0 0
        %1109 = vmatprep.subr.bf16.mxu0 0
        %1110 = vmatpush1.bf16.xpose.msra.mxu0 0
        %1111 = vmatprep.subr.bf16.mxu0 0
        %1112 = vmatpush1.bf16.xpose.msra.mxu0 0
        %1113 = vmatprep.subr.bf16.mxu0 0
        %1114 = vmatpush1.bf16.xpose.msra.mxu0 0
        %1115 = vmatprep.subr.bf16.mxu0 0
        %1116 = vmatpush1.bf16.xpose.msra.mxu0 0
        %1117 = vmatprep.subr.bf16.mxu0 0
        %1118 = vmatpush1.bf16.xpose.msra.mxu0 0
        %1119 = vmatprep.subr.bf16.mxu0 0
        %1120 = vmatpush1.bf16.xpose.msra.mxu0 0
        %1121 = vmatprep.subr.bf16.mxu0 0
        %1122 = vmatpush1.bf16.xpose.msra.mxu0 0
        %1123 = vmatprep.subr.bf16.mxu0 0
        %1124 = vmatpush1.bf16.xpose.msra.mxu0 0
        %1125 = vmatprep.subr.bf16.mxu0 0
        %1126 = vmatpush1.bf16.xpose.msra.mxu0 0
        %1127 = vmatprep.subr.bf16.mxu0 0
        %1128 = vmatpush1.bf16.xpose.msra.mxu0 0
        %1129 = vmatprep.subr.bf16.mxu0 0
        %1130 = vmatpush1.bf16.xpose.msra.mxu0 0
        %1131 = vmatprep.subr.bf16.mxu0 0
        %1132 = vmatpush1.bf16.xpose.msra.mxu0 0
        %1133 = vmatprep.mubr.bf16.mxu0 0
        %1134 = vmatmul.mubr.bf16.gmra.mrb[0].mxu0 %v1096
        %v1135 = vpop.f32.mrb[0].mxu0
        %v1136 = vadd.f32 0.0, %v1135
        %v1137 = vpop.f32.mrb[0].mxu0
        %v1138 = vpop.f32.mrb[0].mxu0
        %v1139 = vpop.f32.mrb[0].mxu0
        %1140 = vdwg.mxu0
        %v1141 = vmul.f32 %v989, 0.35355338
        %v1142 = vmul.f32 %v1038, 0.35355338
        %v1143 = vmul.f32 %v1087, 0.35355338
        %v1144 = vmul.f32 %v1136, 0.35355338
        %v1146 = vlaneseq
        %v1147 = vshrl.u32 %v1146, 7
        %v1148 = vsub.s32 0, %v1147
        %v1149 = vrot.slane %v943, %v1148
        %v1151 = vadd.f32 %v1141, %v1149
        %v1152 = vadd.f32 %v1142, %v1149
        %v1153 = vadd.f32 %v1143, %v1149
        %v1154 = vadd.f32 %v1144, %v1149
        %v1155 = vsel %vm947, %v1151, -inf
        %1156 = vmax.xlane.f32.xlu0 %v1155
        %v1157 = vpop.xlane.xlu0 %1156
        %v1158 = vsel %vm947, %v1152, -inf
        %1159 = vmax.xlane.f32.xlu0 %v1158
        %v1160 = vpop.xlane.xlu0 %1159
        %v1161 = vsel %vm947, %v1153, -inf
        %1162 = vmax.xlane.f32.xlu0 %v1161
        %v1163 = vpop.xlane.xlu0 %1162
        %v1164 = vsel %vm947, %v1154, -inf
        %1165 = vmax.xlane.f32.xlu0 %v1164
        %v1166 = vpop.xlane.xlu0 %1165
        %v1167 = vsub.f32 %v1151, %v1157
        %v1168 = vsub.f32 %v1152, %v1160
        %v1169 = vsub.f32 %v1153, %v1163
        %v1170 = vsub.f32 %v1154, %v1166
        %v1171 = vmul.f32 %v1167, 1.442695
        %v1172 = vpow.pop %v1171
        %v1173 = vmul.f32 %v1168, 1.442695
        %v1174 = vpow.pop %v1173
        %v1175 = vmul.f32 %v1169, 1.442695
        %v1176 = vpow.pop %v1175
        %v1177 = vmul.f32 %v1170, 1.442695
        %v1178 = vpow.pop %v1177
        %v1179 = vsel %vm947, %v1172, 0.0
        %1180 = vadd.xlane.f32.xlu0 %v1179
        %v1181 = vpop.xlane.xlu0 %1180
        %v1182 = vsel %vm947, %v1174, 0.0
        %1183 = vadd.xlane.f32.xlu0 %v1182
        %v1184 = vpop.xlane.xlu0 %1183
        %v1185 = vsel %vm947, %v1176, 0.0
        %1186 = vadd.xlane.f32.xlu0 %v1185
        %v1187 = vpop.xlane.xlu0 %1186
        %v1188 = vsel %vm947, %v1178, 0.0
        %1189 = vadd.xlane.f32.xlu0 %v1188
        %v1190 = vpop.xlane.xlu0 %1189
        %v1191 = vrcp.pop %v1181
        %v1192 = vrcp.pop %v1184
        %v1193 = vrcp.pop %v1187
        %v1194 = vrcp.pop %v1190
        %v1195 = vmul.f32 %v1172, %v1191
        %v1196 = vmul.f32 %v1174, %v1192
        %v1197 = vmul.f32 %v1176, %v1193
        %v1198 = vmul.f32 %v1178, %v1194
        %v1199 = vpack.c.bf16 %v1195, %v1195
        %v1200 = vpack.c.bf16 %v1196, %v1196
        %v1201 = vpack.c.bf16 %v1197, %v1197
        %v1202 = vpack.c.bf16 %v1198, %v1198
        %1203 = vrot.lane.b32.xlu0 %v938, 64
        %v1204 = vpop.permute.xlu0 %1203
        %v1206 = vsel %vm947, %v1199, 0
        %vm1208 = vcmask 1043456
        %v1210 = vsel %vm1208, %v1204, 0
        %1212 = vmatprep.subr.bf16.mxu0 0
        %1213 = vmatpush1.bf16.msra.mxu0 %v1210
        %1214 = vmatprep.subr.bf16.mxu0 0
        %1215 = vmatpush1.bf16.msra.mxu0 0
        %1216 = vmatprep.subr.bf16.mxu0 0
        %1217 = vmatpush1.bf16.msra.mxu0 0
        %1218 = vmatprep.subr.bf16.mxu0 0
        %1219 = vmatpush1.bf16.msra.mxu0 0
        %1220 = vmatprep.subr.bf16.mxu0 0
        %1221 = vmatpush1.bf16.msra.mxu0 0
        %1222 = vmatprep.subr.bf16.mxu0 0
        %1223 = vmatpush1.bf16.msra.mxu0 0
        %1224 = vmatprep.subr.bf16.mxu0 0
        %1225 = vmatpush1.bf16.msra.mxu0 0
        %1226 = vmatprep.subr.bf16.mxu0 0
        %1227 = vmatpush1.bf16.msra.mxu0 0
        %1228 = vmatprep.subr.bf16.mxu0 0
        %1229 = vmatpush1.bf16.msra.mxu0 0
        %1230 = vmatprep.subr.bf16.mxu0 0
        %1231 = vmatpush1.bf16.msra.mxu0 0
        %1232 = vmatprep.subr.bf16.mxu0 0
        %1233 = vmatpush1.bf16.msra.mxu0 0
        %1234 = vmatprep.subr.bf16.mxu0 0
        %1235 = vmatpush1.bf16.msra.mxu0 0
        %1236 = vmatprep.subr.bf16.mxu0 0
        %1237 = vmatpush1.bf16.msra.mxu0 0
        %1238 = vmatprep.subr.bf16.mxu0 0
        %1239 = vmatpush1.bf16.msra.mxu0 0
        %1240 = vmatprep.subr.bf16.mxu0 0
        %1241 = vmatpush1.bf16.msra.mxu0 0
        %1242 = vmatprep.subr.bf16.mxu0 0
        %1243 = vmatpush1.bf16.msra.mxu0 0
        %1244 = vmatprep.mubr.bf16.mxu0 0
        %1245 = vmatmul.mubr.bf16.gmra.mrb[0].mxu0 %v1206
        %v1246 = vpop.f32.mrb[0].mxu0
        %v1247 = vadd.f32 0.0, %v1246
        %v1248 = vpop.f32.mrb[0].mxu0
        %v1249 = vpop.f32.mrb[0].mxu0
        %v1250 = vpop.f32.mrb[0].mxu0
        %1251 = vdwg.mxu0
        %1252 = vrot.lane.b32.xlu0 %v939, 64
        %v1253 = vpop.permute.xlu0 %1252
        %v1255 = vsel %vm947, %v1200, 0
        %v1258 = vsel %vm1208, %v1253, 0
        %1260 = vmatprep.subr.bf16.mxu0 0
        %1261 = vmatpush1.bf16.msra.mxu0 %v1258
        %1262 = vmatprep.subr.bf16.mxu0 0
        %1263 = vmatpush1.bf16.msra.mxu0 0
        %1264 = vmatprep.subr.bf16.mxu0 0
        %1265 = vmatpush1.bf16.msra.mxu0 0
        %1266 = vmatprep.subr.bf16.mxu0 0
        %1267 = vmatpush1.bf16.msra.mxu0 0
        %1268 = vmatprep.subr.bf16.mxu0 0
        %1269 = vmatpush1.bf16.msra.mxu0 0
        %1270 = vmatprep.subr.bf16.mxu0 0
        %1271 = vmatpush1.bf16.msra.mxu0 0
        %1272 = vmatprep.subr.bf16.mxu0 0
        %1273 = vmatpush1.bf16.msra.mxu0 0
        %1274 = vmatprep.subr.bf16.mxu0 0
        %1275 = vmatpush1.bf16.msra.mxu0 0
        %1276 = vmatprep.subr.bf16.mxu0 0
        %1277 = vmatpush1.bf16.msra.mxu0 0
        %1278 = vmatprep.subr.bf16.mxu0 0
        %1279 = vmatpush1.bf16.msra.mxu0 0
        %1280 = vmatprep.subr.bf16.mxu0 0
        %1281 = vmatpush1.bf16.msra.mxu0 0
        %1282 = vmatprep.subr.bf16.mxu0 0
        %1283 = vmatpush1.bf16.msra.mxu0 0
        %1284 = vmatprep.subr.bf16.mxu0 0
        %1285 = vmatpush1.bf16.msra.mxu0 0
        %1286 = vmatprep.subr.bf16.mxu0 0
        %1287 = vmatpush1.bf16.msra.mxu0 0
        %1288 = vmatprep.subr.bf16.mxu0 0
        %1289 = vmatpush1.bf16.msra.mxu0 0
        %1290 = vmatprep.subr.bf16.mxu0 0
        %1291 = vmatpush1.bf16.msra.mxu0 0
        %1292 = vmatprep.mubr.bf16.mxu0 0
        %1293 = vmatmul.mubr.bf16.gmra.mrb[0].mxu0 %v1255
        %v1294 = vpop.f32.mrb[0].mxu0
        %v1295 = vadd.f32 0.0, %v1294
        %v1296 = vpop.f32.mrb[0].mxu0
        %v1297 = vpop.f32.mrb[0].mxu0
        %v1298 = vpop.f32.mrb[0].mxu0
        %1299 = vdwg.mxu0
        %1300 = vrot.lane.b32.xlu0 %v940, 64
        %v1301 = vpop.permute.xlu0 %1300
        %v1303 = vsel %vm947, %v1201, 0
        %v1306 = vsel %vm1208, %v1301, 0
        %1308 = vmatprep.subr.bf16.mxu0 0
        %1309 = vmatpush1.bf16.msra.mxu0 %v1306
        %1310 = vmatprep.subr.bf16.mxu0 0
        %1311 = vmatpush1.bf16.msra.mxu0 0
        %1312 = vmatprep.subr.bf16.mxu0 0
        %1313 = vmatpush1.bf16.msra.mxu0 0
        %1314 = vmatprep.subr.bf16.mxu0 0
        %1315 = vmatpush1.bf16.msra.mxu0 0
        %1316 = vmatprep.subr.bf16.mxu0 0
        %1317 = vmatpush1.bf16.msra.mxu0 0
        %1318 = vmatprep.subr.bf16.mxu0 0
        %1319 = vmatpush1.bf16.msra.mxu0 0
        %1320 = vmatprep.subr.bf16.mxu0 0
        %1321 = vmatpush1.bf16.msra.mxu0 0
        %1322 = vmatprep.subr.bf16.mxu0 0
        %1323 = vmatpush1.bf16.msra.mxu0 0
        %1324 = vmatprep.subr.bf16.mxu0 0
        %1325 = vmatpush1.bf16.msra.mxu0 0
        %1326 = vmatprep.subr.bf16.mxu0 0
        %1327 = vmatpush1.bf16.msra.mxu0 0
        %1328 = vmatprep.subr.bf16.mxu0 0
        %1329 = vmatpush1.bf16.msra.mxu0 0
        %1330 = vmatprep.subr.bf16.mxu0 0
        %1331 = vmatpush1.bf16.msra.mxu0 0
        %1332 = vmatprep.subr.bf16.mxu0 0
        %1333 = vmatpush1.bf16.msra.mxu0 0
        %1334 = vmatprep.subr.bf16.mxu0 0
        %1335 = vmatpush1.bf16.msra.mxu0 0
        %1336 = vmatprep.subr.bf16.mxu0 0
        %1337 = vmatpush1.bf16.msra.mxu0 0
        %1338 = vmatprep.subr.bf16.mxu0 0
        %1339 = vmatpush1.bf16.msra.mxu0 0
        %1340 = vmatprep.mubr.bf16.mxu0 0
        %1341 = vmatmul.mubr.bf16.gmra.mrb[0].mxu0 %v1303
        %v1342 = vpop.f32.mrb[0].mxu0
        %v1343 = vadd.f32 0.0, %v1342
        %v1344 = vpop.f32.mrb[0].mxu0
        %v1345 = vpop.f32.mrb[0].mxu0
        %v1346 = vpop.f32.mrb[0].mxu0
        %1347 = vdwg.mxu0
        %1348 = vrot.lane.b32.xlu0 %v941, 64
        %v1349 = vpop.permute.xlu0 %1348
        %v1351 = vsel %vm947, %v1202, 0
        %v1354 = vsel %vm1208, %v1349, 0
        %1356 = vmatprep.subr.bf16.mxu0 0
        %1357 = vmatpush1.bf16.msra.mxu0 %v1354
        %1358 = vmatprep.subr.bf16.mxu0 0
        %1359 = vmatpush1.bf16.msra.mxu0 0
        %1360 = vmatprep.subr.bf16.mxu0 0
        %1361 = vmatpush1.bf16.msra.mxu0 0
        %1362 = vmatprep.subr.bf16.mxu0 0
        %1363 = vmatpush1.bf16.msra.mxu0 0
        %1364 = vmatprep.subr.bf16.mxu0 0
        %1365 = vmatpush1.bf16.msra.mxu0 0
        %1366 = vmatprep.subr.bf16.mxu0 0
        %1367 = vmatpush1.bf16.msra.mxu0 0
        %1368 = vmatprep.subr.bf16.mxu0 0
        %1369 = vmatpush1.bf16.msra.mxu0 0
        %1370 = vmatprep.subr.bf16.mxu0 0
        %1371 = vmatpush1.bf16.msra.mxu0 0
        %1372 = vmatprep.subr.bf16.mxu0 0
        %1373 = vmatpush1.bf16.msra.mxu0 0
        %1374 = vmatprep.subr.bf16.mxu0 0
        %1375 = vmatpush1.bf16.msra.mxu0 0
        %1376 = vmatprep.subr.bf16.mxu0 0
        %1377 = vmatpush1.bf16.msra.mxu0 0
        %1378 = vmatprep.subr.bf16.mxu0 0
        %1379 = vmatpush1.bf16.msra.mxu0 0
        %1380 = vmatprep.subr.bf16.mxu0 0
        %1381 = vmatpush1.bf16.msra.mxu0 0
        %1382 = vmatprep.subr.bf16.mxu0 0
        %1383 = vmatpush1.bf16.msra.mxu0 0
        %1384 = vmatprep.subr.bf16.mxu0 0
        %1385 = vmatpush1.bf16.msra.mxu0 0
        %1386 = vmatprep.subr.bf16.mxu0 0
        %1387 = vmatpush1.bf16.msra.mxu0 0
        %1388 = vmatprep.mubr.bf16.mxu0 0
        %1389 = vmatmul.mubr.bf16.gmra.mrb[0].mxu0 %v1351
        %v1390 = vpop.f32.mrb[0].mxu0
        %v1391 = vadd.f32 0.0, %v1390
        %v1392 = vpop.f32.mrb[0].mxu0
        %v1393 = vpop.f32.mrb[0].mxu0
        %v1394 = vpop.f32.mrb[0].mxu0
        %1395 = vdwg.mxu0
        %v1396 = vpack.c.bf16 %v1247, %v1247
        %v1397 = vpack.c.bf16 %v1295, %v1295
        %v1398 = vpack.c.bf16 %v1343, %v1343
        %v1399 = vpack.c.bf16 %v1391, %v1391
        %v1400 = vld [vmem:[%s6] sm:$0xf]
        %v1401 = vld [vmem:[%s6 + $0x4] sm:$0xf]
        %v1402 = vld [vmem:[%s6 + $0x8] sm:$0xf]
        %v1403 = vld [vmem:[%s6 + $0xc] sm:$0xf]
        %v1405 = vsel %vm947, %v1396, 0
        %v1408 = vsel %vm1208, %v1400, 0
        %1410 = vmatprep.subr.bf16.mxu0 0
        %1411 = vmatpush1.bf16.msra.mxu0 %v1408
        %1412 = vmatprep.subr.bf16.mxu0 0
        %1413 = vmatpush1.bf16.msra.mxu0 0
        %1414 = vmatprep.subr.bf16.mxu0 0
        %1415 = vmatpush1.bf16.msra.mxu0 0
        %1416 = vmatprep.subr.bf16.mxu0 0
        %1417 = vmatpush1.bf16.msra.mxu0 0
        %1418 = vmatprep.subr.bf16.mxu0 0
        %1419 = vmatpush1.bf16.msra.mxu0 0
        %1420 = vmatprep.subr.bf16.mxu0 0
        %1421 = vmatpush1.bf16.msra.mxu0 0
        %1422 = vmatprep.subr.bf16.mxu0 0
        %1423 = vmatpush1.bf16.msra.mxu0 0
        %1424 = vmatprep.subr.bf16.mxu0 0
        %1425 = vmatpush1.bf16.msra.mxu0 0
        %1426 = vmatprep.subr.bf16.mxu0 0
        %1427 = vmatpush1.bf16.msra.mxu0 0
        %1428 = vmatprep.subr.bf16.mxu0 0
        %1429 = vmatpush1.bf16.msra.mxu0 0
        %1430 = vmatprep.subr.bf16.mxu0 0
        %1431 = vmatpush1.bf16.msra.mxu0 0
        %1432 = vmatprep.subr.bf16.mxu0 0
        %1433 = vmatpush1.bf16.msra.mxu0 0
        %1434 = vmatprep.subr.bf16.mxu0 0
        %1435 = vmatpush1.bf16.msra.mxu0 0
        %1436 = vmatprep.subr.bf16.mxu0 0
        %1437 = vmatpush1.bf16.msra.mxu0 0
        %1438 = vmatprep.subr.bf16.mxu0 0
        %1439 = vmatpush1.bf16.msra.mxu0 0
        %1440 = vmatprep.subr.bf16.mxu0 0
        %1441 = vmatpush1.bf16.msra.mxu0 0
        %1442 = vmatprep.mubr.bf16.mxu0 0
        %1443 = vmatmul.mubr.bf16.gmra.mrb[0].mxu0 %v1405
        %v1444 = vpop.f32.mrb[0].mxu0
        %v1445 = vadd.f32 0.0, %v1444
        %v1446 = vpop.f32.mrb[0].mxu0
        %v1447 = vpop.f32.mrb[0].mxu0
        %v1448 = vpop.f32.mrb[0].mxu0
        %1449 = vdwg.mxu0
        %v1451 = vsel %vm947, %v1397, 0
        %v1454 = vsel %vm1208, %v1401, 0
        %1456 = vmatprep.subr.bf16.mxu0 0
        %1457 = vmatpush1.bf16.msra.mxu0 %v1454
        %1458 = vmatprep.subr.bf16.mxu0 0
        %1459 = vmatpush1.bf16.msra.mxu0 0
        %1460 = vmatprep.subr.bf16.mxu0 0
        %1461 = vmatpush1.bf16.msra.mxu0 0
        %1462 = vmatprep.subr.bf16.mxu0 0
        %1463 = vmatpush1.bf16.msra.mxu0 0
        %1464 = vmatprep.subr.bf16.mxu0 0
        %1465 = vmatpush1.bf16.msra.mxu0 0
        %1466 = vmatprep.subr.bf16.mxu0 0
        %1467 = vmatpush1.bf16.msra.mxu0 0
        %1468 = vmatprep.subr.bf16.mxu0 0
        %1469 = vmatpush1.bf16.msra.mxu0 0
        %1470 = vmatprep.subr.bf16.mxu0 0
        %1471 = vmatpush1.bf16.msra.mxu0 0
        %1472 = vmatprep.subr.bf16.mxu0 0
        %1473 = vmatpush1.bf16.msra.mxu0 0
        %1474 = vmatprep.subr.bf16.mxu0 0
        %1475 = vmatpush1.bf16.msra.mxu0 0
        %1476 = vmatprep.subr.bf16.mxu0 0
        %1477 = vmatpush1.bf16.msra.mxu0 0
        %1478 = vmatprep.subr.bf16.mxu0 0
        %1479 = vmatpush1.bf16.msra.mxu0 0
        %1480 = vmatprep.subr.bf16.mxu0 0
        %1481 = vmatpush1.bf16.msra.mxu0 0
        %1482 = vmatprep.subr.bf16.mxu0 0
        %1483 = vmatpush1.bf16.msra.mxu0 0
        %1484 = vmatprep.subr.bf16.mxu0 0
        %1485 = vmatpush1.bf16.msra.mxu0 0
        %1486 = vmatprep.subr.bf16.mxu0 0
        %1487 = vmatpush1.bf16.msra.mxu0 0
        %1488 = vmatprep.mubr.bf16.mxu0 0
        %1489 = vmatmul.mubr.bf16.gmra.mrb[0].mxu0 %v1451
        %v1490 = vpop.f32.mrb[0].mxu0
        %v1491 = vadd.f32 0.0, %v1490
        %v1492 = vpop.f32.mrb[0].mxu0
        %v1493 = vpop.f32.mrb[0].mxu0
        %v1494 = vpop.f32.mrb[0].mxu0
        %1495 = vdwg.mxu0
        %v1497 = vsel %vm947, %v1398, 0
        %v1500 = vsel %vm1208, %v1402, 0
        %1502 = vmatprep.subr.bf16.mxu0 0
        %1503 = vmatpush1.bf16.msra.mxu0 %v1500
        %1504 = vmatprep.subr.bf16.mxu0 0
        %1505 = vmatpush1.bf16.msra.mxu0 0
        %1506 = vmatprep.subr.bf16.mxu0 0
        %1507 = vmatpush1.bf16.msra.mxu0 0
        %1508 = vmatprep.subr.bf16.mxu0 0
        %1509 = vmatpush1.bf16.msra.mxu0 0
        %1510 = vmatprep.subr.bf16.mxu0 0
        %1511 = vmatpush1.bf16.msra.mxu0 0
        %1512 = vmatprep.subr.bf16.mxu0 0
        %1513 = vmatpush1.bf16.msra.mxu0 0
        %1514 = vmatprep.subr.bf16.mxu0 0
        %1515 = vmatpush1.bf16.msra.mxu0 0
        %1516 = vmatprep.subr.bf16.mxu0 0
        %1517 = vmatpush1.bf16.msra.mxu0 0
        %1518 = vmatprep.subr.bf16.mxu0 0
        %1519 = vmatpush1.bf16.msra.mxu0 0
        %1520 = vmatprep.subr.bf16.mxu0 0
        %1521 = vmatpush1.bf16.msra.mxu0 0
        %1522 = vmatprep.subr.bf16.mxu0 0
        %1523 = vmatpush1.bf16.msra.mxu0 0
        %1524 = vmatprep.subr.bf16.mxu0 0
        %1525 = vmatpush1.bf16.msra.mxu0 0
        %1526 = vmatprep.subr.bf16.mxu0 0
        %1527 = vmatpush1.bf16.msra.mxu0 0
        %1528 = vmatprep.subr.bf16.mxu0 0
        %1529 = vmatpush1.bf16.msra.mxu0 0
        %1530 = vmatprep.subr.bf16.mxu0 0
        %1531 = vmatpush1.bf16.msra.mxu0 0
        %1532 = vmatprep.subr.bf16.mxu0 0
        %1533 = vmatpush1.bf16.msra.mxu0 0
        %1534 = vmatprep.mubr.bf16.mxu0 0
        %1535 = vmatmul.mubr.bf16.gmra.mrb[0].mxu0 %v1497
        %v1536 = vpop.f32.mrb[0].mxu0
        %v1537 = vadd.f32 0.0, %v1536
        %v1538 = vpop.f32.mrb[0].mxu0
        %v1539 = vpop.f32.mrb[0].mxu0
        %v1540 = vpop.f32.mrb[0].mxu0
        %1541 = vdwg.mxu0
        %v1543 = vsel %vm947, %v1399, 0
        %v1546 = vsel %vm1208, %v1403, 0
        %1548 = vmatprep.subr.bf16.mxu0 0
        %1549 = vmatpush1.bf16.msra.mxu0 %v1546
        %1550 = vmatprep.subr.bf16.mxu0 0
        %1551 = vmatpush1.bf16.msra.mxu0 0
        %1552 = vmatprep.subr.bf16.mxu0 0
        %1553 = vmatpush1.bf16.msra.mxu0 0
        %1554 = vmatprep.subr.bf16.mxu0 0
        %1555 = vmatpush1.bf16.msra.mxu0 0
        %1556 = vmatprep.subr.bf16.mxu0 0
        %1557 = vmatpush1.bf16.msra.mxu0 0
        %1558 = vmatprep.subr.bf16.mxu0 0
        %1559 = vmatpush1.bf16.msra.mxu0 0
        %1560 = vmatprep.subr.bf16.mxu0 0
        %1561 = vmatpush1.bf16.msra.mxu0 0
        %1562 = vmatprep.subr.bf16.mxu0 0
        %1563 = vmatpush1.bf16.msra.mxu0 0
        %1564 = vmatprep.subr.bf16.mxu0 0
        %1565 = vmatpush1.bf16.msra.mxu0 0
        %1566 = vmatprep.subr.bf16.mxu0 0
        %1567 = vmatpush1.bf16.msra.mxu0 0
        %1568 = vmatprep.subr.bf16.mxu0 0
        %1569 = vmatpush1.bf16.msra.mxu0 0
        %1570 = vmatprep.subr.bf16.mxu0 0
        %1571 = vmatpush1.bf16.msra.mxu0 0
        %1572 = vmatprep.subr.bf16.mxu0 0
        %1573 = vmatpush1.bf16.msra.mxu0 0
        %1574 = vmatprep.subr.bf16.mxu0 0
        %1575 = vmatpush1.bf16.msra.mxu0 0
        %1576 = vmatprep.subr.bf16.mxu0 0
        %1577 = vmatpush1.bf16.msra.mxu0 0
        %1578 = vmatprep.subr.bf16.mxu0 0
        %1579 = vmatpush1.bf16.msra.mxu0 0
        %1580 = vmatprep.mubr.bf16.mxu0 0
        %1581 = vmatmul.mubr.bf16.gmra.mrb[0].mxu0 %v1543
        %v1582 = vpop.f32.mrb[0].mxu0
        %v1583 = vadd.f32 0.0, %v1582
        %v1584 = vpop.f32.mrb[0].mxu0
        %v1585 = vpop.f32.mrb[0].mxu0
        %v1586 = vpop.f32.mrb[0].mxu0
        %1587 = vdwg.mxu0
        %v1588 = vsel %vm830, %v1445, 0.0
        %v1589 = vsel %vm830, %v1491, 0.0
        %v1590 = vadd.f32 %v1588, %v1589
        %v1591 = vsel %vm830, %v1537, 0.0
        %v1592 = vadd.f32 %v1590, %v1591
        %v1593 = vsel %vm830, %v1583, 0.0
        %v1594 = vadd.f32 %v1592, %v1593
        %v1595 = vld [vmem:[%s7] sm:$0x1]
        %v1597 = vlaneseq
        %v1598 = vshrl.u32 %v1597, 7
        %v1599 = vsub.s32 0, %v1598
        %v1600 = vrot.slane %v1595, %v1599
        %v1602 = vadd.f32 %v1594, %v1600
        %v1603 = vadd.f32 %v860, %v1602
        %v1604 = vsel %vm830, %v1603, 0.0
        %1605 = vadd.xlane.f32.xlu0 %v1604
        %v1606 = vpop.xlane.xlu0 %1605
        %v1607 = vmul.f32 %v1606, %v834
        %v1608 = vsub.f32 %v1603, %v1607
        %v1609 = vmul.f32 %v1608, %v1608
        %v1610 = vsel %vm830, %v1609, 0.0
        %1611 = vadd.xlane.f32.xlu0 %v1610
        %v1612 = vpop.xlane.xlu0 %1611
        %v1613 = vmul.f32 %v1612, %v834
        %v1614 = vadd.f32 %v1613, 1e-12
        %v1615 = vrsqrt.pop %v1614
        %v1616 = vmul.f32 %v1608, %v1615
        %v1617 = vld [vmem:[%s8] sm:$0x1]
        %v1619 = vlaneseq
        %v1620 = vshrl.u32 %v1619, 7
        %v1621 = vsub.s32 0, %v1620
        %v1622 = vrot.slane %v1617, %v1621
        %v1624 = vmul.f32 %v1616, %v1622
        %v1625 = vld [vmem:[%s9] sm:$0x1]
        %v1627 = vlaneseq
        %v1628 = vshrl.u32 %v1627, 7
        %v1629 = vsub.s32 0, %v1628
        %v1630 = vrot.slane %v1625, %v1629
        %v1632 = vadd.f32 %v1624, %v1630
        %v1633 = vpack.c.bf16 %v1632, %v1632
        %v1634 = vld [vmem:[%s10] sm:$0xf]
        %v1635 = vld [vmem:[%s10 + $0x4] sm:$0xf]
        %v1636 = vld [vmem:[%s10 + $0x8] sm:$0xf]
        %v1637 = vld [vmem:[%s10 + $0xc] sm:$0xf]
        %v1638 = vld [vmem:[%s11] sm:$0x1]
        %v1640 = vlaneseq
        %v1641 = vshrl.u32 %v1640, 7
        %v1642 = vsub.s32 0, %v1641
        %v1643 = vrot.slane %v1638, %v1642
        %v1649 = vunpack.c.l.b16 %v1634
        %v1650 = vunpack.c.l.b16 %v1635
        %v1651 = vunpack.c.l.b16 %v1636
        %v1652 = vunpack.c.l.b16 %v1637
        %v1653 = vpack.c.b16 %v1650, %v1649
        %v1654 = vpack.c.b16 %v1652, %v1651
        %v1658 = vsel %vm830, %v1633, 0
        %1660 = vmatprep.subr.bf16.mxu0 0
        %1661 = vmatpush1.bf16.msra.mxu0 %v1653
        %1662 = vmatprep.subr.bf16.mxu0 0
        %1663 = vmatpush1.bf16.msra.mxu0 %v1654
        %1664 = vmatprep.subr.bf16.mxu0 0
        %1665 = vmatpush1.bf16.msra.mxu0 0
        %1666 = vmatprep.subr.bf16.mxu0 0
        %1667 = vmatpush1.bf16.msra.mxu0 0
        %1668 = vmatprep.subr.bf16.mxu0 0
        %1669 = vmatpush1.bf16.msra.mxu0 0
        %1670 = vmatprep.subr.bf16.mxu0 0
        %1671 = vmatpush1.bf16.msra.mxu0 0
        %1672 = vmatprep.subr.bf16.mxu0 0
        %1673 = vmatpush1.bf16.msra.mxu0 0
        %1674 = vmatprep.subr.bf16.mxu0 0
        %1675 = vmatpush1.bf16.msra.mxu0 0
        %1676 = vmatprep.subr.bf16.mxu0 0
        %1677 = vmatpush1.bf16.msra.mxu0 0
        %1678 = vmatprep.subr.bf16.mxu0 0
        %1679 = vmatpush1.bf16.msra.mxu0 0
        %1680 = vmatprep.subr.bf16.mxu0 0
        %1681 = vmatpush1.bf16.msra.mxu0 0
        %1682 = vmatprep.subr.bf16.mxu0 0
        %1683 = vmatpush1.bf16.msra.mxu0 0
        %1684 = vmatprep.subr.bf16.mxu0 0
        %1685 = vmatpush1.bf16.msra.mxu0 0
        %1686 = vmatprep.subr.bf16.mxu0 0
        %1687 = vmatpush1.bf16.msra.mxu0 0
        %1688 = vmatprep.subr.bf16.mxu0 0
        %1689 = vmatpush1.bf16.msra.mxu0 0
        %1690 = vmatprep.subr.bf16.mxu0 0
        %1691 = vmatpush1.bf16.msra.mxu0 0
        %1692 = vmatprep.mubr.bf16.mxu0 0
        %1693 = vmatmul.mubr.bf16.gmra.mrb[0].mxu0 %v1658
        %v1694 = vpop.f32.mrb[0].mxu0
        %v1695 = vadd.f32 %v1643, %v1694
        %v1696 = vpop.f32.mrb[0].mxu0
        %v1697 = vpop.f32.mrb[0].mxu0
        %v1698 = vpop.f32.mrb[0].mxu0
        %1699 = vdwg.mxu0
        %v1700 = vmul.f32 %v1695, %v1695
        %v1701 = vmul.f32 %v1695, %v1700
        %v1702 = vmul.f32 %v1701, 0.044715
        %v1703 = vadd.f32 %v1695, %v1702
        %v1704 = vmul.f32 %v1703, 0.7978846
        %v1705 = vtanh.pop %v1704
        %v1706 = vadd.f32 %v1705, 1.0
        %v1707 = vmul.f32 %v1706, 0.5
        %v1708 = vmul.f32 %v1695, %v1707
        %v1709 = vpack.c.bf16 %v1708, %v1708
        %v1710 = vld [vmem:[%s12] sm:$0xf]
        %v1711 = vld [vmem:[%s12 + $0x4] sm:$0xf]
        %v1712 = vld [vmem:[%s12 + $0x8] sm:$0xf]
        %v1713 = vld [vmem:[%s12 + $0xc] sm:$0xf]
        %v1714 = vld [vmem:[%s12 + $0x10] sm:$0xf]
        %v1715 = vld [vmem:[%s12 + $0x14] sm:$0xf]
        %v1716 = vld [vmem:[%s12 + $0x18] sm:$0xf]
        %v1717 = vld [vmem:[%s12 + $0x1c] sm:$0xf]
        %v1718 = vld [vmem:[%s13] sm:$0x1]
        %v1720 = vlaneseq
        %v1721 = vshrl.u32 %v1720, 7
        %v1722 = vsub.s32 0, %v1721
        %v1723 = vrot.slane %v1718, %v1722
        %v1733 = vunpack.c.l.b16 %v1710
        %v1734 = vunpack.c.l.b16 %v1711
        %v1735 = vunpack.c.l.b16 %v1712
        %v1736 = vunpack.c.l.b16 %v1713
        %v1737 = vunpack.c.l.b16 %v1714
        %v1738 = vunpack.c.l.b16 %v1715
        %v1739 = vunpack.c.l.b16 %v1716
        %v1740 = vunpack.c.l.b16 %v1717
        %v1741 = vpack.c.b16 %v1734, %v1733
        %v1742 = vpack.c.b16 %v1736, %v1735
        %v1743 = vpack.c.b16 %v1738, %v1737
        %v1744 = vpack.c.b16 %v1740, %v1739
        %vm1749 = vcmask 523264
        %v1751 = vsel %vm1749, %v1709, 0
        %1753 = vmatprep.subr.bf16.mxu0 0
        %1754 = vmatpush1.bf16.msra.mxu0 %v1741
        %1755 = vmatprep.subr.bf16.mxu0 0
        %1756 = vmatpush1.bf16.msra.mxu0 %v1742
        %1757 = vmatprep.subr.bf16.mxu0 0
        %1758 = vmatpush1.bf16.msra.mxu0 %v1743
        %1759 = vmatprep.subr.bf16.mxu0 0
        %1760 = vmatpush1.bf16.msra.mxu0 %v1744
        %1761 = vmatprep.subr.bf16.mxu0 0
        %1762 = vmatpush1.bf16.msra.mxu0 0
        %1763 = vmatprep.subr.bf16.mxu0 0
        %1764 = vmatpush1.bf16.msra.mxu0 0
        %1765 = vmatprep.subr.bf16.mxu0 0
        %1766 = vmatpush1.bf16.msra.mxu0 0
        %1767 = vmatprep.subr.bf16.mxu0 0
        %1768 = vmatpush1.bf16.msra.mxu0 0
        %1769 = vmatprep.subr.bf16.mxu0 0
        %1770 = vmatpush1.bf16.msra.mxu0 0
        %1771 = vmatprep.subr.bf16.mxu0 0
        %1772 = vmatpush1.bf16.msra.mxu0 0
        %1773 = vmatprep.subr.bf16.mxu0 0
        %1774 = vmatpush1.bf16.msra.mxu0 0
        %1775 = vmatprep.subr.bf16.mxu0 0
        %1776 = vmatpush1.bf16.msra.mxu0 0
        %1777 = vmatprep.subr.bf16.mxu0 0
        %1778 = vmatpush1.bf16.msra.mxu0 0
        %1779 = vmatprep.subr.bf16.mxu0 0
        %1780 = vmatpush1.bf16.msra.mxu0 0
        %1781 = vmatprep.subr.bf16.mxu0 0
        %1782 = vmatpush1.bf16.msra.mxu0 0
        %1783 = vmatprep.subr.bf16.mxu0 0
        %1784 = vmatpush1.bf16.msra.mxu0 0
        %1785 = vmatprep.mubr.bf16.mxu0 0
        %1786 = vmatmul.mubr.bf16.gmra.mrb[0].mxu0 %v1751
        %v1787 = vpop.f32.mrb[0].mxu0
        %v1788 = vadd.f32 %v1723, %v1787
        %v1789 = vpop.f32.mrb[0].mxu0
        %v1790 = vpop.f32.mrb[0].mxu0
        %v1791 = vpop.f32.mrb[0].mxu0
        %1792 = vdwg.mxu0
        %v1793 = vadd.f32 %v1632, %v1788
        %v1794 = vsel %vm830, %v1793, 0.0
        %1795 = vadd.xlane.f32.xlu0 %v1794
        %v1796 = vpop.xlane.xlu0 %1795
        %v1797 = vmul.f32 %v1796, %v834
        %v1798 = vsub.f32 %v1793, %v1797
        %v1799 = vmul.f32 %v1798, %v1798
        %v1800 = vsel %vm830, %v1799, 0.0
        %1801 = vadd.xlane.f32.xlu0 %v1800
        %v1802 = vpop.xlane.xlu0 %1801
        %v1803 = vmul.f32 %v1802, %v834
        %v1804 = vadd.f32 %v1803, 1e-12
        %v1805 = vrsqrt.pop %v1804
        %v1806 = vmul.f32 %v1798, %v1805
        %v1807 = vld [vmem:[%s14] sm:$0x1]
        %v1809 = vlaneseq
        %v1810 = vshrl.u32 %v1809, 7
        %v1811 = vsub.s32 0, %v1810
        %v1812 = vrot.slane %v1807, %v1811
        %v1814 = vmul.f32 %v1806, %v1812
        %v1815 = vld [vmem:[%s15] sm:$0x1]
        %v1817 = vlaneseq
        %v1818 = vshrl.u32 %v1817, 7
        %v1819 = vsub.s32 0, %v1818
        %v1820 = vrot.slane %v1815, %v1819
        %v1822 = vadd.f32 %v1814, %v1820
        %v1823 = vld [vmem:[%s16] sm:$0xff]
        %v1825 = vsel %vm947, %v1823, 0
        %1827 = vmatprep.subr.mxu0 0.0
        %1828 = vmatpush1.msra.mxu0 %v1822
        %1829 = vmatprep.subr.mxu0 0.0
        %1830 = vmatpush1.msra.mxu0 0.0
        %1831 = vmatprep.subr.mxu0 0.0
        %1832 = vmatpush1.msra.mxu0 0.0
        %1833 = vmatprep.subr.mxu0 0.0
        %1834 = vmatpush1.msra.mxu0 0.0
        %1835 = vmatprep.subr.mxu0 0.0
        %1836 = vmatpush1.msra.mxu0 0.0
        %1837 = vmatprep.subr.mxu0 0.0
        %1838 = vmatpush1.msra.mxu0 0.0
        %1839 = vmatprep.subr.mxu0 0.0
        %1840 = vmatpush1.msra.mxu0 0.0
        %1841 = vmatprep.subr.mxu0 0.0
        %1842 = vmatpush1.msra.mxu0 0.0
        %1843 = vmatprep.subr.mxu0 0.0
        %1844 = vmatpush1.msra.mxu0 0.0
        %1845 = vmatprep.subr.mxu0 0.0
        %1846 = vmatpush1.msra.mxu0 0.0
        %1847 = vmatprep.subr.mxu0 0.0
        %1848 = vmatpush1.msra.mxu0 0.0
        %1849 = vmatprep.subr.mxu0 0.0
        %1850 = vmatpush1.msra.mxu0 0.0
        %1851 = vmatprep.subr.mxu0 0.0
        %1852 = vmatpush1.msra.mxu0 0.0
        %1853 = vmatprep.subr.mxu0 0.0
        %1854 = vmatpush1.msra.mxu0 0.0
        %1855 = vmatprep.subr.mxu0 0.0
        %1856 = vmatpush1.msra.mxu0 0.0
        %1857 = vmatprep.subr.mxu0 0.0
        %1858 = vmatpush1.msra.mxu0 0.0
        %1859 = vmatprep.subr.mxu0 0.0
        %1860 = vmatpush1.msra.mxu0 0.0
        %1861 = vmatprep.subr.mxu0 0.0
        %1862 = vmatpush1.msra.mxu0 0.0
        %1863 = vmatprep.subr.mxu0 0.0
        %1864 = vmatpush1.msra.mxu0 0.0
        %1865 = vmatprep.subr.mxu0 0.0
        %1866 = vmatpush1.msra.mxu0 0.0
        %1867 = vmatprep.subr.mxu0 0.0
        %1868 = vmatpush1.msra.mxu0 0.0
        %1869 = vmatprep.subr.mxu0 0.0
        %1870 = vmatpush1.msra.mxu0 0.0
        %1871 = vmatprep.subr.mxu0 0.0
        %1872 = vmatpush1.msra.mxu0 0.0
        %1873 = vmatprep.subr.mxu0 0.0
        %1874 = vmatpush1.msra.mxu0 0.0
        %1875 = vmatprep.subr.mxu0 0.0
        %1876 = vmatpush1.msra.mxu0 0.0
        %1877 = vmatprep.subr.mxu0 0.0
        %1878 = vmatpush1.msra.mxu0 0.0
        %1879 = vmatprep.subr.mxu0 0.0
        %1880 = vmatpush1.msra.mxu0 0.0
        %1881 = vmatprep.subr.mxu0 0.0
        %1882 = vmatpush1.msra.mxu0 0.0
        %1883 = vmatprep.subr.mxu0 0.0
        %1884 = vmatpush1.msra.mxu0 0.0
        %1885 = vmatprep.subr.mxu0 0.0
        %1886 = vmatpush1.msra.mxu0 0.0
        %1887 = vmatprep.subr.mxu0 0.0
        %1888 = vmatpush1.msra.mxu0 0.0
        %1889 = vmatprep.subr.mxu0 0.0
        %1890 = vmatpush1.msra.mxu0 0.0
        %1891 = vmatprep.mubr.f32.mxu0 0.0
        %1892 = vmatmul.mubr.f32.gmra.mrb[0].mxu0 %v1825
        %v1893 = vpop.f32.mrb[0].mxu0
        %v1894 = vadd.f32 0.0, %v1893
        %v1895 = vpop.f32.mrb[0].mxu0
        %1896 = vdwg.mxu0
        %v1897 = vpack.c.bf16 %v1822, %v1822
        %v1898 = vld [vmem:[%s17] sm:$0xff]
        %v1899 = vld [vmem:[%s17 + $0x8] sm:$0xff]
        %v1900 = vld [vmem:[%s17 + $0x10] sm:$0xff]
        %v1901 = vld [vmem:[%s17 + $0x18] sm:$0xff]
        %v1902 = vpack.c.bf16 %v1894, %v1894
        %v1903 = vld [vmem:[%s18] sm:$0xff]
        %v1904 = vld [vmem:[%s18 + $0x8] sm:$0xff]
        %v1905 = vld [vmem:[%s18 + $0x10] sm:$0xff]
        %v1906 = vld [vmem:[%s18 + $0x18] sm:$0xff]
        %v1911 = vunpack.c.l.b16 %v1903
        %v1912 = vunpack.c.h.b16 %v1903
        %v1913 = vunpack.c.l.b16 %v1904
        %v1914 = vunpack.c.h.b16 %v1904
        %v1915 = vunpack.c.l.b16 %v1905
        %v1916 = vunpack.c.h.b16 %v1905
        %v1917 = vunpack.c.l.b16 %v1906
        %v1918 = vunpack.c.h.b16 %v1906
        %v1919 = vpack.c.b16 %v1913, %v1911
        %v1920 = vpack.c.b16 %v1914, %v1912
        %v1921 = vpack.c.b16 %v1917, %v1915
        %v1922 = vpack.c.b16 %v1918, %v1916
        %v1928 = vsel %vm830, %v1902, 0
        %1930 = vmatprep.subr.bf16.mxu0 %v1920
        %1931 = vmatpush1.bf16.msra.mxu0 %v1919
        %1932 = vmatprep.subr.bf16.mxu0 %v1922
        %1933 = vmatpush1.bf16.msra.mxu0 %v1921
        %1934 = vmatprep.subr.bf16.mxu0 0
        %1935 = vmatpush1.bf16.msra.mxu0 0
        %1936 = vmatprep.subr.bf16.mxu0 0
        %1937 = vmatpush1.bf16.msra.mxu0 0
        %1938 = vmatprep.subr.bf16.mxu0 0
        %1939 = vmatpush1.bf16.msra.mxu0 0
        %1940 = vmatprep.subr.bf16.mxu0 0
        %1941 = vmatpush1.bf16.msra.mxu0 0
        %1942 = vmatprep.subr.bf16.mxu0 0
        %1943 = vmatpush1.bf16.msra.mxu0 0
        %1944 = vmatprep.subr.bf16.mxu0 0
        %1945 = vmatpush1.bf16.msra.mxu0 0
        %1946 = vmatprep.subr.bf16.mxu0 0
        %1947 = vmatpush1.bf16.msra.mxu0 0
        %1948 = vmatprep.subr.bf16.mxu0 0
        %1949 = vmatpush1.bf16.msra.mxu0 0
        %1950 = vmatprep.subr.bf16.mxu0 0
        %1951 = vmatpush1.bf16.msra.mxu0 0
        %1952 = vmatprep.subr.bf16.mxu0 0
        %1953 = vmatpush1.bf16.msra.mxu0 0
        %1954 = vmatprep.subr.bf16.mxu0 0
        %1955 = vmatpush1.bf16.msra.mxu0 0
        %1956 = vmatprep.subr.bf16.mxu0 0
        %1957 = vmatpush1.bf16.msra.mxu0 0
        %1958 = vmatprep.subr.bf16.mxu0 0
        %1959 = vmatpush1.bf16.msra.mxu0 0
        %1960 = vmatprep.subr.bf16.mxu0 0
        %1961 = vmatpush1.bf16.msra.mxu0 0
        %1962 = vmatprep.mubr.bf16.mxu0 0
        %1963 = vmatmul.mubr.bf16.gmra.mrb[0].mxu0 %v1928
        %v1964 = vpop.f32.mrb[0].mxu0
        %v1965 = vadd.f32 0.0, %v1964
        %v1966 = vpop.f32.mrb[0].mxu0
        %v1967 = vadd.f32 0.0, %v1966
        %v1968 = vpop.f32.mrb[0].mxu0
        %v1969 = vpop.f32.mrb[0].mxu0
        %1970 = vdwg.mxu0
        %v1975 = vunpack.c.l.b16 %v1898
        %v1976 = vunpack.c.h.b16 %v1898
        %v1977 = vunpack.c.l.b16 %v1899
        %v1978 = vunpack.c.h.b16 %v1899
        %v1979 = vunpack.c.l.b16 %v1900
        %v1980 = vunpack.c.h.b16 %v1900
        %v1981 = vunpack.c.l.b16 %v1901
        %v1982 = vunpack.c.h.b16 %v1901
        %v1983 = vpack.c.b16 %v1977, %v1975
        %v1984 = vpack.c.b16 %v1978, %v1976
        %v1985 = vpack.c.b16 %v1981, %v1979
        %v1986 = vpack.c.b16 %v1982, %v1980
        %v1992 = vsel %vm830, %v1897, 0
        %1994 = vmatprep.subr.bf16.mxu0 %v1984
        %1995 = vmatpush1.bf16.msra.mxu0 %v1983
        %1996 = vmatprep.subr.bf16.mxu0 %v1986
        %1997 = vmatpush1.bf16.msra.mxu0 %v1985
        %1998 = vmatprep.subr.bf16.mxu0 0
        %1999 = vmatpush1.bf16.msra.mxu0 0
        %2000 = vmatprep.subr.bf16.mxu0 0
        %2001 = vmatpush1.bf16.msra.mxu0 0
        %2002 = vmatprep.subr.bf16.mxu0 0
        %2003 = vmatpush1.bf16.msra.mxu0 0
        %2004 = vmatprep.subr.bf16.mxu0 0
        %2005 = vmatpush1.bf16.msra.mxu0 0
        %2006 = vmatprep.subr.bf16.mxu0 0
        %2007 = vmatpush1.bf16.msra.mxu0 0
        %2008 = vmatprep.subr.bf16.mxu0 0
        %2009 = vmatpush1.bf16.msra.mxu0 0
        %2010 = vmatprep.subr.bf16.mxu0 0
        %2011 = vmatpush1.bf16.msra.mxu0 0
        %2012 = vmatprep.subr.bf16.mxu0 0
        %2013 = vmatpush1.bf16.msra.mxu0 0
        %2014 = vmatprep.subr.bf16.mxu0 0
        %2015 = vmatpush1.bf16.msra.mxu0 0
        %2016 = vmatprep.subr.bf16.mxu0 0
        %2017 = vmatpush1.bf16.msra.mxu0 0
        %2018 = vmatprep.subr.bf16.mxu0 0
        %2019 = vmatpush1.bf16.msra.mxu0 0
        %2020 = vmatprep.subr.bf16.mxu0 0
        %2021 = vmatpush1.bf16.msra.mxu0 0
        %2022 = vmatprep.subr.bf16.mxu0 0
        %2023 = vmatpush1.bf16.msra.mxu0 0
        %2024 = vmatprep.subr.bf16.mxu0 0
        %2025 = vmatpush1.bf16.msra.mxu0 0
        %2026 = vmatprep.mubr.bf16.mxu0 0
        %2027 = vmatmul.mubr.bf16.gmra.mrb[0].mxu0 %v1992
        %v2028 = vpop.f32.mrb[0].mxu0
        %v2029 = vadd.f32 %v1965, %v2028
        %v2030 = vpop.f32.mrb[0].mxu0
        %v2031 = vadd.f32 %v1967, %v2030
        %v2032 = vpop.f32.mrb[0].mxu0
        %v2033 = vpop.f32.mrb[0].mxu0
        %2034 = vdwg.mxu0
        %v2035 = vld [vmem:[%s19] sm:$0x3]
        %v2037 = vlaneseq
        %v2038 = vshrl.u32 %v2037, 7
        %v2039 = vsub.s32 0, %v2038
        %v2040 = vrot.slane %v2035, %v2039
        %v2041 = vlaneseq
        %v2042 = vshrl.u32 %v2041, 7
        %v2043 = vsub.s32 1, %v2042
        %v2044 = vrot.slane %v2035, %v2043
        %v2047 = vadd.f32 %v2029, %v2040
        %v2048 = vadd.f32 %v2031, %v2044
        %v2049 = vld [vmem:[%s20] sm:$0xff]
        %v2050 = vld [vmem:[%s20 + $0x8] sm:$0xff]
        %v2051 = vld [vmem:[%s20 + $0x10] sm:$0xff]
        %v2052 = vld [vmem:[%s20 + $0x18] sm:$0xff]
        %v2053 = vld [vmem:[%s20 + $0x20] sm:$0xff]
        %v2054 = vld [vmem:[%s20 + $0x28] sm:$0xff]
        %v2055 = vld [vmem:[%s20 + $0x30] sm:$0xff]
        %v2056 = vld [vmem:[%s20 + $0x38] sm:$0xff]
        %v2057 = vld [vmem:[%s20 + $0x40] sm:$0xff]
        %v2058 = vld [vmem:[%s20 + $0x48] sm:$0xff]
        %v2059 = vld [vmem:[%s20 + $0x50] sm:$0xff]
        %v2060 = vld [vmem:[%s20 + $0x58] sm:$0xff]
        %v2061 = vld [vmem:[%s20 + $0x60] sm:$0xff]
        %v2062 = vld [vmem:[%s20 + $0x68] sm:$0xff]
        %v2063 = vld [vmem:[%s20 + $0x70] sm:$0xff]
        %v2064 = vld [vmem:[%s20 + $0x78] sm:$0xff]
        %v2066 = vsel %vm1749, 0.0, 0
        %2068 = vmatprep.subr.mxu0 %v2050
        %2069 = vmatpush1.msra.mxu0 %v2049
        %2070 = vmatprep.subr.mxu0 %v2052
        %2071 = vmatpush1.msra.mxu0 %v2051
        %2072 = vmatprep.subr.mxu0 %v2054
        %2073 = vmatpush1.msra.mxu0 %v2053
        %2074 = vmatprep.subr.mxu0 %v2056
        %2075 = vmatpush1.msra.mxu0 %v2055
        %2076 = vmatprep.subr.mxu0 %v2058
        %2077 = vmatpush1.msra.mxu0 %v2057
        %2078 = vmatprep.subr.mxu0 %v2060
        %2079 = vmatpush1.msra.mxu0 %v2059
        %2080 = vmatprep.subr.mxu0 %v2062
        %2081 = vmatpush1.msra.mxu0 %v2061
        %2082 = vmatprep.subr.mxu0 %v2064
        %2083 = vmatpush1.msra.mxu0 %v2063
        %2084 = vmatprep.subr.mxu0 0.0
        %2085 = vmatpush1.msra.mxu0 0.0
        %2086 = vmatprep.subr.mxu0 0.0
        %2087 = vmatpush1.msra.mxu0 0.0
        %2088 = vmatprep.subr.mxu0 0.0
        %2089 = vmatpush1.msra.mxu0 0.0
        %2090 = vmatprep.subr.mxu0 0.0
        %2091 = vmatpush1.msra.mxu0 0.0
        %2092 = vmatprep.subr.mxu0 0.0
        %2093 = vmatpush1.msra.mxu0 0.0
        %2094 = vmatprep.subr.mxu0 0.0
        %2095 = vmatpush1.msra.mxu0 0.0
        %2096 = vmatprep.subr.mxu0 0.0
        %2097 = vmatpush1.msra.mxu0 0.0
        %2098 = vmatprep.subr.mxu0 0.0
        %2099 = vmatpush1.msra.mxu0 0.0
        %2100 = vmatprep.subr.mxu0 0.0
        %2101 = vmatpush1.msra.mxu0 0.0
        %2102 = vmatprep.subr.mxu0 0.0
        %2103 = vmatpush1.msra.mxu0 0.0
        %2104 = vmatprep.subr.mxu0 0.0
        %2105 = vmatpush1.msra.mxu0 0.0
        %2106 = vmatprep.subr.mxu0 0.0
        %2107 = vmatpush1.msra.mxu0 0.0
        %2108 = vmatprep.subr.mxu0 0.0
        %2109 = vmatpush1.msra.mxu0 0.0
        %2110 = vmatprep.subr.mxu0 0.0
        %2111 = vmatpush1.msra.mxu0 0.0
        %2112 = vmatprep.subr.mxu0 0.0
        %2113 = vmatpush1.msra.mxu0 0.0
        %2114 = vmatprep.subr.mxu0 0.0
        %2115 = vmatpush1.msra.mxu0 0.0
        %2116 = vmatprep.subr.mxu0 0.0
        %2117 = vmatpush1.msra.mxu0 0.0
        %2118 = vmatprep.subr.mxu0 0.0
        %2119 = vmatpush1.msra.mxu0 0.0
        %2120 = vmatprep.subr.mxu0 0.0
        %2121 = vmatpush1.msra.mxu0 0.0
        %2122 = vmatprep.subr.mxu0 0.0
        %2123 = vmatpush1.msra.mxu0 0.0
        %2124 = vmatprep.subr.mxu0 0.0
        %2125 = vmatpush1.msra.mxu0 0.0
        %2126 = vmatprep.subr.mxu0 0.0
        %2127 = vmatpush1.msra.mxu0 0.0
        %2128 = vmatprep.subr.mxu0 0.0
        %2129 = vmatpush1.msra.mxu0 0.0
        %2130 = vmatprep.subr.mxu0 0.0
        %2131 = vmatpush1.msra.mxu0 0.0
        %2132 = vmatprep.mubr.f32.mxu0 0.0
        %2133 = vmatmul.mubr.f32.gmra.mrb[0].mxu0 %v2066
        %v2134 = vpop.f32.mrb[0].mxu0
        %v2135 = vadd.f32 0.0, %v2134
        %v2136 = vpop.f32.mrb[0].mxu0
        %v2137 = vadd.f32 0.0, %v2136
        %2138 = vdwg.mxu0
        %v2139 = vadd.f32 %v2047, %v2135
        %v2140 = vadd.f32 %v2048, %v2137
        %v2141 = vxor.u32 %v2139, 2147483648
        %v2142 = vmul.f32 %v2141, 1.442695
        %v2143 = vpow.pop %v2142
        %v2144 = vadd.f32 %v2143, 1.0
        %v2145 = vrcp.pop %v2144
        %v2146 = vmul.f32 1.0, %v2145
        %v2147 = vtanh.pop %v2140
        %v2148 = vxor.u32 %v2140, 2147483648
        %v2149 = vmul.f32 %v2148, 1.442695
        %v2150 = vpow.pop %v2149
        %v2151 = vadd.f32 %v2150, 1.0
        %v2152 = vrcp.pop %v2151
        %v2153 = vmul.f32 1.0, %v2152
        %v2154 = vmul.f32 %v2146, 0.0
        %v2155 = vmul.f32 %v2146, %v2147
        %2157 = vrot.lane.b32.xlu0 %v2155, 64
        %v2158 = vpop.permute.xlu0 %2157
        %v2160 = vadd.f32 %v2154, %v2158
        %v2161 = vtanh.pop %v2160
        %v2162 = vmul.f32 %v2153, %v2161
        %2164 = vrot.lane.b32.xlu0 %v2162, 64
        %v2165 = vpop.permute.xlu0 %2164
        %vm2167 = vcmask 516096
        %2168 = vst.msk [vmem:[#allocation2] sm:$0x1] %vm2167, %v2165
        %v2169 = vsel %vm1749, %v2165, 0
        %2171 = vmatprep.subr.mxu0 %v2050
        %2172 = vmatpush1.msra.mxu0 %v2049
        %2173 = vmatprep.subr.mxu0 %v2052
        %2174 = vmatpush1.msra.mxu0 %v2051
        %2175 = vmatprep.subr.mxu0 %v2054
        %2176 = vmatpush1.msra.mxu0 %v2053
        %2177 = vmatprep.subr.mxu0 %v2056
        %2178 = vmatpush1.msra.mxu0 %v2055
        %2179 = vmatprep.subr.mxu0 %v2058
        %2180 = vmatpush1.msra.mxu0 %v2057
        %2181 = vmatprep.subr.mxu0 %v2060
        %2182 = vmatpush1.msra.mxu0 %v2059
        %2183 = vmatprep.subr.mxu0 %v2062
        %2184 = vmatpush1.msra.mxu0 %v2061
        %2185 = vmatprep.subr.mxu0 %v2064
        %2186 = vmatpush1.msra.mxu0 %v2063
        %2187 = vmatprep.subr.mxu0 0.0
        %2188 = vmatpush1.msra.mxu0 0.0
        %2189 = vmatprep.subr.mxu0 0.0
        %2190 = vmatpush1.msra.mxu0 0.0
        %2191 = vmatprep.subr.mxu0 0.0
        %2192 = vmatpush1.msra.mxu0 0.0
        %2193 = vmatprep.subr.mxu0 0.0
        %2194 = vmatpush1.msra.mxu0 0.0
        %2195 = vmatprep.subr.mxu0 0.0
        %2196 = vmatpush1.msra.mxu0 0.0
        %2197 = vmatprep.subr.mxu0 0.0
        %2198 = vmatpush1.msra.mxu0 0.0
        %2199 = vmatprep.subr.mxu0 0.0
        %2200 = vmatpush1.msra.mxu0 0.0
        %2201 = vmatprep.subr.mxu0 0.0
        %2202 = vmatpush1.msra.mxu0 0.0
        %2203 = vmatprep.subr.mxu0 0.0
        %2204 = vmatpush1.msra.mxu0 0.0
        %2205 = vmatprep.subr.mxu0 0.0
        %2206 = vmatpush1.msra.mxu0 0.0
        %2207 = vmatprep.subr.mxu0 0.0
        %2208 = vmatpush1.msra.mxu0 0.0
        %2209 = vmatprep.subr.mxu0 0.0
        %2210 = vmatpush1.msra.mxu0 0.0
        %2211 = vmatprep.subr.mxu0 0.0
        %2212 = vmatpush1.msra.mxu0 0.0
        %2213 = vmatprep.subr.mxu0 0.0
        %2214 = vmatpush1.msra.mxu0 0.0
        %2215 = vmatprep.subr.mxu0 0.0
        %2216 = vmatpush1.msra.mxu0 0.0
        %2217 = vmatprep.subr.mxu0 0.0
        %2218 = vmatpush1.msra.mxu0 0.0
        %2219 = vmatprep.subr.mxu0 0.0
        %2220 = vmatpush1.msra.mxu0 0.0
        %2221 = vmatprep.subr.mxu0 0.0
        %2222 = vmatpush1.msra.mxu0 0.0
        %2223 = vmatprep.subr.mxu0 0.0
        %2224 = vmatpush1.msra.mxu0 0.0
        %2225 = vmatprep.subr.mxu0 0.0
        %2226 = vmatpush1.msra.mxu0 0.0
        %2227 = vmatprep.subr.mxu0 0.0
        %2228 = vmatpush1.msra.mxu0 0.0
        %2229 = vmatprep.subr.mxu0 0.0
        %2230 = vmatpush1.msra.mxu0 0.0
        %2231 = vmatprep.subr.mxu0 0.0
        %2232 = vmatpush1.msra.mxu0 0.0
        %2233 = vmatprep.subr.mxu0 0.0
        %2234 = vmatpush1.msra.mxu0 0.0
        %2235 = vmatprep.mubr.f32.mxu0 0.0
        %2236 = vmatmul.mubr.f32.gmra.mrb[0].mxu0 %v2169
        %v2237 = vpop.f32.mrb[0].mxu0
        %v2238 = vadd.f32 0.0, %v2237
        %v2239 = vpop.f32.mrb[0].mxu0
        %v2240 = vadd.f32 0.0, %v2239
        %2241 = vdwg.mxu0
        %v2244 = vrot.slane %v2238, 7
        %v2245 = vrot.slane %v2240, 7
        %v2248 = vadd.f32 %v2047, %v2244
        %v2249 = vadd.f32 %v2048, %v2245
        %v2250 = vxor.u32 %v2248, 2147483648
        %v2251 = vmul.f32 %v2250, 1.442695
        %v2252 = vpow.pop %v2251
        %v2253 = vadd.f32 %v2252, 1.0
        %v2254 = vrcp.pop %v2253
        %v2255 = vmul.f32 1.0, %v2254
        %v2256 = vtanh.pop %v2249
        %v2257 = vxor.u32 %v2249, 2147483648
        %v2258 = vmul.f32 %v2257, 1.442695
        %v2259 = vpow.pop %v2258
        %v2260 = vadd.f32 %v2259, 1.0
        %v2261 = vrcp.pop %v2260
        %v2262 = vmul.f32 1.0, %v2261
        %v2264 = vrot.slane %v2160, 7
        %v2266 = vmul.f32 %v2255, %v2264
        %v2267 = vmul.f32 %v2255, %v2256
        %2269 = vrot.lane.b32.xlu0 %v2267, 64
        %v2270 = vpop.permute.xlu0 %2269
        %v2272 = vadd.f32 %v2266, %v2270
        %v2273 = vtanh.pop %v2272
        %v2274 = vmul.f32 %v2262, %v2273
        %2276 = vrot.lane.b32.xlu0 %v2274, 64
        %v2277 = vpop.permute.xlu0 %2276
        %vm2279 = vcmask 517121
        %2280 = vst.msk [vmem:[#allocation2] sm:$0x2] %vm2279, %v2277
        %v2281 = vrot.slane %v2274, 1
        %2282 = vrot.lane.b32.xlu0 %v2281, 64
        %v2283 = vpop.permute.xlu0 %2282
        %v2284 = vsel %vm1749, %v2283, 0
        %2286 = vmatprep.subr.mxu0 %v2050
        %2287 = vmatpush1.msra.mxu0 %v2049
        %2288 = vmatprep.subr.mxu0 %v2052
        %2289 = vmatpush1.msra.mxu0 %v2051
        %2290 = vmatprep.subr.mxu0 %v2054
        %2291 = vmatpush1.msra.mxu0 %v2053
        %2292 = vmatprep.subr.mxu0 %v2056
        %2293 = vmatpush1.msra.mxu0 %v2055
        %2294 = vmatprep.subr.mxu0 %v2058
        %2295 = vmatpush1.msra.mxu0 %v2057
        %2296 = vmatprep.subr.mxu0 %v2060
        %2297 = vmatpush1.msra.mxu0 %v2059
        %2298 = vmatprep.subr.mxu0 %v2062
        %2299 = vmatpush1.msra.mxu0 %v2061
        %2300 = vmatprep.subr.mxu0 %v2064
        %2301 = vmatpush1.msra.mxu0 %v2063
        %2302 = vmatprep.subr.mxu0 0.0
        %2303 = vmatpush1.msra.mxu0 0.0
        %2304 = vmatprep.subr.mxu0 0.0
        %2305 = vmatpush1.msra.mxu0 0.0
        %2306 = vmatprep.subr.mxu0 0.0
        %2307 = vmatpush1.msra.mxu0 0.0
        %2308 = vmatprep.subr.mxu0 0.0
        %2309 = vmatpush1.msra.mxu0 0.0
        %2310 = vmatprep.subr.mxu0 0.0
        %2311 = vmatpush1.msra.mxu0 0.0
        %2312 = vmatprep.subr.mxu0 0.0
        %2313 = vmatpush1.msra.mxu0 0.0
        %2314 = vmatprep.subr.mxu0 0.0
        %2315 = vmatpush1.msra.mxu0 0.0
        %2316 = vmatprep.subr.mxu0 0.0
        %2317 = vmatpush1.msra.mxu0 0.0
        %2318 = vmatprep.subr.mxu0 0.0
        %2319 = vmatpush1.msra.mxu0 0.0
        %2320 = vmatprep.subr.mxu0 0.0
        %2321 = vmatpush1.msra.mxu0 0.0
        %2322 = vmatprep.subr.mxu0 0.0
        %2323 = vmatpush1.msra.mxu0 0.0
        %2324 = vmatprep.subr.mxu0 0.0
        %2325 = vmatpush1.msra.mxu0 0.0
        %2326 = vmatprep.subr.mxu0 0.0
        %2327 = vmatpush1.msra.mxu0 0.0
        %2328 = vmatprep.subr.mxu0 0.0
        %2329 = vmatpush1.msra.mxu0 0.0
        %2330 = vmatprep.subr.mxu0 0.0
        %2331 = vmatpush1.msra.mxu0 0.0
        %2332 = vmatprep.subr.mxu0 0.0
        %2333 = vmatpush1.msra.mxu0 0.0
        %2334 = vmatprep.subr.mxu0 0.0
        %2335 = vmatpush1.msra.mxu0 0.0
        %2336 = vmatprep.subr.mxu0 0.0
        %2337 = vmatpush1.msra.mxu0 0.0
        %2338 = vmatprep.subr.mxu0 0.0
        %2339 = vmatpush1.msra.mxu0 0.0
        %2340 = vmatprep.subr.mxu0 0.0
        %2341 = vmatpush1.msra.mxu0 0.0
        %2342 = vmatprep.subr.mxu0 0.0
        %2343 = vmatpush1.msra.mxu0 0.0
        %2344 = vmatprep.subr.mxu0 0.0
        %2345 = vmatpush1.msra.mxu0 0.0
        %2346 = vmatprep.subr.mxu0 0.0
        %2347 = vmatpush1.msra.mxu0 0.0
        %2348 = vmatprep.subr.mxu0 0.0
        %2349 = vmatpush1.msra.mxu0 0.0
        %2350 = vmatprep.mubr.f32.mxu0 0.0
        %2351 = vmatmul.mubr.f32.gmra.mrb[0].mxu0 %v2284
        %v2352 = vpop.f32.mrb[0].mxu0
        %v2353 = vadd.f32 0.0, %v2352
        %v2354 = vpop.f32.mrb[0].mxu0
        %v2355 = vadd.f32 0.0, %v2354
        %2356 = vdwg.mxu0
        %v2359 = vrot.slane %v2353, 6
        %v2360 = vrot.slane %v2355, 6
        %v2363 = vadd.f32 %v2047, %v2359
        %v2364 = vadd.f32 %v2048, %v2360
        %v2365 = vxor.u32 %v2363, 2147483648
        %v2366 = vmul.f32 %v2365, 1.442695
        %v2367 = vpow.pop %v2366
        %v2368 = vadd.f32 %v2367, 1.0
        %v2369 = vrcp.pop %v2368
        %v2370 = vmul.f32 1.0, %v2369
        %v2371 = vtanh.pop %v2364
        %v2372 = vxor.u32 %v2364, 2147483648
        %v2373 = vmul.f32 %v2372, 1.442695
        %v2374 = vpow.pop %v2373
        %v2375 = vadd.f32 %v2374, 1.0
        %v2376 = vrcp.pop %v2375
        %v2377 = vmul.f32 1.0, %v2376
        %v2379 = vrot.slane %v2272, 7
        %v2381 = vmul.f32 %v2370, %v2379
        %v2382 = vmul.f32 %v2370, %v2371
        %2384 = vrot.lane.b32.xlu0 %v2382, 64
        %v2385 = vpop.permute.xlu0 %2384
        %v2387 = vadd.f32 %v2381, %v2385
        %v2388 = vtanh.pop %v2387
        %v2389 = vmul.f32 %v2377, %v2388
        %2391 = vrot.lane.b32.xlu0 %v2389, 64
        %v2392 = vpop.permute.xlu0 %2391
        %vm2394 = vcmask 518146
        %2395 = vst.msk [vmem:[#allocation2] sm:$0x4] %vm2394, %v2392
        %v2396 = vrot.slane %v2389, 2
        %2397 = vrot.lane.b32.xlu0 %v2396, 64
        %v2398 = vpop.permute.xlu0 %2397
        %v2399 = vsel %vm1749, %v2398, 0
        %2401 = vmatprep.subr.mxu0 %v2050
        %2402 = vmatpush1.msra.mxu0 %v2049
        %2403 = vmatprep.subr.mxu0 %v2052
        %2404 = vmatpush1.msra.mxu0 %v2051
        %2405 = vmatprep.subr.mxu0 %v2054
        %2406 = vmatpush1.msra.mxu0 %v2053
        %2407 = vmatprep.subr.mxu0 %v2056
        %2408 = vmatpush1.msra.mxu0 %v2055
        %2409 = vmatprep.subr.mxu0 %v2058
        %2410 = vmatpush1.msra.mxu0 %v2057
        %2411 = vmatprep.subr.mxu0 %v2060
        %2412 = vmatpush1.msra.mxu0 %v2059
        %2413 = vmatprep.subr.mxu0 %v2062
        %2414 = vmatpush1.msra.mxu0 %v2061
        %2415 = vmatprep.subr.mxu0 %v2064
        %2416 = vmatpush1.msra.mxu0 %v2063
        %2417 = vmatprep.subr.mxu0 0.0
        %2418 = vmatpush1.msra.mxu0 0.0
        %2419 = vmatprep.subr.mxu0 0.0
        %2420 = vmatpush1.msra.mxu0 0.0
        %2421 = vmatprep.subr.mxu0 0.0
        %2422 = vmatpush1.msra.mxu0 0.0
        %2423 = vmatprep.subr.mxu0 0.0
        %2424 = vmatpush1.msra.mxu0 0.0
        %2425 = vmatprep.subr.mxu0 0.0
        %2426 = vmatpush1.msra.mxu0 0.0
        %2427 = vmatprep.subr.mxu0 0.0
        %2428 = vmatpush1.msra.mxu0 0.0
        %2429 = vmatprep.subr.mxu0 0.0
        %2430 = vmatpush1.msra.mxu0 0.0
        %2431 = vmatprep.subr.mxu0 0.0
        %2432 = vmatpush1.msra.mxu0 0.0
        %2433 = vmatprep.subr.mxu0 0.0
        %2434 = vmatpush1.msra.mxu0 0.0
        %2435 = vmatprep.subr.mxu0 0.0
        %2436 = vmatpush1.msra.mxu0 0.0
        %2437 = vmatprep.subr.mxu0 0.0
        %2438 = vmatpush1.msra.mxu0 0.0
        %2439 = vmatprep.subr.mxu0 0.0
        %2440 = vmatpush1.msra.mxu0 0.0
        %2441 = vmatprep.subr.mxu0 0.0
        %2442 = vmatpush1.msra.mxu0 0.0
        %2443 = vmatprep.subr.mxu0 0.0
        %2444 = vmatpush1.msra.mxu0 0.0
        %2445 = vmatprep.subr.mxu0 0.0
        %2446 = vmatpush1.msra.mxu0 0.0
        %2447 = vmatprep.subr.mxu0 0.0
        %2448 = vmatpush1.msra.mxu0 0.0
        %2449 = vmatprep.subr.mxu0 0.0
        %2450 = vmatpush1.msra.mxu0 0.0
        %2451 = vmatprep.subr.mxu0 0.0
        %2452 = vmatpush1.msra.mxu0 0.0
        %2453 = vmatprep.subr.mxu0 0.0
        %2454 = vmatpush1.msra.mxu0 0.0
        %2455 = vmatprep.subr.mxu0 0.0
        %2456 = vmatpush1.msra.mxu0 0.0
        %2457 = vmatprep.subr.mxu0 0.0
        %2458 = vmatpush1.msra.mxu0 0.0
        %2459 = vmatprep.subr.mxu0 0.0
        %2460 = vmatpush1.msra.mxu0 0.0
        %2461 = vmatprep.subr.mxu0 0.0
        %2462 = vmatpush1.msra.mxu0 0.0
        %2463 = vmatprep.subr.mxu0 0.0
        %2464 = vmatpush1.msra.mxu0 0.0
        %2465 = vmatprep.mubr.f32.mxu0 0.0
        %2466 = vmatmul.mubr.f32.gmra.mrb[0].mxu0 %v2399
        %v2467 = vpop.f32.mrb[0].mxu0
        %v2468 = vadd.f32 0.0, %v2467
        %v2469 = vpop.f32.mrb[0].mxu0
        %v2470 = vadd.f32 0.0, %v2469
        %2471 = vdwg.mxu0
        %v2474 = vrot.slane %v2468, 5
        %v2475 = vrot.slane %v2470, 5
        %v2478 = vadd.f32 %v2047, %v2474
        %v2479 = vadd.f32 %v2048, %v2475
        %v2480 = vxor.u32 %v2478, 2147483648
        %v2481 = vmul.f32 %v2480, 1.442695
        %v2482 = vpow.pop %v2481
        %v2483 = vadd.f32 %v2482, 1.0
        %v2484 = vrcp.pop %v2483
        %v2485 = vmul.f32 1.0, %v2484
        %v2486 = vtanh.pop %v2479
        %v2487 = vxor.u32 %v2479, 2147483648
        %v2488 = vmul.f32 %v2487, 1.442695
        %v2489 = vpow.pop %v2488
        %v2490 = vadd.f32 %v2489, 1.0
        %v2491 = vrcp.pop %v2490
        %v2492 = vmul.f32 1.0, %v2491
        %v2494 = vrot.slane %v2387, 7
        %v2496 = vmul.f32 %v2485, %v2494
        %v2497 = vmul.f32 %v2485, %v2486
        %2499 = vrot.lane.b32.xlu0 %v2497, 64
        %v2500 = vpop.permute.xlu0 %2499
        %v2502 = vadd.f32 %v2496, %v2500
        %v2503 = vtanh.pop %v2502
        %v2504 = vmul.f32 %v2492, %v2503
        %2506 = vrot.lane.b32.xlu0 %v2504, 64
        %v2507 = vpop.permute.xlu0 %2506
        %vm2509 = vcmask 519171
        %2510 = vst.msk [vmem:[#allocation2] sm:$0x8] %vm2509, %v2507
        %v2511 = vrot.slane %v2504, 3
        %2512 = vrot.lane.b32.xlu0 %v2511, 64
        %v2513 = vpop.permute.xlu0 %2512
        %v2514 = vsel %vm1749, %v2513, 0
        %2516 = vmatprep.subr.mxu0 %v2050
        %2517 = vmatpush1.msra.mxu0 %v2049
        %2518 = vmatprep.subr.mxu0 %v2052
        %2519 = vmatpush1.msra.mxu0 %v2051
        %2520 = vmatprep.subr.mxu0 %v2054
        %2521 = vmatpush1.msra.mxu0 %v2053
        %2522 = vmatprep.subr.mxu0 %v2056
        %2523 = vmatpush1.msra.mxu0 %v2055
        %2524 = vmatprep.subr.mxu0 %v2058
        %2525 = vmatpush1.msra.mxu0 %v2057
        %2526 = vmatprep.subr.mxu0 %v2060
        %2527 = vmatpush1.msra.mxu0 %v2059
        %2528 = vmatprep.subr.mxu0 %v2062
        %2529 = vmatpush1.msra.mxu0 %v2061
        %2530 = vmatprep.subr.mxu0 %v2064
        %2531 = vmatpush1.msra.mxu0 %v2063
        %2532 = vmatprep.subr.mxu0 0.0
        %2533 = vmatpush1.msra.mxu0 0.0
        %2534 = vmatprep.subr.mxu0 0.0
        %2535 = vmatpush1.msra.mxu0 0.0
        %2536 = vmatprep.subr.mxu0 0.0
        %2537 = vmatpush1.msra.mxu0 0.0
        %2538 = vmatprep.subr.mxu0 0.0
        %2539 = vmatpush1.msra.mxu0 0.0
        %2540 = vmatprep.subr.mxu0 0.0
        %2541 = vmatpush1.msra.mxu0 0.0
        %2542 = vmatprep.subr.mxu0 0.0
        %2543 = vmatpush1.msra.mxu0 0.0
        %2544 = vmatprep.subr.mxu0 0.0
        %2545 = vmatpush1.msra.mxu0 0.0
        %2546 = vmatprep.subr.mxu0 0.0
        %2547 = vmatpush1.msra.mxu0 0.0
        %2548 = vmatprep.subr.mxu0 0.0
        %2549 = vmatpush1.msra.mxu0 0.0
        %2550 = vmatprep.subr.mxu0 0.0
        %2551 = vmatpush1.msra.mxu0 0.0
        %2552 = vmatprep.subr.mxu0 0.0
        %2553 = vmatpush1.msra.mxu0 0.0
        %2554 = vmatprep.subr.mxu0 0.0
        %2555 = vmatpush1.msra.mxu0 0.0
        %2556 = vmatprep.subr.mxu0 0.0
        %2557 = vmatpush1.msra.mxu0 0.0
        %2558 = vmatprep.subr.mxu0 0.0
        %2559 = vmatpush1.msra.mxu0 0.0
        %2560 = vmatprep.subr.mxu0 0.0
        %2561 = vmatpush1.msra.mxu0 0.0
        %2562 = vmatprep.subr.mxu0 0.0
        %2563 = vmatpush1.msra.mxu0 0.0
        %2564 = vmatprep.subr.mxu0 0.0
        %2565 = vmatpush1.msra.mxu0 0.0
        %2566 = vmatprep.subr.mxu0 0.0
        %2567 = vmatpush1.msra.mxu0 0.0
        %2568 = vmatprep.subr.mxu0 0.0
        %2569 = vmatpush1.msra.mxu0 0.0
        %2570 = vmatprep.subr.mxu0 0.0
        %2571 = vmatpush1.msra.mxu0 0.0
        %2572 = vmatprep.subr.mxu0 0.0
        %2573 = vmatpush1.msra.mxu0 0.0
        %2574 = vmatprep.subr.mxu0 0.0
        %2575 = vmatpush1.msra.mxu0 0.0
        %2576 = vmatprep.subr.mxu0 0.0
        %2577 = vmatpush1.msra.mxu0 0.0
        %2578 = vmatprep.subr.mxu0 0.0
        %2579 = vmatpush1.msra.mxu0 0.0
        %2580 = vmatprep.mubr.f32.mxu0 0.0
        %2581 = vmatmul.mubr.f32.gmra.mrb[0].mxu0 %v2514
        %v2582 = vpop.f32.mrb[0].mxu0
        %v2583 = vadd.f32 0.0, %v2582
        %v2584 = vpop.f32.mrb[0].mxu0
        %v2585 = vadd.f32 0.0, %v2584
        %2586 = vdwg.mxu0
        %v2589 = vrot.slane %v2583, 4
        %v2590 = vrot.slane %v2585, 4
        %v2593 = vadd.f32 %v2047, %v2589
        %v2594 = vadd.f32 %v2048, %v2590
        %v2595 = vxor.u32 %v2593, 2147483648
        %v2596 = vmul.f32 %v2595, 1.442695
        %v2597 = vpow.pop %v2596
        %v2598 = vadd.f32 %v2597, 1.0
        %v2599 = vrcp.pop %v2598
        %v2600 = vmul.f32 1.0, %v2599
        %v2601 = vtanh.pop %v2594
        %v2602 = vxor.u32 %v2594, 2147483648
        %v2603 = vmul.f32 %v2602, 1.442695
        %v2604 = vpow.pop %v2603
        %v2605 = vadd.f32 %v2604, 1.0
        %v2606 = vrcp.pop %v2605
        %v2607 = vmul.f32 1.0, %v2606
        %v2609 = vrot.slane %v2502, 7
        %v2611 = vmul.f32 %v2600, %v2609
        %v2612 = vmul.f32 %v2600, %v2601
        %2614 = vrot.lane.b32.xlu0 %v2612, 64
        %v2615 = vpop.permute.xlu0 %2614
        %v2617 = vadd.f32 %v2611, %v2615
        %v2618 = vtanh.pop %v2617
        %v2619 = vmul.f32 %v2607, %v2618
        %2621 = vrot.lane.b32.xlu0 %v2619, 64
        %v2622 = vpop.permute.xlu0 %2621
        %vm2624 = vcmask 520196
        %2625 = vst.msk [vmem:[#allocation2] sm:$0x10] %vm2624, %v2622
        %v2626 = vrot.slane %v2619, 4
        %2627 = vrot.lane.b32.xlu0 %v2626, 64
        %v2628 = vpop.permute.xlu0 %2627
        %v2629 = vsel %vm1749, %v2628, 0
        %2631 = vmatprep.subr.mxu0 %v2050
        %2632 = vmatpush1.msra.mxu0 %v2049
        %2633 = vmatprep.subr.mxu0 %v2052
        %2634 = vmatpush1.msra.mxu0 %v2051
        %2635 = vmatprep.subr.mxu0 %v2054
        %2636 = vmatpush1.msra.mxu0 %v2053
        %2637 = vmatprep.subr.mxu0 %v2056
        %2638 = vmatpush1.msra.mxu0 %v2055
        %2639 = vmatprep.subr.mxu0 %v2058
        %2640 = vmatpush1.msra.mxu0 %v2057
        %2641 = vmatprep.subr.mxu0 %v2060
        %2642 = vmatpush1.msra.mxu0 %v2059
        %2643 = vmatprep.subr.mxu0 %v2062
        %2644 = vmatpush1.msra.mxu0 %v2061
        %2645 = vmatprep.subr.mxu0 %v2064
        %2646 = vmatpush1.msra.mxu0 %v2063
        %2647 = vmatprep.subr.mxu0 0.0
        %2648 = vmatpush1.msra.mxu0 0.0
        %2649 = vmatprep.subr.mxu0 0.0
        %2650 = vmatpush1.msra.mxu0 0.0
        %2651 = vmatprep.subr.mxu0 0.0
        %2652 = vmatpush1.msra.mxu0 0.0
        %2653 = vmatprep.subr.mxu0 0.0
        %2654 = vmatpush1.msra.mxu0 0.0
        %2655 = vmatprep.subr.mxu0 0.0
        %2656 = vmatpush1.msra.mxu0 0.0
        %2657 = vmatprep.subr.mxu0 0.0
        %2658 = vmatpush1.msra.mxu0 0.0
        %2659 = vmatprep.subr.mxu0 0.0
        %2660 = vmatpush1.msra.mxu0 0.0
        %2661 = vmatprep.subr.mxu0 0.0
        %2662 = vmatpush1.msra.mxu0 0.0
        %2663 = vmatprep.subr.mxu0 0.0
        %2664 = vmatpush1.msra.mxu0 0.0
        %2665 = vmatprep.subr.mxu0 0.0
        %2666 = vmatpush1.msra.mxu0 0.0
        %2667 = vmatprep.subr.mxu0 0.0
        %2668 = vmatpush1.msra.mxu0 0.0
        %2669 = vmatprep.subr.mxu0 0.0
        %2670 = vmatpush1.msra.mxu0 0.0
        %2671 = vmatprep.subr.mxu0 0.0
        %2672 = vmatpush1.msra.mxu0 0.0
        %2673 = vmatprep.subr.mxu0 0.0
        %2674 = vmatpush1.msra.mxu0 0.0
        %2675 = vmatprep.subr.mxu0 0.0
        %2676 = vmatpush1.msra.mxu0 0.0
        %2677 = vmatprep.subr.mxu0 0.0
        %2678 = vmatpush1.msra.mxu0 0.0
        %2679 = vmatprep.subr.mxu0 0.0
        %2680 = vmatpush1.msra.mxu0 0.0
        %2681 = vmatprep.subr.mxu0 0.0
        %2682 = vmatpush1.msra.mxu0 0.0
        %2683 = vmatprep.subr.mxu0 0.0
        %2684 = vmatpush1.msra.mxu0 0.0
        %2685 = vmatprep.subr.mxu0 0.0
        %2686 = vmatpush1.msra.mxu0 0.0
        %2687 = vmatprep.subr.mxu0 0.0
        %2688 = vmatpush1.msra.mxu0 0.0
        %2689 = vmatprep.subr.mxu0 0.0
        %2690 = vmatpush1.msra.mxu0 0.0
        %2691 = vmatprep.subr.mxu0 0.0
        %2692 = vmatpush1.msra.mxu0 0.0
        %2693 = vmatprep.subr.mxu0 0.0
        %2694 = vmatpush1.msra.mxu0 0.0
        %2695 = vmatprep.mubr.f32.mxu0 0.0
        %2696 = vmatmul.mubr.f32.gmra.mrb[0].mxu0 %v2629
        %v2697 = vpop.f32.mrb[0].mxu0
        %v2698 = vadd.f32 0.0, %v2697
        %v2699 = vpop.f32.mrb[0].mxu0
        %v2700 = vadd.f32 0.0, %v2699
        %2701 = vdwg.mxu0
        %v2704 = vrot.slane %v2698, 3
        %v2705 = vrot.slane %v2700, 3
        %v2708 = vadd.f32 %v2047, %v2704
        %v2709 = vadd.f32 %v2048, %v2705
        %v2710 = vxor.u32 %v2708, 2147483648
        %v2711 = vmul.f32 %v2710, 1.442695
        %v2712 = vpow.pop %v2711
        %v2713 = vadd.f32 %v2712, 1.0
        %v2714 = vrcp.pop %v2713
        %v2715 = vmul.f32 1.0, %v2714
        %v2716 = vtanh.pop %v2709
        %v2717 = vxor.u32 %v2709, 2147483648
        %v2718 = vmul.f32 %v2717, 1.442695
        %v2719 = vpow.pop %v2718
        %v2720 = vadd.f32 %v2719, 1.0
        %v2721 = vrcp.pop %v2720
        %v2722 = vmul.f32 1.0, %v2721
        %v2724 = vrot.slane %v2617, 7
        %v2726 = vmul.f32 %v2715, %v2724
        %v2727 = vmul.f32 %v2715, %v2716
        %2729 = vrot.lane.b32.xlu0 %v2727, 64
        %v2730 = vpop.permute.xlu0 %2729
        %v2732 = vadd.f32 %v2726, %v2730
        %v2733 = vtanh.pop %v2732
        %v2734 = vmul.f32 %v2722, %v2733
        %2736 = vrot.lane.b32.xlu0 %v2734, 64
        %v2737 = vpop.permute.xlu0 %2736
        %vm2739 = vcmask 521221
        %2740 = vst.msk [vmem:[#allocation2] sm:$0x20] %vm2739, %v2737
        %v2741 = vrot.slane %v2734, 5
        %2742 = vrot.lane.b32.xlu0 %v2741, 64
        %v2743 = vpop.permute.xlu0 %2742
        %v2744 = vsel %vm1749, %v2743, 0
        %2746 = vmatprep.subr.mxu0 %v2050
        %2747 = vmatpush1.msra.mxu0 %v2049
        %2748 = vmatprep.subr.mxu0 %v2052
        %2749 = vmatpush1.msra.mxu0 %v2051
        %2750 = vmatprep.subr.mxu0 %v2054
        %2751 = vmatpush1.msra.mxu0 %v2053
        %2752 = vmatprep.subr.mxu0 %v2056
        %2753 = vmatpush1.msra.mxu0 %v2055
        %2754 = vmatprep.subr.mxu0 %v2058
        %2755 = vmatpush1.msra.mxu0 %v2057
        %2756 = vmatprep.subr.mxu0 %v2060
        %2757 = vmatpush1.msra.mxu0 %v2059
        %2758 = vmatprep.subr.mxu0 %v2062
        %2759 = vmatpush1.msra.mxu0 %v2061
        %2760 = vmatprep.subr.mxu0 %v2064
        %2761 = vmatpush1.msra.mxu0 %v2063
        %2762 = vmatprep.subr.mxu0 0.0
        %2763 = vmatpush1.msra.mxu0 0.0
        %2764 = vmatprep.subr.mxu0 0.0
        %2765 = vmatpush1.msra.mxu0 0.0
        %2766 = vmatprep.subr.mxu0 0.0
        %2767 = vmatpush1.msra.mxu0 0.0
        %2768 = vmatprep.subr.mxu0 0.0
        %2769 = vmatpush1.msra.mxu0 0.0
        %2770 = vmatprep.subr.mxu0 0.0
        %2771 = vmatpush1.msra.mxu0 0.0
        %2772 = vmatprep.subr.mxu0 0.0
        %2773 = vmatpush1.msra.mxu0 0.0
        %2774 = vmatprep.subr.mxu0 0.0
        %2775 = vmatpush1.msra.mxu0 0.0
        %2776 = vmatprep.subr.mxu0 0.0
        %2777 = vmatpush1.msra.mxu0 0.0
        %2778 = vmatprep.subr.mxu0 0.0
        %2779 = vmatpush1.msra.mxu0 0.0
        %2780 = vmatprep.subr.mxu0 0.0
        %2781 = vmatpush1.msra.mxu0 0.0
        %2782 = vmatprep.subr.mxu0 0.0
        %2783 = vmatpush1.msra.mxu0 0.0
        %2784 = vmatprep.subr.mxu0 0.0
        %2785 = vmatpush1.msra.mxu0 0.0
        %2786 = vmatprep.subr.mxu0 0.0
        %2787 = vmatpush1.msra.mxu0 0.0
        %2788 = vmatprep.subr.mxu0 0.0
        %2789 = vmatpush1.msra.mxu0 0.0
        %2790 = vmatprep.subr.mxu0 0.0
        %2791 = vmatpush1.msra.mxu0 0.0
        %2792 = vmatprep.subr.mxu0 0.0
        %2793 = vmatpush1.msra.mxu0 0.0
        %2794 = vmatprep.subr.mxu0 0.0
        %2795 = vmatpush1.msra.mxu0 0.0
        %2796 = vmatprep.subr.mxu0 0.0
        %2797 = vmatpush1.msra.mxu0 0.0
        %2798 = vmatprep.subr.mxu0 0.0
        %2799 = vmatpush1.msra.mxu0 0.0
        %2800 = vmatprep.subr.mxu0 0.0
        %2801 = vmatpush1.msra.mxu0 0.0
        %2802 = vmatprep.subr.mxu0 0.0
        %2803 = vmatpush1.msra.mxu0 0.0
        %2804 = vmatprep.subr.mxu0 0.0
        %2805 = vmatpush1.msra.mxu0 0.0
        %2806 = vmatprep.subr.mxu0 0.0
        %2807 = vmatpush1.msra.mxu0 0.0
        %2808 = vmatprep.subr.mxu0 0.0
        %2809 = vmatpush1.msra.mxu0 0.0
        %2810 = vmatprep.mubr.f32.mxu0 0.0
        %2811 = vmatmul.mubr.f32.gmra.mrb[0].mxu0 %v2744
        %v2812 = vpop.f32.mrb[0].mxu0
        %v2813 = vadd.f32 0.0, %v2812
        %v2814 = vpop.f32.mrb[0].mxu0
        %v2815 = vadd.f32 0.0, %v2814
        %2816 = vdwg.mxu0
        %v2819 = vrot.slane %v2813, 2
        %v2820 = vrot.slane %v2815, 2
        %v2823 = vadd.f32 %v2047, %v2819
        %v2824 = vadd.f32 %v2048, %v2820
        %v2825 = vxor.u32 %v2823, 2147483648
        %v2826 = vmul.f32 %v2825, 1.442695
        %v2827 = vpow.pop %v2826
        %v2828 = vadd.f32 %v2827, 1.0
        %v2829 = vrcp.pop %v2828
        %v2830 = vmul.f32 1.0, %v2829
        %v2831 = vtanh.pop %v2824
        %v2832 = vxor.u32 %v2824, 2147483648
        %v2833 = vmul.f32 %v2832, 1.442695
        %v2834 = vpow.pop %v2833
        %v2835 = vadd.f32 %v2834, 1.0
        %v2836 = vrcp.pop %v2835
        %v2837 = vmul.f32 1.0, %v2836
        %v2839 = vrot.slane %v2732, 7
        %v2841 = vmul.f32 %v2830, %v2839
        %v2842 = vmul.f32 %v2830, %v2831
        %2844 = vrot.lane.b32.xlu0 %v2842, 64
        %v2845 = vpop.permute.xlu0 %2844
        %v2847 = vadd.f32 %v2841, %v2845
        %v2848 = vtanh.pop %v2847
        %v2849 = vmul.f32 %v2837, %v2848
        %2851 = vrot.lane.b32.xlu0 %v2849, 64
        %v2852 = vpop.permute.xlu0 %2851
        %vm2854 = vcmask 522246
        %2855 = vst.msk [vmem:[#allocation2] sm:$0x40] %vm2854, %v2852
        %v2856 = vrot.slane %v2849, 6
        %2857 = vrot.lane.b32.xlu0 %v2856, 64
        %v2858 = vpop.permute.xlu0 %2857
        %v2859 = vsel %vm1749, %v2858, 0
        %2861 = vmatprep.subr.mxu0 %v2050
        %2862 = vmatpush1.msra.mxu0 %v2049
        %2863 = vmatprep.subr.mxu0 %v2052
        %2864 = vmatpush1.msra.mxu0 %v2051
        %2865 = vmatprep.subr.mxu0 %v2054
        %2866 = vmatpush1.msra.mxu0 %v2053
        %2867 = vmatprep.subr.mxu0 %v2056
        %2868 = vmatpush1.msra.mxu0 %v2055
        %2869 = vmatprep.subr.mxu0 %v2058
        %2870 = vmatpush1.msra.mxu0 %v2057
        %2871 = vmatprep.subr.mxu0 %v2060
        %2872 = vmatpush1.msra.mxu0 %v2059
        %2873 = vmatprep.subr.mxu0 %v2062
        %2874 = vmatpush1.msra.mxu0 %v2061
        %2875 = vmatprep.subr.mxu0 %v2064
        %2876 = vmatpush1.msra.mxu0 %v2063
        %2877 = vmatprep.subr.mxu0 0.0
        %2878 = vmatpush1.msra.mxu0 0.0
        %2879 = vmatprep.subr.mxu0 0.0
        %2880 = vmatpush1.msra.mxu0 0.0
        %2881 = vmatprep.subr.mxu0 0.0
        %2882 = vmatpush1.msra.mxu0 0.0
        %2883 = vmatprep.subr.mxu0 0.0
        %2884 = vmatpush1.msra.mxu0 0.0
        %2885 = vmatprep.subr.mxu0 0.0
        %2886 = vmatpush1.msra.mxu0 0.0
        %2887 = vmatprep.subr.mxu0 0.0
        %2888 = vmatpush1.msra.mxu0 0.0
        %2889 = vmatprep.subr.mxu0 0.0
        %2890 = vmatpush1.msra.mxu0 0.0
        %2891 = vmatprep.subr.mxu0 0.0
        %2892 = vmatpush1.msra.mxu0 0.0
        %2893 = vmatprep.subr.mxu0 0.0
        %2894 = vmatpush1.msra.mxu0 0.0
        %2895 = vmatprep.subr.mxu0 0.0
        %2896 = vmatpush1.msra.mxu0 0.0
        %2897 = vmatprep.subr.mxu0 0.0
        %2898 = vmatpush1.msra.mxu0 0.0
        %2899 = vmatprep.subr.mxu0 0.0
        %2900 = vmatpush1.msra.mxu0 0.0
        %2901 = vmatprep.subr.mxu0 0.0
        %2902 = vmatpush1.msra.mxu0 0.0
        %2903 = vmatprep.subr.mxu0 0.0
        %2904 = vmatpush1.msra.mxu0 0.0
        %2905 = vmatprep.subr.mxu0 0.0
        %2906 = vmatpush1.msra.mxu0 0.0
        %2907 = vmatprep.subr.mxu0 0.0
        %2908 = vmatpush1.msra.mxu0 0.0
        %2909 = vmatprep.subr.mxu0 0.0
        %2910 = vmatpush1.msra.mxu0 0.0
        %2911 = vmatprep.subr.mxu0 0.0
        %2912 = vmatpush1.msra.mxu0 0.0
        %2913 = vmatprep.subr.mxu0 0.0
        %2914 = vmatpush1.msra.mxu0 0.0
        %2915 = vmatprep.subr.mxu0 0.0
        %2916 = vmatpush1.msra.mxu0 0.0
        %2917 = vmatprep.subr.mxu0 0.0
        %2918 = vmatpush1.msra.mxu0 0.0
        %2919 = vmatprep.subr.mxu0 0.0
        %2920 = vmatpush1.msra.mxu0 0.0
        %2921 = vmatprep.subr.mxu0 0.0
        %2922 = vmatpush1.msra.mxu0 0.0
        %2923 = vmatprep.subr.mxu0 0.0
        %2924 = vmatpush1.msra.mxu0 0.0
        %2925 = vmatprep.mubr.f32.mxu0 0.0
        %2926 = vmatmul.mubr.f32.gmra.mrb[0].mxu0 %v2859
        %v2927 = vpop.f32.mrb[0].mxu0
        %v2928 = vadd.f32 0.0, %v2927
        %v2929 = vpop.f32.mrb[0].mxu0
        %v2930 = vadd.f32 0.0, %v2929
        %2931 = vdwg.mxu0
        %v2934 = vrot.slane %v2928, 1
        %v2935 = vrot.slane %v2930, 1
        %v2938 = vadd.f32 %v2047, %v2934
        %v2939 = vadd.f32 %v2048, %v2935
        %v2940 = vxor.u32 %v2938, 2147483648
        %v2941 = vmul.f32 %v2940, 1.442695
        %v2942 = vpow.pop %v2941
        %v2943 = vadd.f32 %v2942, 1.0
        %v2944 = vrcp.pop %v2943
        %v2945 = vmul.f32 1.0, %v2944
        %v2946 = vtanh.pop %v2939
        %v2947 = vxor.u32 %v2939, 2147483648
        %v2948 = vmul.f32 %v2947, 1.442695
        %v2949 = vpow.pop %v2948
        %v2950 = vadd.f32 %v2949, 1.0
        %v2951 = vrcp.pop %v2950
        %v2952 = vmul.f32 1.0, %v2951
        %v2954 = vrot.slane %v2847, 7
        %v2956 = vmul.f32 %v2945, %v2954
        %v2957 = vmul.f32 %v2945, %v2946
        %2959 = vrot.lane.b32.xlu0 %v2957, 64
        %v2960 = vpop.permute.xlu0 %2959
        %v2962 = vadd.f32 %v2956, %v2960
        %v2963 = vtanh.pop %v2962
        %v2964 = vmul.f32 %v2952, %v2963
        %2966 = vrot.lane.b32.xlu0 %v2964, 64
        %v2967 = vpop.permute.xlu0 %2966
        %vm2969 = vcmask 523271
        %2970 = vst.msk [vmem:[#allocation2] sm:$0x80] %vm2969, %v2967
        %v2971 = vld [vmem:[#allocation2] sm:$0xff]
        %v2972 = vpack.c.bf16 %v2971, %v2971
        %v2973 = vld [vmem:[%s21] sm:$0xf]
        %v2974 = vld [vmem:[%s21 + $0x4] sm:$0xf]
        %v2975 = vld [vmem:[%s21 + $0x8] sm:$0xf]
        %v2976 = vld [vmem:[%s21 + $0xc] sm:$0xf]
        %v2977 = vld [vmem:[%s22] sm:$0xf]
        %v2978 = vld [vmem:[%s22 + $0x4] sm:$0xf]
        %v2979 = vld [vmem:[%s22 + $0x8] sm:$0xf]
        %v2980 = vld [vmem:[%s22 + $0xc] sm:$0xf]
        %2982 = vrot.lane.b32.xlu0 %v2972, 96
        %v2983 = vpop.permute.xlu0 %2982
        %v2988 = vunpack.c.l.b16 %v2977
        %v2989 = vunpack.c.l.b16 %v2978
        %v2990 = vunpack.c.l.b16 %v2979
        %v2991 = vunpack.c.l.b16 %v2980
        %v2992 = vpack.c.b16 %v2989, %v2988
        %v2993 = vpack.c.b16 %v2991, %v2990
        %v2997 = vsel %vm830, %v2983, 0
        %2999 = vmatprep.subr.bf16.mxu0 0
        %3000 = vmatpush1.bf16.msra.mxu0 %v2992
        %3001 = vmatprep.subr.bf16.mxu0 0
        %3002 = vmatpush1.bf16.msra.mxu0 %v2993
        %3003 = vmatprep.subr.bf16.mxu0 0
        %3004 = vmatpush1.bf16.msra.mxu0 0
        %3005 = vmatprep.subr.bf16.mxu0 0
        %3006 = vmatpush1.bf16.msra.mxu0 0
        %3007 = vmatprep.subr.bf16.mxu0 0
        %3008 = vmatpush1.bf16.msra.mxu0 0
        %3009 = vmatprep.subr.bf16.mxu0 0
        %3010 = vmatpush1.bf16.msra.mxu0 0
        %3011 = vmatprep.subr.bf16.mxu0 0
        %3012 = vmatpush1.bf16.msra.mxu0 0
        %3013 = vmatprep.subr.bf16.mxu0 0
        %3014 = vmatpush1.bf16.msra.mxu0 0
        %3015 = vmatprep.subr.bf16.mxu0 0
        %3016 = vmatpush1.bf16.msra.mxu0 0
        %3017 = vmatprep.subr.bf16.mxu0 0
        %3018 = vmatpush1.bf16.msra.mxu0 0
        %3019 = vmatprep.subr.bf16.mxu0 0
        %3020 = vmatpush1.bf16.msra.mxu0 0
        %3021 = vmatprep.subr.bf16.mxu0 0
        %3022 = vmatpush1.bf16.msra.mxu0 0
        %3023 = vmatprep.subr.bf16.mxu0 0
        %3024 = vmatpush1.bf16.msra.mxu0 0
        %3025 = vmatprep.subr.bf16.mxu0 0
        %3026 = vmatpush1.bf16.msra.mxu0 0
        %3027 = vmatprep.subr.bf16.mxu0 0
        %3028 = vmatpush1.bf16.msra.mxu0 0
        %3029 = vmatprep.subr.bf16.mxu0 0
        %3030 = vmatpush1.bf16.msra.mxu0 0
        %3031 = vmatprep.mubr.bf16.mxu0 0
        %3032 = vmatmul.mubr.bf16.gmra.mrb[0].mxu0 %v2997
        %v3033 = vpop.f32.mrb[0].mxu0
        %v3034 = vadd.f32 0.0, %v3033
        %v3035 = vpop.f32.mrb[0].mxu0
        %v3036 = vpop.f32.mrb[0].mxu0
        %v3037 = vpop.f32.mrb[0].mxu0
        %3038 = vdwg.mxu0
        %3039 = vmatprep.subr.mxu0 0.0
        %3040 = vmatpush1.msra.mxu0 %v3034
        %3041 = vmatprep.subr.mxu0 0.0
        %3042 = vmatpush1.msra.mxu0 0.0
        %3043 = vmatprep.subr.mxu0 0.0
        %3044 = vmatpush1.msra.mxu0 0.0
        %3045 = vmatprep.subr.mxu0 0.0
        %3046 = vmatpush1.msra.mxu0 0.0
        %3047 = vmatprep.subr.mxu0 0.0
        %3048 = vmatpush1.msra.mxu0 0.0
        %3049 = vmatprep.subr.mxu0 0.0
        %3050 = vmatpush1.msra.mxu0 0.0
        %3051 = vmatprep.subr.mxu0 0.0
        %3052 = vmatpush1.msra.mxu0 0.0
        %3053 = vmatprep.subr.mxu0 0.0
        %3054 = vmatpush1.msra.mxu0 0.0
        %3055 = vmatprep.subr.mxu0 0.0
        %3056 = vmatpush1.msra.mxu0 0.0
        %3057 = vmatprep.subr.mxu0 0.0
        %3058 = vmatpush1.msra.mxu0 0.0
        %3059 = vmatprep.subr.mxu0 0.0
        %3060 = vmatpush1.msra.mxu0 0.0
        %3061 = vmatprep.subr.mxu0 0.0
        %3062 = vmatpush1.msra.mxu0 0.0
        %3063 = vmatprep.subr.mxu0 0.0
        %3064 = vmatpush1.msra.mxu0 0.0
        %3065 = vmatprep.subr.mxu0 0.0
        %3066 = vmatpush1.msra.mxu0 0.0
        %3067 = vmatprep.subr.mxu0 0.0
        %3068 = vmatpush1.msra.mxu0 0.0
        %3069 = vmatprep.subr.mxu0 0.0
        %3070 = vmatpush1.msra.mxu0 0.0
        %3071 = vmatprep.subr.mxu0 0.0
        %3072 = vmatpush1.msra.mxu0 0.0
        %3073 = vmatprep.subr.mxu0 0.0
        %3074 = vmatpush1.msra.mxu0 0.0
        %3075 = vmatprep.subr.mxu0 0.0
        %3076 = vmatpush1.msra.mxu0 0.0
        %3077 = vmatprep.subr.mxu0 0.0
        %3078 = vmatpush1.msra.mxu0 0.0
        %3079 = vmatprep.subr.mxu0 0.0
        %3080 = vmatpush1.msra.mxu0 0.0
        %3081 = vmatprep.subr.mxu0 0.0
        %3082 = vmatpush1.msra.mxu0 0.0
        %3083 = vmatprep.subr.mxu0 0.0
        %3084 = vmatpush1.msra.mxu0 0.0
        %3085 = vmatprep.subr.mxu0 0.0
        %3086 = vmatpush1.msra.mxu0 0.0
        %3087 = vmatprep.subr.mxu0 0.0
        %3088 = vmatpush1.msra.mxu0 0.0
        %3089 = vmatprep.subr.mxu0 0.0
        %3090 = vmatpush1.msra.mxu0 0.0
        %3091 = vmatprep.subr.mxu0 0.0
        %3092 = vmatpush1.msra.mxu0 0.0
        %3093 = vmatprep.subr.mxu0 0.0
        %3094 = vmatpush1.msra.mxu0 0.0
        %3095 = vmatprep.subr.mxu0 0.0
        %3096 = vmatpush1.msra.mxu0 0.0
        %3097 = vmatprep.subr.mxu0 0.0
        %3098 = vmatpush1.msra.mxu0 0.0
        %3099 = vmatprep.subr.mxu0 0.0
        %3100 = vmatpush1.msra.mxu0 0.0
        %3101 = vmatprep.subr.mxu0 0.0
        %3102 = vmatpush1.msra.mxu0 0.0
        %3103 = vmatprep.mubr.f32.mxu0 0.0
        %3104 = vmatmul.mubr.f32.gmra.mrb[0].mxu0 %v1825
        %v3105 = vpop.f32.mrb[0].mxu0
        %v3106 = vadd.f32 0.0, %v3105
        %v3107 = vpop.f32.mrb[0].mxu0
        %3108 = vdwg.mxu0
        %v3113 = vunpack.c.l.b16 %v2973
        %v3114 = vunpack.c.l.b16 %v2974
        %v3115 = vunpack.c.l.b16 %v2975
        %v3116 = vunpack.c.l.b16 %v2976
        %v3117 = vpack.c.b16 %v3114, %v3113
        %v3118 = vpack.c.b16 %v3116, %v3115
        %v3122 = vsel %vm830, %v2972, 0
        %3124 = vmatprep.subr.bf16.mxu0 0
        %3125 = vmatpush1.bf16.msra.mxu0 %v3117
        %3126 = vmatprep.subr.bf16.mxu0 0
        %3127 = vmatpush1.bf16.msra.mxu0 %v3118
        %3128 = vmatprep.subr.bf16.mxu0 0
        %3129 = vmatpush1.bf16.msra.mxu0 0
        %3130 = vmatprep.subr.bf16.mxu0 0
        %3131 = vmatpush1.bf16.msra.mxu0 0
        %3132 = vmatprep.subr.bf16.mxu0 0
        %3133 = vmatpush1.bf16.msra.mxu0 0
        %3134 = vmatprep.subr.bf16.mxu0 0
        %3135 = vmatpush1.bf16.msra.mxu0 0
        %3136 = vmatprep.subr.bf16.mxu0 0
        %3137 = vmatpush1.bf16.msra.mxu0 0
        %3138 = vmatprep.subr.bf16.mxu0 0
        %3139 = vmatpush1.bf16.msra.mxu0 0
        %3140 = vmatprep.subr.bf16.mxu0 0
        %3141 = vmatpush1.bf16.msra.mxu0 0
        %3142 = vmatprep.subr.bf16.mxu0 0
        %3143 = vmatpush1.bf16.msra.mxu0 0
        %3144 = vmatprep.subr.bf16.mxu0 0
        %3145 = vmatpush1.bf16.msra.mxu0 0
        %3146 = vmatprep.subr.bf16.mxu0 0
        %3147 = vmatpush1.bf16.msra.mxu0 0
        %3148 = vmatprep.subr.bf16.mxu0 0
        %3149 = vmatpush1.bf16.msra.mxu0 0
        %3150 = vmatprep.subr.bf16.mxu0 0
        %3151 = vmatpush1.bf16.msra.mxu0 0
        %3152 = vmatprep.subr.bf16.mxu0 0
        %3153 = vmatpush1.bf16.msra.mxu0 0
        %3154 = vmatprep.subr.bf16.mxu0 0
        %3155 = vmatpush1.bf16.msra.mxu0 0
        %3156 = vmatprep.mubr.bf16.mxu0 0
        %3157 = vmatmul.mubr.bf16.gmra.mrb[0].mxu0 %v3122
        %v3158 = vpop.f32.mrb[0].mxu0
        %v3159 = vadd.f32 %v3106, %v3158
        %v3160 = vpop.f32.mrb[0].mxu0
        %v3161 = vpop.f32.mrb[0].mxu0
        %v3162 = vpop.f32.mrb[0].mxu0
        %3163 = vdwg.mxu0
        %v3164 = vld [vmem:[%s23] sm:$0x1]
        %v3166 = vlaneseq
        %v3167 = vshrl.u32 %v3166, 7
        %v3168 = vsub.s32 0, %v3167
        %v3169 = vrot.slane %v3164, %v3168
        %v3171 = vadd.f32 %v3159, %v3169
        %v3172 = vld [vmem:[%s26] sm:$0xff]
        %v3173 = vlaneseq
        %v3174 = vshrl.u32 %v3173, 7
        %v3175 = vlaneseq
        %v3176 = vand.u32 %v3175, 127
        %v3177 = vld [vmem:[%s24] sm:$0x1]
        %v3178 = vadd.f32 %v3177, %v3171
        %v3179 = vlaneseq
        %v3180 = vshrl.u32 %v3179, 7
        %v3181 = vsub.s32 0, %v3180
        %v3182 = vrot.slane %v3178, %v3181
        %3184 = vbcast.lane.b32.xlu0 %v3182, 256
        %v3185 = vpop.permute.xlu0 %3184
        %v3186 = vadd.f32 %v3185, %v3172
        %v3187 = vlaneseq
        %v3188 = vshrl.u32 %v3187, 7
        %v3189 = vsub.s32 1, %v3188
        %v3190 = vrot.slane %v3171, %v3189
        %v3191 = vadd.f32 %v3186, %v3190
        %v3192 = vsel %vm947, %v3191, -inf
        %v3193 = vrot.slane %v3192, 4
        %v3194 = vmax.f32 %v3192, %v3193
        %v3195 = vrot.slane %v3194, 2
        %v3196 = vmax.f32 %v3194, %v3195
        %v3197 = vrot.slane %v3196, 1
        %v3198 = vmax.f32 %v3196, %v3197
        %vm3199 = vcmp.ge.f32.partialorder %v3191, %v3198
        %v3200 = vsel %vm3199, %v3174, 8
        %v3201 = vsel %vm947, %v3200, 2147483647
        %v3202 = vrot.slane %v3201, 4
        %vm3203 = vcmp.lt.s32.totalorder %v3201, %v3202
        %v3204 = vsel %vm3203, %v3201, %v3202
        %v3205 = vrot.slane %v3204, 2
        %vm3206 = vcmp.lt.s32.totalorder %v3204, %v3205
        %v3207 = vsel %vm3206, %v3204, %v3205
        %v3208 = vrot.slane %v3207, 1
        %vm3209 = vcmp.lt.s32.totalorder %v3207, %v3208
        %v3210 = vsel %vm3209, %v3207, %v3208
        %vm3211 = vcmask 57344
        %3212 = vst.msk [vmem:[#allocation3 + $0x1] sm:$0x1] %vm3211, %v3210
        %vm3213 = vcmp.gt.f32.partialorder %v829, 0.0
        %v3214 = vsel %vm3213, 1, 0
        %3215 = vset.pattern.permute.xlu0 1
        %3216 = vperm.xlu0 %3215, %v3214
        %v3217 = vpop.permute.xlu0 %3216
        %v3218 = vlaneseq
        %v3219 = vshrl.u32 %v3218, 7
        %v3220 = vsub.s32 0, %v3219
        %v3221 = vrot.slane %v3217, %v3220
        %vm3222 = vcmp.eq.s32.totalorder %v3221, 1
        %v3223 = vsel %vm3222, %v3198, %v3178
        %v3224 = vlaneseq
        %v3225 = vshrl.u32 %v3224, 7
        %v3226 = vsub.s32 0, %v3225
        %v3227 = vrot.slane %v3223, %v3226
        %3229 = vbcast.lane.b32.xlu0 %v3227, 256
        %v3230 = vpop.permute.xlu0 %3229
        %v3231 = vadd.f32 %v3230, %v3172
        %v3232 = vlaneseq
        %v3233 = vshrl.u32 %v3232, 7
        %v3234 = vsub.s32 2, %v3233
        %v3235 = vrot.slane %v3171, %v3234
        %v3236 = vadd.f32 %v3231, %v3235
        %v3237 = vsel %vm947, %v3236, -inf
        %v3238 = vrot.slane %v3237, 4
        %v3239 = vmax.f32 %v3237, %v3238
        %v3240 = vrot.slane %v3239, 2
        %v3241 = vmax.f32 %v3239, %v3240
        %v3242 = vrot.slane %v3241, 1
        %v3243 = vmax.f32 %v3241, %v3242
        %vm3244 = vcmp.ge.f32.partialorder %v3236, %v3243
        %v3245 = vsel %vm3244, %v3174, 8
        %v3246 = vsel %vm947, %v3245, 2147483647
        %v3247 = vrot.slane %v3246, 4
        %vm3248 = vcmp.lt.s32.totalorder %v3246, %v3247
        %v3249 = vsel %vm3248, %v3246, %v3247
        %v3250 = vrot.slane %v3249, 2
        %vm3251 = vcmp.lt.s32.totalorder %v3249, %v3250
        %v3252 = vsel %vm3251, %v3249, %v3250
        %v3253 = vrot.slane %v3252, 1
        %vm3254 = vcmp.lt.s32.totalorder %v3252, %v3253
        %v3255 = vsel %vm3254, %v3252, %v3253
        %3256 = vst.msk [vmem:[#allocation3 + $0x2] sm:$0x1] %vm3211, %v3255
        %3257 = vset.pattern.permute.xlu0 2
        %3258 = vperm.xlu0 %3257, %v3214
        %v3259 = vpop.permute.xlu0 %3258
        %v3260 = vlaneseq
        %v3261 = vshrl.u32 %v3260, 7
        %v3262 = vsub.s32 0, %v3261
        %v3263 = vrot.slane %v3259, %v3262
        %vm3264 = vcmp.eq.s32.totalorder %v3263, 1
        %v3265 = vsel %vm3264, %v3243, %v3223
        %v3266 = vlaneseq
        %v3267 = vshrl.u32 %v3266, 7
        %v3268 = vsub.s32 0, %v3267
        %v3269 = vrot.slane %v3265, %v3268
        %3271 = vbcast.lane.b32.xlu0 %v3269, 256
        %v3272 = vpop.permute.xlu0 %3271
        %v3273 = vadd.f32 %v3272, %v3172
        %v3274 = vlaneseq
        %v3275 = vshrl.u32 %v3274, 7
        %v3276 = vsub.s32 3, %v3275
        %v3277 = vrot.slane %v3171, %v3276
        %v3278 = vadd.f32 %v3273, %v3277
        %v3279 = vsel %vm947, %v3278, -inf
        %v3280 = vrot.slane %v3279, 4
        %v3281 = vmax.f32 %v3279, %v3280
        %v3282 = vrot.slane %v3281, 2
        %v3283 = vmax.f32 %v3281, %v3282
        %v3284 = vrot.slane %v3283, 1
        %v3285 = vmax.f32 %v3283, %v3284
        %vm3286 = vcmp.ge.f32.partialorder %v3278, %v3285
        %v3287 = vsel %vm3286, %v3174, 8
        %v3288 = vsel %vm947, %v3287, 2147483647
        %v3289 = vrot.slane %v3288, 4
        %vm3290 = vcmp.lt.s32.totalorder %v3288, %v3289
        %v3291 = vsel %vm3290, %v3288, %v3289
        %v3292 = vrot.slane %v3291, 2
        %vm3293 = vcmp.lt.s32.totalorder %v3291, %v3292
        %v3294 = vsel %vm3293, %v3291, %v3292
        %v3295 = vrot.slane %v3294, 1
        %vm3296 = vcmp.lt.s32.totalorder %v3294, %v3295
        %v3297 = vsel %vm3296, %v3294, %v3295
        %3298 = vst.msk [vmem:[#allocation3 + $0x3] sm:$0x1] %vm3211, %v3297
        %3299 = vset.pattern.permute.xlu0 3
        %3300 = vperm.xlu0 %3299, %v3214
        %v3301 = vpop.permute.xlu0 %3300
        %v3302 = vlaneseq
        %v3303 = vshrl.u32 %v3302, 7
        %v3304 = vsub.s32 0, %v3303
        %v3305 = vrot.slane %v3301, %v3304
        %vm3306 = vcmp.eq.s32.totalorder %v3305, 1
        %v3307 = vsel %vm3306, %v3285, %v3265
        %v3308 = vlaneseq
        %v3309 = vshrl.u32 %v3308, 7
        %v3310 = vsub.s32 0, %v3309
        %v3311 = vrot.slane %v3307, %v3310
        %3313 = vbcast.lane.b32.xlu0 %v3311, 256
        %v3314 = vpop.permute.xlu0 %3313
        %v3315 = vadd.f32 %v3314, %v3172
        %v3316 = vlaneseq
        %v3317 = vshrl.u32 %v3316, 7
        %v3318 = vsub.s32 4, %v3317
        %v3319 = vrot.slane %v3171, %v3318
        %v3320 = vadd.f32 %v3315, %v3319
        %v3321 = vsel %vm947, %v3320, -inf
        %v3322 = vrot.slane %v3321, 4
        %v3323 = vmax.f32 %v3321, %v3322
        %v3324 = vrot.slane %v3323, 2
        %v3325 = vmax.f32 %v3323, %v3324
        %v3326 = vrot.slane %v3325, 1
        %v3327 = vmax.f32 %v3325, %v3326
        %vm3328 = vcmp.ge.f32.partialorder %v3320, %v3327
        %v3329 = vsel %vm3328, %v3174, 8
        %v3330 = vsel %vm947, %v3329, 2147483647
        %v3331 = vrot.slane %v3330, 4
        %vm3332 = vcmp.lt.s32.totalorder %v3330, %v3331
        %v3333 = vsel %vm3332, %v3330, %v3331
        %v3334 = vrot.slane %v3333, 2
        %vm3335 = vcmp.lt.s32.totalorder %v3333, %v3334
        %v3336 = vsel %vm3335, %v3333, %v3334
        %v3337 = vrot.slane %v3336, 1
        %vm3338 = vcmp.lt.s32.totalorder %v3336, %v3337
        %v3339 = vsel %vm3338, %v3336, %v3337
        %3340 = vst.msk [vmem:[#allocation3 + $0x4] sm:$0x1] %vm3211, %v3339
        %3341 = vset.pattern.permute.xlu0 4
        %3342 = vperm.xlu0 %3341, %v3214
        %v3343 = vpop.permute.xlu0 %3342
        %v3344 = vlaneseq
        %v3345 = vshrl.u32 %v3344, 7
        %v3346 = vsub.s32 0, %v3345
        %v3347 = vrot.slane %v3343, %v3346
        %vm3348 = vcmp.eq.s32.totalorder %v3347, 1
        %v3349 = vsel %vm3348, %v3327, %v3307
        %v3350 = vlaneseq
        %v3351 = vshrl.u32 %v3350, 7
        %v3352 = vsub.s32 0, %v3351
        %v3353 = vrot.slane %v3349, %v3352
        %3355 = vbcast.lane.b32.xlu0 %v3353, 256
        %v3356 = vpop.permute.xlu0 %3355
        %v3357 = vadd.f32 %v3356, %v3172
        %v3358 = vlaneseq
        %v3359 = vshrl.u32 %v3358, 7
        %v3360 = vsub.s32 5, %v3359
        %v3361 = vrot.slane %v3171, %v3360
        %v3362 = vadd.f32 %v3357, %v3361
        %v3363 = vsel %vm947, %v3362, -inf
        %v3364 = vrot.slane %v3363, 4
        %v3365 = vmax.f32 %v3363, %v3364
        %v3366 = vrot.slane %v3365, 2
        %v3367 = vmax.f32 %v3365, %v3366
        %v3368 = vrot.slane %v3367, 1
        %v3369 = vmax.f32 %v3367, %v3368
        %vm3370 = vcmp.ge.f32.partialorder %v3362, %v3369
        %v3371 = vsel %vm3370, %v3174, 8
        %v3372 = vsel %vm947, %v3371, 2147483647
        %v3373 = vrot.slane %v3372, 4
        %vm3374 = vcmp.lt.s32.totalorder %v3372, %v3373
        %v3375 = vsel %vm3374, %v3372, %v3373
        %v3376 = vrot.slane %v3375, 2
        %vm3377 = vcmp.lt.s32.totalorder %v3375, %v3376
        %v3378 = vsel %vm3377, %v3375, %v3376
        %v3379 = vrot.slane %v3378, 1
        %vm3380 = vcmp.lt.s32.totalorder %v3378, %v3379
        %v3381 = vsel %vm3380, %v3378, %v3379
        %3382 = vst.msk [vmem:[#allocation3 + $0x5] sm:$0x1] %vm3211, %v3381
        %3383 = vset.pattern.permute.xlu0 5
        %3384 = vperm.xlu0 %3383, %v3214
        %v3385 = vpop.permute.xlu0 %3384
        %v3386 = vlaneseq
        %v3387 = vshrl.u32 %v3386, 7
        %v3388 = vsub.s32 0, %v3387
        %v3389 = vrot.slane %v3385, %v3388
        %vm3390 = vcmp.eq.s32.totalorder %v3389, 1
        %v3391 = vsel %vm3390, %v3369, %v3349
        %v3392 = vlaneseq
        %v3393 = vshrl.u32 %v3392, 7
        %v3394 = vsub.s32 0, %v3393
        %v3395 = vrot.slane %v3391, %v3394
        %3397 = vbcast.lane.b32.xlu0 %v3395, 256
        %v3398 = vpop.permute.xlu0 %3397
        %v3399 = vadd.f32 %v3398, %v3172
        %v3400 = vlaneseq
        %v3401 = vshrl.u32 %v3400, 7
        %v3402 = vsub.s32 6, %v3401
        %v3403 = vrot.slane %v3171, %v3402
        %v3404 = vadd.f32 %v3399, %v3403
        %v3405 = vsel %vm947, %v3404, -inf
        %v3406 = vrot.slane %v3405, 4
        %v3407 = vmax.f32 %v3405, %v3406
        %v3408 = vrot.slane %v3407, 2
        %v3409 = vmax.f32 %v3407, %v3408
        %v3410 = vrot.slane %v3409, 1
        %v3411 = vmax.f32 %v3409, %v3410
        %vm3412 = vcmp.ge.f32.partialorder %v3404, %v3411
        %v3413 = vsel %vm3412, %v3174, 8
        %v3414 = vsel %vm947, %v3413, 2147483647
        %v3415 = vrot.slane %v3414, 4
        %vm3416 = vcmp.lt.s32.totalorder %v3414, %v3415
        %v3417 = vsel %vm3416, %v3414, %v3415
        %v3418 = vrot.slane %v3417, 2
        %vm3419 = vcmp.lt.s32.totalorder %v3417, %v3418
        %v3420 = vsel %vm3419, %v3417, %v3418
        %v3421 = vrot.slane %v3420, 1
        %vm3422 = vcmp.lt.s32.totalorder %v3420, %v3421
        %v3423 = vsel %vm3422, %v3420, %v3421
        %3424 = vst.msk [vmem:[#allocation3 + $0x6] sm:$0x1] %vm3211, %v3423
        %3425 = vset.pattern.permute.xlu0 6
        %3426 = vperm.xlu0 %3425, %v3214
        %v3427 = vpop.permute.xlu0 %3426
        %v3428 = vlaneseq
        %v3429 = vshrl.u32 %v3428, 7
        %v3430 = vsub.s32 0, %v3429
        %v3431 = vrot.slane %v3427, %v3430
        %vm3432 = vcmp.eq.s32.totalorder %v3431, 1
        %v3433 = vsel %vm3432, %v3411, %v3391
        %v3434 = vlaneseq
        %v3435 = vshrl.u32 %v3434, 7
        %v3436 = vsub.s32 0, %v3435
        %v3437 = vrot.slane %v3433, %v3436
        %3439 = vbcast.lane.b32.xlu0 %v3437, 256
        %v3440 = vpop.permute.xlu0 %3439
        %v3441 = vadd.f32 %v3440, %v3172
        %v3442 = vlaneseq
        %v3443 = vshrl.u32 %v3442, 7
        %v3444 = vsub.s32 7, %v3443
        %v3445 = vrot.slane %v3171, %v3444
        %v3446 = vadd.f32 %v3441, %v3445
        %v3447 = vsel %vm947, %v3446, -inf
        %v3448 = vrot.slane %v3447, 4
        %v3449 = vmax.f32 %v3447, %v3448
        %v3450 = vrot.slane %v3449, 2
        %v3451 = vmax.f32 %v3449, %v3450
        %v3452 = vrot.slane %v3451, 1
        %v3453 = vmax.f32 %v3451, %v3452
        %vm3454 = vcmp.ge.f32.partialorder %v3446, %v3453
        %v3455 = vsel %vm3454, %v3174, 8
        %v3456 = vsel %vm947, %v3455, 2147483647
        %v3457 = vrot.slane %v3456, 4
        %vm3458 = vcmp.lt.s32.totalorder %v3456, %v3457
        %v3459 = vsel %vm3458, %v3456, %v3457
        %v3460 = vrot.slane %v3459, 2
        %vm3461 = vcmp.lt.s32.totalorder %v3459, %v3460
        %v3462 = vsel %vm3461, %v3459, %v3460
        %v3463 = vrot.slane %v3462, 1
        %vm3464 = vcmp.lt.s32.totalorder %v3462, %v3463
        %v3465 = vsel %vm3464, %v3462, %v3463
        %3466 = vst.msk [vmem:[#allocation3 + $0x7] sm:$0x1] %vm3211, %v3465
        %3467 = vset.pattern.permute.xlu0 7
        %3468 = vperm.xlu0 %3467, %v3214
        %v3469 = vpop.permute.xlu0 %3468
        %v3470 = vlaneseq
        %v3471 = vshrl.u32 %v3470, 7
        %v3472 = vsub.s32 0, %v3471
        %v3473 = vrot.slane %v3469, %v3472
        %vm3474 = vcmp.eq.s32.totalorder %v3473, 1
        %v3475 = vsel %vm3474, %v3453, %v3433
        %v3476 = vld [vmem:[%s25] sm:$0x1]
        %v3477 = vadd.f32 %v3475, %v3476
        %v3478 = vsel %vm3211, %v3477, -inf
        %3479 = vmax.xlane.f32.xlu0 %v3478
        %v3480 = vpop.xlane.xlu0 %3479
        %vm3481 = vcmp.ge.f32.partialorder %v3477, %v3480
        %v3482 = vsel %vm3481, %v3176, 8
        %v3483 = vsel %vm3211, %v3482, 2147483647
        %v3484 = vand.u32 %v3483, 65535
        %v3485 = vshra.s32 %v3483, 16
        %v3486 = vcvt.s32.f32 %v3484
        %v3487 = vcvt.s32.f32 %v3485
        %3488 = vmin.xlane.f32.xlu0 %v3487
        %v3489 = vpop.xlane.xlu0 %3488
        %vm3490 = vcmp.eq.f32.partialorder %v3487, %v3489
        %v3491 = vsel %vm3490, %v3486, inf
        %3492 = vmin.xlane.f32.xlu0 %v3491
        %v3493 = vpop.xlane.xlu0 %3492
        %v3494 = vcvt.f32.s32 %v3493
        %v3495 = vcvt.f32.s32 %v3489
        %v3496 = vshll.u32 %v3495, 16
        %v3497 = vadd.s32 %v3496, %v3494
        %v3498 = vsel %vm3211, %v829, 0.0
        %3499 = vadd.xlane.f32.xlu0 %v3498
        %v3500 = vpop.xlane.xlu0 %3499
        %v3501 = vcvt.f32.s32.to.zero.pseudo %v3500
        %v3502 = vsub.s32 %v3501, 1
        %vm3503 = vcmp.eq.s32.totalorder %v3502, 7
        %vm3504 = vcmp.gt.s32.totalorder %v3502, 7
        %v3505 = vsel %vm3503, %v3497, 0
        %vm3506 = vmor %vm3503, %vm3504
        %vm3507 = vcmp.eq.s32.totalorder %v3176, 7
        %v3508 = vsel %vm3506, 1, 0
        %vm3509 = vcmp.eq.s32.totalorder %v3508, 1
        %vm3510 = vmand %vm3509, %vm3507
        %v3511 = vsel %vm3510, %v3505, 0
        %v3512 = vld [vmem:[#allocation3 + $0x7] sm:$0x1]
        %vm3513 = vcmp.eq.s32.totalorder %v3176, %v3505
        %v3514 = vsel %vm3513, %v3512, 0
        %v3515 = vsel %vm3211, %v3514, 2147483648
        %v3516 = vand.u32 %v3515, 65535
        %v3517 = vshra.s32 %v3515, 16
        %v3518 = vcvt.s32.f32 %v3516
        %v3519 = vcvt.s32.f32 %v3517
        %3520 = vmax.xlane.f32.xlu0 %v3519
        %v3521 = vpop.xlane.xlu0 %3520
        %vm3522 = vcmp.eq.f32.partialorder %v3519, %v3521
        %v3523 = vsel %vm3522, %v3518, -inf
        %3524 = vmax.xlane.f32.xlu0 %v3523
        %v3525 = vpop.xlane.xlu0 %3524
        %v3526 = vcvt.f32.s32 %v3525
        %v3527 = vcvt.f32.s32 %v3521
        %v3528 = vshll.u32 %v3527, 16
        %v3529 = vadd.s32 %v3528, %v3526
        %vm3530 = vcmp.eq.s32.totalorder %v3502, 6
        %vm3531 = vcmp.gt.s32.totalorder %v3502, 6
        %v3532 = vsel %vm3531, %v3529, %v3505
        %v3533 = vsel %vm3530, %v3497, %v3532
        %vm3534 = vmor %vm3530, %vm3531
        %vm3535 = vcmp.eq.s32.totalorder %v3176, 6
        %v3536 = vsel %vm3534, 1, 0
        %vm3537 = vcmp.eq.s32.totalorder %v3536, 1
        %vm3538 = vmand %vm3537, %vm3535
        %v3539 = vsel %vm3538, %v3533, %v3511
        %v3540 = vld [vmem:[#allocation3 + $0x6] sm:$0x1]
        %vm3541 = vcmp.eq.s32.totalorder %v3176, %v3533
        %v3542 = vsel %vm3541, %v3540, 0
        %v3543 = vsel %vm3211, %v3542, 2147483648
        %v3544 = vand.u32 %v3543, 65535
        %v3545 = vshra.s32 %v3543, 16
        %v3546 = vcvt.s32.f32 %v3544
        %v3547 = vcvt.s32.f32 %v3545
        %3548 = vmax.xlane.f32.xlu0 %v3547
        %v3549 = vpop.xlane.xlu0 %3548
        %vm3550 = vcmp.eq.f32.partialorder %v3547, %v3549
        %v3551 = vsel %vm3550, %v3546, -inf
        %3552 = vmax.xlane.f32.xlu0 %v3551
        %v3553 = vpop.xlane.xlu0 %3552
        %v3554 = vcvt.f32.s32 %v3553
        %v3555 = vcvt.f32.s32 %v3549
        %v3556 = vshll.u32 %v3555, 16
        %v3557 = vadd.s32 %v3556, %v3554
        %vm3558 = vcmp.eq.s32.totalorder %v3502, 5
        %vm3559 = vcmp.gt.s32.totalorder %v3502, 5
        %v3560 = vsel %vm3559, %v3557, %v3533
        %v3561 = vsel %vm3558, %v3497, %v3560
        %vm3562 = vmor %vm3558, %vm3559
        %vm3563 = vcmp.eq.s32.totalorder %v3176, 5
        %v3564 = vsel %vm3562, 1, 0
        %vm3565 = vcmp.eq.s32.totalorder %v3564, 1
        %vm3566 = vmand %vm3565, %vm3563
        %v3567 = vsel %vm3566, %v3561, %v3539
        %v3568 = vld [vmem:[#allocation3 + $0x5] sm:$0x1]
        %vm3569 = vcmp.eq.s32.totalorder %v3176, %v3561
        %v3570 = vsel %vm3569, %v3568, 0
        %v3571 = vsel %vm3211, %v3570, 2147483648
        %v3572 = vand.u32 %v3571, 65535
        %v3573 = vshra.s32 %v3571, 16
        %v3574 = vcvt.s32.f32 %v3572
        %v3575 = vcvt.s32.f32 %v3573
        %3576 = vmax.xlane.f32.xlu0 %v3575
        %v3577 = vpop.xlane.xlu0 %3576
        %vm3578 = vcmp.eq.f32.partialorder %v3575, %v3577
        %v3579 = vsel %vm3578, %v3574, -inf
        %3580 = vmax.xlane.f32.xlu0 %v3579
        %v3581 = vpop.xlane.xlu0 %3580
        %v3582 = vcvt.f32.s32 %v3581
        %v3583 = vcvt.f32.s32 %v3577
        %v3584 = vshll.u32 %v3583, 16
        %v3585 = vadd.s32 %v3584, %v3582
        %vm3586 = vcmp.eq.s32.totalorder %v3502, 4
        %vm3587 = vcmp.gt.s32.totalorder %v3502, 4
        %v3588 = vsel %vm3587, %v3585, %v3561
        %v3589 = vsel %vm3586, %v3497, %v3588
        %vm3590 = vmor %vm3586, %vm3587
        %vm3591 = vcmp.eq.s32.totalorder %v3176, 4
        %v3592 = vsel %vm3590, 1, 0
        %vm3593 = vcmp.eq.s32.totalorder %v3592, 1
        %vm3594 = vmand %vm3593, %vm3591
        %v3595 = vsel %vm3594, %v3589, %v3567
        %v3596 = vld [vmem:[#allocation3 + $0x4] sm:$0x1]
        %vm3597 = vcmp.eq.s32.totalorder %v3176, %v3589
        %v3598 = vsel %vm3597, %v3596, 0
        %v3599 = vsel %vm3211, %v3598, 2147483648
        %v3600 = vand.u32 %v3599, 65535
        %v3601 = vshra.s32 %v3599, 16
        %v3602 = vcvt.s32.f32 %v3600
        %v3603 = vcvt.s32.f32 %v3601
        %3604 = vmax.xlane.f32.xlu0 %v3603
        %v3605 = vpop.xlane.xlu0 %3604
        %vm3606 = vcmp.eq.f32.partialorder %v3603, %v3605
        %v3607 = vsel %vm3606, %v3602, -inf
        %3608 = vmax.xlane.f32.xlu0 %v3607
        %v3609 = vpop.xlane.xlu0 %3608
        %v3610 = vcvt.f32.s32 %v3609
        %v3611 = vcvt.f32.s32 %v3605
        %v3612 = vshll.u32 %v3611, 16
        %v3613 = vadd.s32 %v3612, %v3610
        %vm3614 = vcmp.eq.s32.totalorder %v3502, 3
        %vm3615 = vcmp.gt.s32.totalorder %v3502, 3
        %v3616 = vsel %vm3615, %v3613, %v3589
        %v3617 = vsel %vm3614, %v3497, %v3616
        %vm3618 = vmor %vm3614, %vm3615
        %vm3619 = vcmp.eq.s32.totalorder %v3176, 3
        %v3620 = vsel %vm3618, 1, 0
        %vm3621 = vcmp.eq.s32.totalorder %v3620, 1
        %vm3622 = vmand %vm3621, %vm3619
        %v3623 = vsel %vm3622, %v3617, %v3595
        %v3624 = vld [vmem:[#allocation3 + $0x3] sm:$0x1]
        %vm3625 = vcmp.eq.s32.totalorder %v3176, %v3617
        %v3626 = vsel %vm3625, %v3624, 0
        %v3627 = vsel %vm3211, %v3626, 2147483648
        %v3628 = vand.u32 %v3627, 65535
        %v3629 = vshra.s32 %v3627, 16
        %v3630 = vcvt.s32.f32 %v3628
        %v3631 = vcvt.s32.f32 %v3629
        %3632 = vmax.xlane.f32.xlu0 %v3631
        %v3633 = vpop.xlane.xlu0 %3632
        %vm3634 = vcmp.eq.f32.partialorder %v3631, %v3633
        %v3635 = vsel %vm3634, %v3630, -inf
        %3636 = vmax.xlane.f32.xlu0 %v3635
        %v3637 = vpop.xlane.xlu0 %3636
        %v3638 = vcvt.f32.s32 %v3637
        %v3639 = vcvt.f32.s32 %v3633
        %v3640 = vshll.u32 %v3639, 16
        %v3641 = vadd.s32 %v3640, %v3638
        %vm3642 = vcmp.eq.s32.totalorder %v3502, 2
        %vm3643 = vcmp.gt.s32.totalorder %v3502, 2
        %v3644 = vsel %vm3643, %v3641, %v3617
        %v3645 = vsel %vm3642, %v3497, %v3644
        %vm3646 = vmor %vm3642, %vm3643
        %vm3647 = vcmp.eq.s32.totalorder %v3176, 2
        %v3648 = vsel %vm3646, 1, 0
        %vm3649 = vcmp.eq.s32.totalorder %v3648, 1
        %vm3650 = vmand %vm3649, %vm3647
        %v3651 = vsel %vm3650, %v3645, %v3623
        %v3652 = vld [vmem:[#allocation3 + $0x2] sm:$0x1]
        %vm3653 = vcmp.eq.s32.totalorder %v3176, %v3645
        %v3654 = vsel %vm3653, %v3652, 0
        %v3655 = vsel %vm3211, %v3654, 2147483648
        %v3656 = vand.u32 %v3655, 65535
        %v3657 = vshra.s32 %v3655, 16
        %v3658 = vcvt.s32.f32 %v3656
        %v3659 = vcvt.s32.f32 %v3657
        %3660 = vmax.xlane.f32.xlu0 %v3659
        %v3661 = vpop.xlane.xlu0 %3660
        %vm3662 = vcmp.eq.f32.partialorder %v3659, %v3661
        %v3663 = vsel %vm3662, %v3658, -inf
        %3664 = vmax.xlane.f32.xlu0 %v3663
        %v3665 = vpop.xlane.xlu0 %3664
        %v3666 = vcvt.f32.s32 %v3665
        %v3667 = vcvt.f32.s32 %v3661
        %v3668 = vshll.u32 %v3667, 16
        %v3669 = vadd.s32 %v3668, %v3666
        %vm3670 = vcmp.eq.s32.totalorder %v3502, 1
        %vm3671 = vcmp.gt.s32.totalorder %v3502, 1
        %v3672 = vsel %vm3671, %v3669, %v3645
        %v3673 = vsel %vm3670, %v3497, %v3672
        %vm3674 = vmor %vm3670, %vm3671
        %vm3675 = vcmp.eq.s32.totalorder %v3176, 1
        %v3676 = vsel %vm3674, 1, 0
        %vm3677 = vcmp.eq.s32.totalorder %v3676, 1
        %vm3678 = vmand %vm3677, %vm3675
        %v3679 = vsel %vm3678, %v3673, %v3651
        %v3680 = vld [vmem:[#allocation3 + $0x1] sm:$0x1]
        %vm3681 = vcmp.eq.s32.totalorder %v3176, %v3673
        %v3682 = vsel %vm3681, %v3680, 0
        %v3683 = vsel %vm3211, %v3682, 2147483648
        %v3684 = vand.u32 %v3683, 65535
        %v3685 = vshra.s32 %v3683, 16
        %v3686 = vcvt.s32.f32 %v3684
        %v3687 = vcvt.s32.f32 %v3685
        %3688 = vmax.xlane.f32.xlu0 %v3687
        %v3689 = vpop.xlane.xlu0 %3688
        %vm3690 = vcmp.eq.f32.partialorder %v3687, %v3689
        %v3691 = vsel %vm3690, %v3686, -inf
        %3692 = vmax.xlane.f32.xlu0 %v3691
        %v3693 = vpop.xlane.xlu0 %3692
        %v3694 = vcvt.f32.s32 %v3693
        %v3695 = vcvt.f32.s32 %v3689
        %v3696 = vshll.u32 %v3695, 16
        %v3697 = vadd.s32 %v3696, %v3694
        %vm3698 = vcmp.eq.s32.totalorder %v3502, 0
        %vm3699 = vcmp.gt.s32.totalorder %v3502, 0
        %v3700 = vsel %vm3699, %v3697, %v3673
        %v3701 = vsel %vm3698, %v3497, %v3700
        %vm3702 = vmor %vm3698, %vm3699
        %vm3703 = vcmp.eq.s32.totalorder %v3176, 0
        %v3704 = vsel %vm3702, 1, 0
        %vm3705 = vcmp.eq.s32.totalorder %v3704, 1
        %vm3706 = vmand %vm3705, %vm3703
        %v3707 = vsel %vm3706, %v3701, %v3679
        %3708 = vst.msk [vmem:[%s819] sm:$0x1] %vm3211, %v3707
        %s3709 = sand.u32 %s626, 1
        %s3710 = scalar_lea.sflag [#allocation5], %s3709
        %s3711 = sand.u32 %s626, 1
        %s3712 = scalar_lea.vmem [#allocation4], %s3711
        // Predicated region
        $region129: #{forward_core.1} parent=127 // pred_check
          %p3713 = pneg %p636
        $region130: #{forward_core.1} parent=127 // pred_check_branch
          %3715 = sbr.rel (%p3713) target = $region132
        $region131: #{forward_core.1} parent=127 // pred_region
          %s3717 = ssub.s32 16, 16
          %3718 = vsyncadd %s3710, %s3717
          %s3719 = smul.addr %s41, 16
          %s3720 = scalar_lea.hbm %s27, %s3719
          %s3722 = sshll.u32 %s3712, 4
          %s3723 = int_to_ptr.vmem [resolvable:$true] %s3722
          %3725 = dma.vmem_to_hbm [thread:$0]  %s3723, 16, %s3720, %s3710
        $region132: #{forward_core.1} parent=127 // pred_fallthru
          _
      $region128: #{forward_core.1} parent=5 // pred_fallthru
        _
      %p3726 = scmp.le.s32.totalorder 2, %s36
      // Predicated region
      $region133: #{forward_core.1} parent=5 // pred_check
        %p3727 = pneg %p3726
      $region134: #{forward_core.1} parent=5 // pred_check_branch
        %3729 = sbr.rel (%p3727) target = $region136
      $region135: #{forward_core.1} parent=5 // pred_region
        %s3730 = ssub.s32 %s36, 2
        // Predicated region
        $region137: #{forward_core.1} parent=135 // pred_check
          %p3731 = pneg %p642
        $region138: #{forward_core.1} parent=135 // pred_check_branch
          %3733 = sbr.rel (%p3731) target = $region140
        $region139: #{forward_core.1} parent=135 // pred_region
          %s3734 = sand.u32 %s627, 1
          %s3735 = scalar_lea.sflag [#allocation5], %s3734
          %s3736 = sand.u32 %s627, 1
          %s3737 = scalar_lea.vmem [#allocation4], %s3736
          %3738 = dma.done %s3735, 16
        $region140: #{forward_core.1} parent=135 // pred_fallthru
          _
      $region136: #{forward_core.1} parent=5 // pred_fallthru
        _
    $region6: #{forward_core.1} parent=1 // loop_footer
      %s40 = sadd.s32 1, %s36
    $region7: #{forward_core.1} parent=1 // loop_footer_branch
      %35 = sbr.rel target = $region3
    $region8: #{forward_core.1} parent=1 // loop_exit
      _
    %3739 = vsyncpa [#allocation5], 1
    %s3740 = scalar_lea.sflag [#allocation5], 1
    %3741 = vsyncpa %s3740, 1

</llo_original>
